<compile_context>
chip_gen: v7x
topology: tpu7x:2x2x1
jax: 0.10.0
libtpu: 0.0.40
codegen_flags: <defaults>
</compile_context>

<pallas_src>
import jax
import jax.numpy as jnp
from jax.experimental import pallas as pl
from jax.experimental.pallas import tpu as pltpu

C_ENC = 384              # channels out of the DenseNet trunk (transition2)
MAP_H = MAP_W = 14       # spatial size of the binary mask
MAP_PIX = MAP_H * MAP_W  # 196 == Linear(14*14, 1) input size


def _deepixbis_fused_kernel(x_ref, w_dec_ref, w_lin_ref, b_ref, map_ref, out_ref):
    """Fused dec(1x1 conv)+sigmoid and Linear(196,1)+sigmoid.

    x_ref:     (TB, 384, 196)  NCHW tile with H*W flattened (no transpose)
    w_dec_ref: (384, 1)        Conv2d(384,1,1) weight, contraction over channels
    w_lin_ref: (1, 196)        Linear(196,1) weight, contraction over pixels
    b_ref:     (2,) in SMEM    [b_dec, b_lin]
    map_ref:   (TB, 196)       sigmoid(dec) -- lane-dense mask tile
    out_ref:   (TB, 1)         sigmoid(linear)
    """
    x = x_ref[...].astype(jnp.float32)                              # (TB, C, P)

    # 1x1 conv over channels == weighted sum over C: VPU mul + sublane reduce.
    w_dec = jnp.broadcast_to(
        w_dec_ref[...].astype(jnp.float32), (C_ENC, MAP_PIX))       # (C, P)
    s = jnp.sum(x * w_dec[None, :, :], axis=1) + b_ref[0]           # (TB, P)
    m = jax.nn.sigmoid(s)                                           # (TB, P)
    map_ref[...] = m.astype(map_ref.dtype)

    # Linear(196 -> 1) on the VMEM-resident mask tile: lane-wise weighted sum.
    w_lin = w_lin_ref[...].astype(jnp.float32)                      # (1, P)
    t = jnp.sum(m * w_lin, axis=-1, keepdims=True) + b_ref[1]       # (TB, 1)
    out_ref[...] = jax.nn.sigmoid(t).astype(out_ref.dtype)


def init_params(key):
    """Deterministic stand-in for trained dec (Conv2d 384->1, 1x1) and linear."""
    k0, k1, k2, k3 = jax.random.split(key, 4)
    # Conv2d(384, 1, 1) weight (1, 384, 1, 1) -> stored as (384, 1)
    w_dec = jax.random.normal(k0, (C_ENC, 1), jnp.float32) * 0.05
    b_dec = jax.random.normal(k1, (1,), jnp.float32) * 0.05
    # Linear(196, 1) weight kept in its native torch layout (1, 196)
    w_lin = jax.random.normal(k2, (1, MAP_PIX), jnp.float32) * 0.05
    b_lin = jax.random.normal(k3, (1,), jnp.float32) * 0.05
    return {"w_dec": w_dec, "b_dec": b_dec, "w_lin": w_lin, "b_lin": b_lin}


def deepixbis_head(enc_feat, params, *, tile_b=8):
    """enc_feat: (N, 384, 14, 14) NCHW (f32 or bf16).

    Returns (out_map: (N, 1, 14, 14) f32, out: (N,) f32), matching the module.
    """
    n = enc_feat.shape[0]
    assert enc_feat.shape[1:] == (C_ENC, MAP_H, MAP_W)

    # Free reshape of NCHW -- no transpose / extra HBM pass.
    x = enc_feat.reshape(n, C_ENC, MAP_PIX)

    # Pad batch to a multiple of the tile so block shapes stay (8,128)-friendly.
    n_pad = pl.cdiv(n, tile_b) * tile_b
    if n_pad != n:
        x = jnp.pad(x, ((0, n_pad - n), (0, 0), (0, 0)))

    bias = jnp.concatenate(
        [params["b_dec"].reshape(1), params["b_lin"].reshape(1)]
    ).astype(jnp.float32)                                           # (2,) -> SMEM

    grid = (n_pad // tile_b,)
    out_map_flat, out2d = pl.pallas_call(
        _deepixbis_fused_kernel,
        grid=grid,
        in_specs=[
            pl.BlockSpec((tile_b, C_ENC, MAP_PIX), lambda i: (i, 0, 0)),
            pl.BlockSpec((C_ENC, 1), lambda i: (0, 0)),        # weights resident
            pl.BlockSpec((1, MAP_PIX), lambda i: (0, 0)),      # weights resident
            pl.BlockSpec(memory_space=pltpu.MemorySpace.SMEM), # biases as scalars
        ],
        out_specs=(
            pl.BlockSpec((tile_b, MAP_PIX), lambda i: (i, 0)),
            pl.BlockSpec((tile_b, 1), lambda i: (i, 0)),
        ),
        out_shape=(
            jax.ShapeDtypeStruct((n_pad, MAP_PIX), jnp.float32),
            jax.ShapeDtypeStruct((n_pad, 1), jnp.float32),
        ),
        compiler_params=pltpu.CompilerParams(
            dimension_semantics=("parallel",),
            vmem_limit_bytes=32 * 1024 * 1024,
        ),
    )(x, params["w_dec"], params["w_lin"], bias)

    # PyTorch conventions: out_map (N,1,14,14); out = flatten(sigmoid(linear)).
    out_map = out_map_flat[:n].reshape(n, 1, MAP_H, MAP_W)
    out = out2d[:n, 0]
    return out_map, out


def _reference(enc_feat, params):
    """Pure-JAX reference for correctness checking."""
    n = enc_feat.shape[0]
    x = enc_feat.reshape(n, C_ENC, MAP_PIX).astype(jnp.float32)
    dec = jnp.einsum("ncp,c->np", x, params["w_dec"][:, 0]) + params["b_dec"][0]
    out_map = jax.nn.sigmoid(dec)                                    # (N, 196)
    logits = out_map @ params["w_lin"][0] + params["b_lin"][0]       # (N,)
    out = jax.nn.sigmoid(logits)
    return out_map.reshape(n, 1, MAP_H, MAP_W), out


if __name__ == "__main__":
    key = jax.random.PRNGKey(0)
    k_feat, k_params = jax.random.split(key)

    batch = 2
    enc_feat = jax.random.normal(k_feat, (batch, C_ENC, MAP_H, MAP_W), jnp.float32)
    params = init_params(k_params)

    out_map, out = jax.jit(deepixbis_head)(enc_feat, params)
    jax.block_until_ready((out_map, out))

    assert out_map.shape == (batch, 1, MAP_H, MAP_W)
    assert out.shape == (batch,)

    ref_map, ref_out = _reference(enc_feat, params)
    assert jnp.allclose(out_map, ref_map, atol=1e-5, rtol=1e-5)
    assert jnp.allclose(out, ref_out, atol=1e-5, rtol=1e-5)

    print("KERNEL_OK")
</pallas_src>

<mosaic_0001>
module attributes {stable_mosaic.version = 11 : i64} {
  func.func @_deepixbis_fused_kernel(%arg0: i32, %arg1: memref<8x384x196xf32, #tpu.memory_space<vmem>>, %arg2: memref<384x1xf32, #tpu.memory_space<vmem>>, %arg3: memref<1x196xf32, #tpu.memory_space<vmem>>, %arg4: memref<2xf32, #tpu.memory_space<smem>>, %arg5: memref<8x196xf32, #tpu.memory_space<vmem>>, %arg6: memref<8x1xf32, #tpu.memory_space<vmem>>) attributes {dimension_semantics = [#tpu.dimension_semantics<parallel>], iteration_bounds = array<i64: 1>, scalar_prefetch = 0 : i64, scratch_operands = 0 : i64, tpu.core_type = #tpu.core_type<tc>, window_params = [{transform_indices = @transform_0, window_bounds = array<i64: 8, 384, 196>}, {pipeline_mode = #tpu.pipeline_mode<synchronous>, transform_indices = @transform_1, window_bounds = array<i64: 384, 1>}, {pipeline_mode = #tpu.pipeline_mode<synchronous>, transform_indices = @transform_2, window_bounds = array<i64: 1, 196>}, {transform_indices = @transform_3, window_bounds = array<i64: 2>}, {transform_indices = @transform_4, window_bounds = array<i64: 8, 196>}, {transform_indices = @transform_5, window_bounds = array<i64: 8, 1>}]} {
    %c0 = arith.constant 0 : index
    %c0_0 = arith.constant 0 : index
    %c0_1 = arith.constant 0 : index
    %0 = vector.load %arg1[%c0, %c0_0, %c0_1] : memref<8x384x196xf32, #tpu.memory_space<vmem>>, vector<8x384x196xf32>
    %c0_2 = arith.constant 0 : index
    %c0_3 = arith.constant 0 : index
    %1 = vector.load %arg2[%c0_2, %c0_3] : memref<384x1xf32, #tpu.memory_space<vmem>>, vector<384x1xf32>
    %2 = vector.shape_cast %1 : vector<384x1xf32> to vector<384x1xf32>
    %3 = vector.broadcast %2 : vector<384x1xf32> to vector<384x196xf32>
    %4 = vector.shape_cast %3 : vector<384x196xf32> to vector<1x384x196xf32>
    %5 = vector.broadcast %4 : vector<1x384x196xf32> to vector<8x384x196xf32>
    %6 = arith.mulf %0, %5 : vector<8x384x196xf32>
    %cst = arith.constant dense<0.000000e+00> : vector<8x196xf32>
    %7 = vector.multi_reduction <add>, %6, %cst [1] : vector<8x384x196xf32> to vector<8x196xf32>
    %c0_4 = arith.constant 0 : index
    %8 = memref.load %arg4[%c0_4] : memref<2xf32, #tpu.memory_space<smem>>
    %9 = vector.broadcast %8 : f32 to vector<8x196xf32>
    %10 = arith.addf %7, %9 : vector<8x196xf32>
    %11 = arith.negf %10 : vector<8x196xf32>
    %12 = math.exp %11 : vector<8x196xf32>
    %cst_5 = arith.constant 1.000000e+00 : f32
    %13 = vector.broadcast %cst_5 : f32 to vector<8x196xf32>
    %14 = arith.addf %13, %12 : vector<8x196xf32>
    %15 = arith.divf %13, %14 : vector<8x196xf32>
    %c0_6 = arith.constant 0 : index
    %c0_7 = arith.constant 0 : index
    %16 = vector.load %arg5[%c0_6, %c0_7] : memref<8x196xf32, #tpu.memory_space<vmem>>, vector<8x196xf32>
    tpu.vector_store %arg5[%c0_6, %c0_7], %15 {strides = array<i32>} : memref<8x196xf32, #tpu.memory_space<vmem>>, vector<8x196xf32>,
    %c0_8 = arith.constant 0 : index
    %c0_9 = arith.constant 0 : index
    %17 = vector.load %arg3[%c0_8, %c0_9] : memref<1x196xf32, #tpu.memory_space<vmem>>, vector<1x196xf32>
    %18 = vector.broadcast %17 : vector<1x196xf32> to vector<8x196xf32>
    %19 = arith.mulf %15, %18 : vector<8x196xf32>
    %cst_10 = arith.constant dense<0.000000e+00> : vector<8xf32>
    %20 = vector.multi_reduction <add>, %19, %cst_10 [1] : vector<8x196xf32> to vector<8xf32>
    %21 = vector.shape_cast %20 : vector<8xf32> to vector<8x1xf32>
    %c1 = arith.constant 1 : index
    %22 = memref.load %arg4[%c1] : memref<2xf32, #tpu.memory_space<smem>>
    %23 = vector.broadcast %22 : f32 to vector<8x1xf32>
    %24 = arith.addf %21, %23 : vector<8x1xf32>
    %25 = arith.negf %24 : vector<8x1xf32>
    %26 = math.exp %25 : vector<8x1xf32>
    %cst_11 = arith.constant 1.000000e+00 : f32
    %27 = vector.broadcast %cst_11 : f32 to vector<8x1xf32>
    %28 = arith.addf %27, %26 : vector<8x1xf32>
    %29 = arith.divf %27, %28 : vector<8x1xf32>
    %c0_12 = arith.constant 0 : index
    %c0_13 = arith.constant 0 : index
    %30 = vector.load %arg6[%c0_12, %c0_13] : memref<8x1xf32, #tpu.memory_space<vmem>>, vector<8x1xf32>
    tpu.vector_store %arg6[%c0_12, %c0_13], %29 {strides = array<i32>} : memref<8x1xf32, #tpu.memory_space<vmem>>, vector<8x1xf32>,
    return
  }
  func.func @transform_0(%arg0: i32) -> (i32, i32, i32) {
    %c0_i32 = arith.constant 0 : i32
    %c0_i32_0 = arith.constant 0 : i32
    %c0_i32_1 = arith.constant 0 : i32
    return %arg0, %c0_i32, %c0_i32_0 : i32, i32, i32
  }
  func.func @transform_1(%arg0: i32) -> (i32, i32) {
    %c0_i32 = arith.constant 0 : i32
    %c0_i32_0 = arith.constant 0 : i32
    %c0_i32_1 = arith.constant 0 : i32
    return %c0_i32, %c0_i32_0 : i32, i32
  }
  func.func @transform_2(%arg0: i32) -> (i32, i32) {
    %c0_i32 = arith.constant 0 : i32
    %c0_i32_0 = arith.constant 0 : i32
    %c0_i32_1 = arith.constant 0 : i32
    return %c0_i32, %c0_i32_0 : i32, i32
  }
  func.func @transform_3(%arg0: i32) -> i32 {
    %c0_i32 = arith.constant 0 : i32
    %c0_i32_0 = arith.constant 0 : i32
    return %c0_i32 : i32
  }
  func.func @transform_4(%arg0: i32) -> (i32, i32) {
    %c0_i32 = arith.constant 0 : i32
    %c0_i32_0 = arith.constant 0 : i32
    return %arg0, %c0_i32 : i32, i32
  }
  func.func @transform_5(%arg0: i32) -> (i32, i32) {
    %c0_i32 = arith.constant 0 : i32
    %c0_i32_0 = arith.constant 0 : i32
    return %arg0, %c0_i32 : i32, i32
  }
}

</mosaic_0001>

<llo_original>
// kernel: deepixbis_head.1
$region0: #{deepixbis_head.1}
  #allocation0 [shape = 'u32[]', space=smem, size = 0x4, offset = 0x4, fixed_abs, tag = 'smem constant byte address 0x4 - core index']
  #allocation1 [shape = 'u32[144,128]{1,0:T(1,128)}', space=vmem, size = 0x12000, scoped, tag = 'internal scratch']
  %s0 = inlined_call_operand.vmem [shape: f32[8,384,196], index: 0, kind: input, shape index: {}]
  %s1 = inlined_call_operand.vmem [shape: f32[384,1], index: 1, kind: input, shape index: {}]
  %s2 = inlined_call_operand.vmem [shape: f32[1,196], index: 2, kind: input, shape index: {}]
  %s3 = inlined_call_operand.vmem [shape: f32[2], index: 3, kind: input, shape index: {}]
  %s4 = inlined_call_operand.vmem [shape: f32[8,196], index: 4, kind: output, shape index: {0}]
  %s5 = inlined_call_operand.vmem [shape: f32[8,1], index: 5, kind: output, shape index: {1}]
  %6 = xla_tuple %s4, %s5
  %s7 = sld [smem:[#allocation0]]
  $region38: #{deepixbis_head.1} parent=0
    _
  %s9 = ssub.s32 1, %s7
  %s10 = scalar_select 0, %s9, %s7
  $region1: #{deepixbis_head.1} parent=0
    #allocation2 [shape = 'u8[512]{0}', space=smem, size = 0x200, scoped, tag = 'input window, operand 3, single buffered']
    #allocation3 [shape = 's32[1]{0}', space=sflag, size = 0x4, scoped, tag = 'scoped memory for deepixbis_head.1']
    %11 = vsyncpa [#allocation3], 0
    // Predicated region
    $region2: #{deepixbis_head.1} parent=1 // pred_check
      _
    $region3: #{deepixbis_head.1} parent=1 // pred_check_branch
      %13 = sbr.rel (0) target = $region5
    $region4: #{deepixbis_head.1} parent=1 // pred_region
      _
    $region5: #{deepixbis_head.1} parent=1 // pred_fallthru
      _
    // Predicated region
    $region6: #{deepixbis_head.1} parent=1 // pred_check
      _
    $region7: #{deepixbis_head.1} parent=1 // pred_check_branch
      %15 = sbr.rel (0) target = $region9
    $region8: #{deepixbis_head.1} parent=1 // pred_region
      _
    $region9: #{deepixbis_head.1} parent=1 // pred_fallthru
      _
    // Predicated region
    $region10: #{deepixbis_head.1} parent=1 // pred_check
      _
    $region11: #{deepixbis_head.1} parent=1 // pred_check_branch
      %17 = sbr.rel (0) target = $region13
    $region12: #{deepixbis_head.1} parent=1 // pred_region
      _
    $region13: #{deepixbis_head.1} parent=1 // pred_fallthru
      _
    // Predicated region
    $region14: #{deepixbis_head.1} parent=1 // pred_check
      _
    $region15: #{deepixbis_head.1} parent=1 // pred_check_branch
      %19 = sbr.rel (0) target = $region17
    $region16: #{deepixbis_head.1} parent=1 // pred_region
      %s21 = ssub.s32 16, 16
      %22 = vsyncadd [#allocation3], %s21
      %s24 = sshll.u32 %s3, 4
      %s25 = int_to_ptr.vmem [resolvable:$true] %s24
      %27 = dma.vmem_to_smem %s25, 16, [#allocation2], [#allocation3]
    $region17: #{deepixbis_head.1} parent=1 // pred_fallthru
      _
    // Predicated region
    $region18: #{deepixbis_head.1} parent=1 // pred_check
      _
    $region19: #{deepixbis_head.1} parent=1 // pred_check_branch
      %29 = sbr.rel (0) target = $region21
    $region20: #{deepixbis_head.1} parent=1 // pred_region
      %30 = dma.done [#allocation3], 16
    $region21: #{deepixbis_head.1} parent=1 // pred_fallthru
      _
    %31 = sfence
    %v32 = vld [vmem:[%s0] sm:$0xff]
    %v33 = vld [vmem:[%s0 + $0x8] sm:$0xff]
    %v34 = vld [vmem:[%s0 + $0x10] sm:$0xff]
    %v35 = vld [vmem:[%s0 + $0x18] sm:$0xff]
    %v36 = vld [vmem:[%s0 + $0x20] sm:$0xff]
    %v37 = vld [vmem:[%s0 + $0x28] sm:$0xff]
    %v38 = vld [vmem:[%s0 + $0x30] sm:$0xff]
    %v39 = vld [vmem:[%s0 + $0x38] sm:$0xff]
    %v40 = vld [vmem:[%s0 + $0x40] sm:$0xff]
    %v41 = vld [vmem:[%s0 + $0x48] sm:$0xff]
    %v42 = vld [vmem:[%s0 + $0x50] sm:$0xff]
    %v43 = vld [vmem:[%s0 + $0x58] sm:$0xff]
    %v44 = vld [vmem:[%s0 + $0x60] sm:$0xff]
    %v45 = vld [vmem:[%s0 + $0x68] sm:$0xff]
    %v46 = vld [vmem:[%s0 + $0x70] sm:$0xff]
    %v47 = vld [vmem:[%s0 + $0x78] sm:$0xff]
    %v48 = vld [vmem:[%s0 + $0x80] sm:$0xff]
    %v49 = vld [vmem:[%s0 + $0x88] sm:$0xff]
    %v50 = vld [vmem:[%s0 + $0x90] sm:$0xff]
    %v51 = vld [vmem:[%s0 + $0x98] sm:$0xff]
    %v52 = vld [vmem:[%s0 + $0xa0] sm:$0xff]
    %v53 = vld [vmem:[%s0 + $0xa8] sm:$0xff]
    %v54 = vld [vmem:[%s0 + $0xb0] sm:$0xff]
    %v55 = vld [vmem:[%s0 + $0xb8] sm:$0xff]
    %v56 = vld [vmem:[%s0 + $0xc0] sm:$0xff]
    %v57 = vld [vmem:[%s0 + $0xc8] sm:$0xff]
    %v58 = vld [vmem:[%s0 + $0xd0] sm:$0xff]
    %v59 = vld [vmem:[%s0 + $0xd8] sm:$0xff]
    %v60 = vld [vmem:[%s0 + $0xe0] sm:$0xff]
    %v61 = vld [vmem:[%s0 + $0xe8] sm:$0xff]
    %v62 = vld [vmem:[%s0 + $0xf0] sm:$0xff]
    %v63 = vld [vmem:[%s0 + $0xf8] sm:$0xff]
    %v64 = vld [vmem:[%s0 + $0x100] sm:$0xff]
    %v65 = vld [vmem:[%s0 + $0x108] sm:$0xff]
    %v66 = vld [vmem:[%s0 + $0x110] sm:$0xff]
    %v67 = vld [vmem:[%s0 + $0x118] sm:$0xff]
    %v68 = vld [vmem:[%s0 + $0x120] sm:$0xff]
    %v69 = vld [vmem:[%s0 + $0x128] sm:$0xff]
    %v70 = vld [vmem:[%s0 + $0x130] sm:$0xff]
    %v71 = vld [vmem:[%s0 + $0x138] sm:$0xff]
    %v72 = vld [vmem:[%s0 + $0x140] sm:$0xff]
    %v73 = vld [vmem:[%s0 + $0x148] sm:$0xff]
    %v74 = vld [vmem:[%s0 + $0x150] sm:$0xff]
    %v75 = vld [vmem:[%s0 + $0x158] sm:$0xff]
    %v76 = vld [vmem:[%s0 + $0x160] sm:$0xff]
    %v77 = vld [vmem:[%s0 + $0x168] sm:$0xff]
    %v78 = vld [vmem:[%s0 + $0x170] sm:$0xff]
    %v79 = vld [vmem:[%s0 + $0x178] sm:$0xff]
    %v80 = vld [vmem:[%s0 + $0x180] sm:$0xff]
    %v81 = vld [vmem:[%s0 + $0x188] sm:$0xff]
    %v82 = vld [vmem:[%s0 + $0x190] sm:$0xff]
    %v83 = vld [vmem:[%s0 + $0x198] sm:$0xff]
    %v84 = vld [vmem:[%s0 + $0x1a0] sm:$0xff]
    %v85 = vld [vmem:[%s0 + $0x1a8] sm:$0xff]
    %v86 = vld [vmem:[%s0 + $0x1b0] sm:$0xff]
    %v87 = vld [vmem:[%s0 + $0x1b8] sm:$0xff]
    %v88 = vld [vmem:[%s0 + $0x1c0] sm:$0xff]
    %v89 = vld [vmem:[%s0 + $0x1c8] sm:$0xff]
    %v90 = vld [vmem:[%s0 + $0x1d0] sm:$0xff]
    %v91 = vld [vmem:[%s0 + $0x1d8] sm:$0xff]
    %v92 = vld [vmem:[%s0 + $0x1e0] sm:$0xff]
    %v93 = vld [vmem:[%s0 + $0x1e8] sm:$0xff]
    %v94 = vld [vmem:[%s0 + $0x1f0] sm:$0xff]
    %v95 = vld [vmem:[%s0 + $0x1f8] sm:$0xff]
    %v96 = vld [vmem:[%s0 + $0x200] sm:$0xff]
    %v97 = vld [vmem:[%s0 + $0x208] sm:$0xff]
    %v98 = vld [vmem:[%s0 + $0x210] sm:$0xff]
    %v99 = vld [vmem:[%s0 + $0x218] sm:$0xff]
    %v100 = vld [vmem:[%s0 + $0x220] sm:$0xff]
    %v101 = vld [vmem:[%s0 + $0x228] sm:$0xff]
    %v102 = vld [vmem:[%s0 + $0x230] sm:$0xff]
    %v103 = vld [vmem:[%s0 + $0x238] sm:$0xff]
    %v104 = vld [vmem:[%s0 + $0x240] sm:$0xff]
    %v105 = vld [vmem:[%s0 + $0x248] sm:$0xff]
    %v106 = vld [vmem:[%s0 + $0x250] sm:$0xff]
    %v107 = vld [vmem:[%s0 + $0x258] sm:$0xff]
    %v108 = vld [vmem:[%s0 + $0x260] sm:$0xff]
    %v109 = vld [vmem:[%s0 + $0x268] sm:$0xff]
    %v110 = vld [vmem:[%s0 + $0x270] sm:$0xff]
    %v111 = vld [vmem:[%s0 + $0x278] sm:$0xff]
    %v112 = vld [vmem:[%s0 + $0x280] sm:$0xff]
    %v113 = vld [vmem:[%s0 + $0x288] sm:$0xff]
    %v114 = vld [vmem:[%s0 + $0x290] sm:$0xff]
    %v115 = vld [vmem:[%s0 + $0x298] sm:$0xff]
    %v116 = vld [vmem:[%s0 + $0x2a0] sm:$0xff]
    %v117 = vld [vmem:[%s0 + $0x2a8] sm:$0xff]
    %v118 = vld [vmem:[%s0 + $0x2b0] sm:$0xff]
    %v119 = vld [vmem:[%s0 + $0x2b8] sm:$0xff]
    %v120 = vld [vmem:[%s0 + $0x2c0] sm:$0xff]
    %v121 = vld [vmem:[%s0 + $0x2c8] sm:$0xff]
    %v122 = vld [vmem:[%s0 + $0x2d0] sm:$0xff]
    %v123 = vld [vmem:[%s0 + $0x2d8] sm:$0xff]
    %v124 = vld [vmem:[%s0 + $0x2e0] sm:$0xff]
    %v125 = vld [vmem:[%s0 + $0x2e8] sm:$0xff]
    %v126 = vld [vmem:[%s0 + $0x2f0] sm:$0xff]
    %v127 = vld [vmem:[%s0 + $0x2f8] sm:$0xff]
    %v128 = vld [vmem:[%s0 + $0x300] sm:$0xff]
    %v129 = vld [vmem:[%s0 + $0x308] sm:$0xff]
    %v130 = vld [vmem:[%s0 + $0x310] sm:$0xff]
    %v131 = vld [vmem:[%s0 + $0x318] sm:$0xff]
    %v132 = vld [vmem:[%s0 + $0x320] sm:$0xff]
    %v133 = vld [vmem:[%s0 + $0x328] sm:$0xff]
    %v134 = vld [vmem:[%s0 + $0x330] sm:$0xff]
    %v135 = vld [vmem:[%s0 + $0x338] sm:$0xff]
    %v136 = vld [vmem:[%s0 + $0x340] sm:$0xff]
    %v137 = vld [vmem:[%s0 + $0x348] sm:$0xff]
    %v138 = vld [vmem:[%s0 + $0x350] sm:$0xff]
    %v139 = vld [vmem:[%s0 + $0x358] sm:$0xff]
    %v140 = vld [vmem:[%s0 + $0x360] sm:$0xff]
    %v141 = vld [vmem:[%s0 + $0x368] sm:$0xff]
    %v142 = vld [vmem:[%s0 + $0x370] sm:$0xff]
    %v143 = vld [vmem:[%s0 + $0x378] sm:$0xff]
    %v144 = vld [vmem:[%s0 + $0x380] sm:$0xff]
    %v145 = vld [vmem:[%s0 + $0x388] sm:$0xff]
    %v146 = vld [vmem:[%s0 + $0x390] sm:$0xff]
    %v147 = vld [vmem:[%s0 + $0x398] sm:$0xff]
    %v148 = vld [vmem:[%s0 + $0x3a0] sm:$0xff]
    %v149 = vld [vmem:[%s0 + $0x3a8] sm:$0xff]
    %v150 = vld [vmem:[%s0 + $0x3b0] sm:$0xff]
    %v151 = vld [vmem:[%s0 + $0x3b8] sm:$0xff]
    %v152 = vld [vmem:[%s0 + $0x3c0] sm:$0xff]
    %v153 = vld [vmem:[%s0 + $0x3c8] sm:$0xff]
    %v154 = vld [vmem:[%s0 + $0x3d0] sm:$0xff]
    %v155 = vld [vmem:[%s0 + $0x3d8] sm:$0xff]
    %v156 = vld [vmem:[%s0 + $0x3e0] sm:$0xff]
    %v157 = vld [vmem:[%s0 + $0x3e8] sm:$0xff]
    %v158 = vld [vmem:[%s0 + $0x3f0] sm:$0xff]
    %v159 = vld [vmem:[%s0 + $0x3f8] sm:$0xff]
    %v160 = vld [vmem:[%s0 + $0x400] sm:$0xff]
    %v161 = vld [vmem:[%s0 + $0x408] sm:$0xff]
    %v162 = vld [vmem:[%s0 + $0x410] sm:$0xff]
    %v163 = vld [vmem:[%s0 + $0x418] sm:$0xff]
    %v164 = vld [vmem:[%s0 + $0x420] sm:$0xff]
    %v165 = vld [vmem:[%s0 + $0x428] sm:$0xff]
    %v166 = vld [vmem:[%s0 + $0x430] sm:$0xff]
    %v167 = vld [vmem:[%s0 + $0x438] sm:$0xff]
    %v168 = vld [vmem:[%s0 + $0x440] sm:$0xff]
    %v169 = vld [vmem:[%s0 + $0x448] sm:$0xff]
    %v170 = vld [vmem:[%s0 + $0x450] sm:$0xff]
    %v171 = vld [vmem:[%s0 + $0x458] sm:$0xff]
    %v172 = vld [vmem:[%s0 + $0x460] sm:$0xff]
    %v173 = vld [vmem:[%s0 + $0x468] sm:$0xff]
    %v174 = vld [vmem:[%s0 + $0x470] sm:$0xff]
    %v175 = vld [vmem:[%s0 + $0x478] sm:$0xff]
    %v176 = vld [vmem:[%s0 + $0x480] sm:$0xff]
    %v177 = vld [vmem:[%s0 + $0x488] sm:$0xff]
    %v178 = vld [vmem:[%s0 + $0x490] sm:$0xff]
    %v179 = vld [vmem:[%s0 + $0x498] sm:$0xff]
    %v180 = vld [vmem:[%s0 + $0x4a0] sm:$0xff]
    %v181 = vld [vmem:[%s0 + $0x4a8] sm:$0xff]
    %v182 = vld [vmem:[%s0 + $0x4b0] sm:$0xff]
    %v183 = vld [vmem:[%s0 + $0x4b8] sm:$0xff]
    %v184 = vld [vmem:[%s0 + $0x4c0] sm:$0xff]
    %v185 = vld [vmem:[%s0 + $0x4c8] sm:$0xff]
    %v186 = vld [vmem:[%s0 + $0x4d0] sm:$0xff]
    %v187 = vld [vmem:[%s0 + $0x4d8] sm:$0xff]
    %v188 = vld [vmem:[%s0 + $0x4e0] sm:$0xff]
    %v189 = vld [vmem:[%s0 + $0x4e8] sm:$0xff]
    %v190 = vld [vmem:[%s0 + $0x4f0] sm:$0xff]
    %v191 = vld [vmem:[%s0 + $0x4f8] sm:$0xff]
    %v192 = vld [vmem:[%s0 + $0x500] sm:$0xff]
    %v193 = vld [vmem:[%s0 + $0x508] sm:$0xff]
    %v194 = vld [vmem:[%s0 + $0x510] sm:$0xff]
    %v195 = vld [vmem:[%s0 + $0x518] sm:$0xff]
    %v196 = vld [vmem:[%s0 + $0x520] sm:$0xff]
    %v197 = vld [vmem:[%s0 + $0x528] sm:$0xff]
    %v198 = vld [vmem:[%s0 + $0x530] sm:$0xff]
    %v199 = vld [vmem:[%s0 + $0x538] sm:$0xff]
    %v200 = vld [vmem:[%s0 + $0x540] sm:$0xff]
    %v201 = vld [vmem:[%s0 + $0x548] sm:$0xff]
    %v202 = vld [vmem:[%s0 + $0x550] sm:$0xff]
    %v203 = vld [vmem:[%s0 + $0x558] sm:$0xff]
    %v204 = vld [vmem:[%s0 + $0x560] sm:$0xff]
    %v205 = vld [vmem:[%s0 + $0x568] sm:$0xff]
    %v206 = vld [vmem:[%s0 + $0x570] sm:$0xff]
    %v207 = vld [vmem:[%s0 + $0x578] sm:$0xff]
    %v208 = vld [vmem:[%s0 + $0x580] sm:$0xff]
    %v209 = vld [vmem:[%s0 + $0x588] sm:$0xff]
    %v210 = vld [vmem:[%s0 + $0x590] sm:$0xff]
    %v211 = vld [vmem:[%s0 + $0x598] sm:$0xff]
    %v212 = vld [vmem:[%s0 + $0x5a0] sm:$0xff]
    %v213 = vld [vmem:[%s0 + $0x5a8] sm:$0xff]
    %v214 = vld [vmem:[%s0 + $0x5b0] sm:$0xff]
    %v215 = vld [vmem:[%s0 + $0x5b8] sm:$0xff]
    %v216 = vld [vmem:[%s0 + $0x5c0] sm:$0xff]
    %v217 = vld [vmem:[%s0 + $0x5c8] sm:$0xff]
    %v218 = vld [vmem:[%s0 + $0x5d0] sm:$0xff]
    %v219 = vld [vmem:[%s0 + $0x5d8] sm:$0xff]
    %v220 = vld [vmem:[%s0 + $0x5e0] sm:$0xff]
    %v221 = vld [vmem:[%s0 + $0x5e8] sm:$0xff]
    %v222 = vld [vmem:[%s0 + $0x5f0] sm:$0xff]
    %v223 = vld [vmem:[%s0 + $0x5f8] sm:$0xff]
    %v224 = vld [vmem:[%s0 + $0x600] sm:$0xff]
    %v225 = vld [vmem:[%s0 + $0x608] sm:$0xff]
    %v226 = vld [vmem:[%s0 + $0x610] sm:$0xff]
    %v227 = vld [vmem:[%s0 + $0x618] sm:$0xff]
    %v228 = vld [vmem:[%s0 + $0x620] sm:$0xff]
    %v229 = vld [vmem:[%s0 + $0x628] sm:$0xff]
    %v230 = vld [vmem:[%s0 + $0x630] sm:$0xff]
    %v231 = vld [vmem:[%s0 + $0x638] sm:$0xff]
    %v232 = vld [vmem:[%s0 + $0x640] sm:$0xff]
    %v233 = vld [vmem:[%s0 + $0x648] sm:$0xff]
    %v234 = vld [vmem:[%s0 + $0x650] sm:$0xff]
    %v235 = vld [vmem:[%s0 + $0x658] sm:$0xff]
    %v236 = vld [vmem:[%s0 + $0x660] sm:$0xff]
    %v237 = vld [vmem:[%s0 + $0x668] sm:$0xff]
    %v238 = vld [vmem:[%s0 + $0x670] sm:$0xff]
    %v239 = vld [vmem:[%s0 + $0x678] sm:$0xff]
    %v240 = vld [vmem:[%s0 + $0x680] sm:$0xff]
    %v241 = vld [vmem:[%s0 + $0x688] sm:$0xff]
    %v242 = vld [vmem:[%s0 + $0x690] sm:$0xff]
    %v243 = vld [vmem:[%s0 + $0x698] sm:$0xff]
    %v244 = vld [vmem:[%s0 + $0x6a0] sm:$0xff]
    %v245 = vld [vmem:[%s0 + $0x6a8] sm:$0xff]
    %v246 = vld [vmem:[%s0 + $0x6b0] sm:$0xff]
    %v247 = vld [vmem:[%s0 + $0x6b8] sm:$0xff]
    %v248 = vld [vmem:[%s0 + $0x6c0] sm:$0xff]
    %v249 = vld [vmem:[%s0 + $0x6c8] sm:$0xff]
    %v250 = vld [vmem:[%s0 + $0x6d0] sm:$0xff]
    %v251 = vld [vmem:[%s0 + $0x6d8] sm:$0xff]
    %v252 = vld [vmem:[%s0 + $0x6e0] sm:$0xff]
    %v253 = vld [vmem:[%s0 + $0x6e8] sm:$0xff]
    %v254 = vld [vmem:[%s0 + $0x6f0] sm:$0xff]
    %v255 = vld [vmem:[%s0 + $0x6f8] sm:$0xff]
    %v256 = vld [vmem:[%s0 + $0x700] sm:$0xff]
    %v257 = vld [vmem:[%s0 + $0x708] sm:$0xff]
    %v258 = vld [vmem:[%s0 + $0x710] sm:$0xff]
    %v259 = vld [vmem:[%s0 + $0x718] sm:$0xff]
    %v260 = vld [vmem:[%s0 + $0x720] sm:$0xff]
    %v261 = vld [vmem:[%s0 + $0x728] sm:$0xff]
    %v262 = vld [vmem:[%s0 + $0x730] sm:$0xff]
    %v263 = vld [vmem:[%s0 + $0x738] sm:$0xff]
    %v264 = vld [vmem:[%s0 + $0x740] sm:$0xff]
    %v265 = vld [vmem:[%s0 + $0x748] sm:$0xff]
    %v266 = vld [vmem:[%s0 + $0x750] sm:$0xff]
    %v267 = vld [vmem:[%s0 + $0x758] sm:$0xff]
    %v268 = vld [vmem:[%s0 + $0x760] sm:$0xff]
    %v269 = vld [vmem:[%s0 + $0x768] sm:$0xff]
    %v270 = vld [vmem:[%s0 + $0x770] sm:$0xff]
    %v271 = vld [vmem:[%s0 + $0x778] sm:$0xff]
    %v272 = vld [vmem:[%s0 + $0x780] sm:$0xff]
    %v273 = vld [vmem:[%s0 + $0x788] sm:$0xff]
    %v274 = vld [vmem:[%s0 + $0x790] sm:$0xff]
    %v275 = vld [vmem:[%s0 + $0x798] sm:$0xff]
    %v276 = vld [vmem:[%s0 + $0x7a0] sm:$0xff]
    %v277 = vld [vmem:[%s0 + $0x7a8] sm:$0xff]
    %v278 = vld [vmem:[%s0 + $0x7b0] sm:$0xff]
    %v279 = vld [vmem:[%s0 + $0x7b8] sm:$0xff]
    %v280 = vld [vmem:[%s0 + $0x7c0] sm:$0xff]
    %v281 = vld [vmem:[%s0 + $0x7c8] sm:$0xff]
    %v282 = vld [vmem:[%s0 + $0x7d0] sm:$0xff]
    %v283 = vld [vmem:[%s0 + $0x7d8] sm:$0xff]
    %v284 = vld [vmem:[%s0 + $0x7e0] sm:$0xff]
    %v285 = vld [vmem:[%s0 + $0x7e8] sm:$0xff]
    %v286 = vld [vmem:[%s0 + $0x7f0] sm:$0xff]
    %v287 = vld [vmem:[%s0 + $0x7f8] sm:$0xff]
    %v288 = vld [vmem:[%s0 + $0x800] sm:$0xff]
    %v289 = vld [vmem:[%s0 + $0x808] sm:$0xff]
    %v290 = vld [vmem:[%s0 + $0x810] sm:$0xff]
    %v291 = vld [vmem:[%s0 + $0x818] sm:$0xff]
    %v292 = vld [vmem:[%s0 + $0x820] sm:$0xff]
    %v293 = vld [vmem:[%s0 + $0x828] sm:$0xff]
    %v294 = vld [vmem:[%s0 + $0x830] sm:$0xff]
    %v295 = vld [vmem:[%s0 + $0x838] sm:$0xff]
    %v296 = vld [vmem:[%s0 + $0x840] sm:$0xff]
    %v297 = vld [vmem:[%s0 + $0x848] sm:$0xff]
    %v298 = vld [vmem:[%s0 + $0x850] sm:$0xff]
    %v299 = vld [vmem:[%s0 + $0x858] sm:$0xff]
    %v300 = vld [vmem:[%s0 + $0x860] sm:$0xff]
    %v301 = vld [vmem:[%s0 + $0x868] sm:$0xff]
    %v302 = vld [vmem:[%s0 + $0x870] sm:$0xff]
    %v303 = vld [vmem:[%s0 + $0x878] sm:$0xff]
    %v304 = vld [vmem:[%s0 + $0x880] sm:$0xff]
    %v305 = vld [vmem:[%s0 + $0x888] sm:$0xff]
    %v306 = vld [vmem:[%s0 + $0x890] sm:$0xff]
    %v307 = vld [vmem:[%s0 + $0x898] sm:$0xff]
    %v308 = vld [vmem:[%s0 + $0x8a0] sm:$0xff]
    %v309 = vld [vmem:[%s0 + $0x8a8] sm:$0xff]
    %v310 = vld [vmem:[%s0 + $0x8b0] sm:$0xff]
    %v311 = vld [vmem:[%s0 + $0x8b8] sm:$0xff]
    %v312 = vld [vmem:[%s0 + $0x8c0] sm:$0xff]
    %v313 = vld [vmem:[%s0 + $0x8c8] sm:$0xff]
    %v314 = vld [vmem:[%s0 + $0x8d0] sm:$0xff]
    %v315 = vld [vmem:[%s0 + $0x8d8] sm:$0xff]
    %v316 = vld [vmem:[%s0 + $0x8e0] sm:$0xff]
    %v317 = vld [vmem:[%s0 + $0x8e8] sm:$0xff]
    %v318 = vld [vmem:[%s0 + $0x8f0] sm:$0xff]
    %v319 = vld [vmem:[%s0 + $0x8f8] sm:$0xff]
    %v320 = vld [vmem:[%s0 + $0x900] sm:$0xff]
    %v321 = vld [vmem:[%s0 + $0x908] sm:$0xff]
    %v322 = vld [vmem:[%s0 + $0x910] sm:$0xff]
    %v323 = vld [vmem:[%s0 + $0x918] sm:$0xff]
    %v324 = vld [vmem:[%s0 + $0x920] sm:$0xff]
    %v325 = vld [vmem:[%s0 + $0x928] sm:$0xff]
    %v326 = vld [vmem:[%s0 + $0x930] sm:$0xff]
    %v327 = vld [vmem:[%s0 + $0x938] sm:$0xff]
    %v328 = vld [vmem:[%s0 + $0x940] sm:$0xff]
    %v329 = vld [vmem:[%s0 + $0x948] sm:$0xff]
    %v330 = vld [vmem:[%s0 + $0x950] sm:$0xff]
    %v331 = vld [vmem:[%s0 + $0x958] sm:$0xff]
    %v332 = vld [vmem:[%s0 + $0x960] sm:$0xff]
    %v333 = vld [vmem:[%s0 + $0x968] sm:$0xff]
    %v334 = vld [vmem:[%s0 + $0x970] sm:$0xff]
    %v335 = vld [vmem:[%s0 + $0x978] sm:$0xff]
    %v336 = vld [vmem:[%s0 + $0x980] sm:$0xff]
    %v337 = vld [vmem:[%s0 + $0x988] sm:$0xff]
    %v338 = vld [vmem:[%s0 + $0x990] sm:$0xff]
    %v339 = vld [vmem:[%s0 + $0x998] sm:$0xff]
    %v340 = vld [vmem:[%s0 + $0x9a0] sm:$0xff]
    %v341 = vld [vmem:[%s0 + $0x9a8] sm:$0xff]
    %v342 = vld [vmem:[%s0 + $0x9b0] sm:$0xff]
    %v343 = vld [vmem:[%s0 + $0x9b8] sm:$0xff]
    %v344 = vld [vmem:[%s0 + $0x9c0] sm:$0xff]
    %v345 = vld [vmem:[%s0 + $0x9c8] sm:$0xff]
    %v346 = vld [vmem:[%s0 + $0x9d0] sm:$0xff]
    %v347 = vld [vmem:[%s0 + $0x9d8] sm:$0xff]
    %v348 = vld [vmem:[%s0 + $0x9e0] sm:$0xff]
    %v349 = vld [vmem:[%s0 + $0x9e8] sm:$0xff]
    %v350 = vld [vmem:[%s0 + $0x9f0] sm:$0xff]
    %v351 = vld [vmem:[%s0 + $0x9f8] sm:$0xff]
    %v352 = vld [vmem:[%s0 + $0xa00] sm:$0xff]
    %v353 = vld [vmem:[%s0 + $0xa08] sm:$0xff]
    %v354 = vld [vmem:[%s0 + $0xa10] sm:$0xff]
    %v355 = vld [vmem:[%s0 + $0xa18] sm:$0xff]
    %v356 = vld [vmem:[%s0 + $0xa20] sm:$0xff]
    %v357 = vld [vmem:[%s0 + $0xa28] sm:$0xff]
    %v358 = vld [vmem:[%s0 + $0xa30] sm:$0xff]
    %v359 = vld [vmem:[%s0 + $0xa38] sm:$0xff]
    %v360 = vld [vmem:[%s0 + $0xa40] sm:$0xff]
    %v361 = vld [vmem:[%s0 + $0xa48] sm:$0xff]
    %v362 = vld [vmem:[%s0 + $0xa50] sm:$0xff]
    %v363 = vld [vmem:[%s0 + $0xa58] sm:$0xff]
    %v364 = vld [vmem:[%s0 + $0xa60] sm:$0xff]
    %v365 = vld [vmem:[%s0 + $0xa68] sm:$0xff]
    %v366 = vld [vmem:[%s0 + $0xa70] sm:$0xff]
    %v367 = vld [vmem:[%s0 + $0xa78] sm:$0xff]
    %v368 = vld [vmem:[%s0 + $0xa80] sm:$0xff]
    %v369 = vld [vmem:[%s0 + $0xa88] sm:$0xff]
    %v370 = vld [vmem:[%s0 + $0xa90] sm:$0xff]
    %v371 = vld [vmem:[%s0 + $0xa98] sm:$0xff]
    %v372 = vld [vmem:[%s0 + $0xaa0] sm:$0xff]
    %v373 = vld [vmem:[%s0 + $0xaa8] sm:$0xff]
    %v374 = vld [vmem:[%s0 + $0xab0] sm:$0xff]
    %v375 = vld [vmem:[%s0 + $0xab8] sm:$0xff]
    %v376 = vld [vmem:[%s0 + $0xac0] sm:$0xff]
    %v377 = vld [vmem:[%s0 + $0xac8] sm:$0xff]
    %v378 = vld [vmem:[%s0 + $0xad0] sm:$0xff]
    %v379 = vld [vmem:[%s0 + $0xad8] sm:$0xff]
    %v380 = vld [vmem:[%s0 + $0xae0] sm:$0xff]
    %v381 = vld [vmem:[%s0 + $0xae8] sm:$0xff]
    %v382 = vld [vmem:[%s0 + $0xaf0] sm:$0xff]
    %v383 = vld [vmem:[%s0 + $0xaf8] sm:$0xff]
    %v384 = vld [vmem:[%s0 + $0xb00] sm:$0xff]
    %v385 = vld [vmem:[%s0 + $0xb08] sm:$0xff]
    %v386 = vld [vmem:[%s0 + $0xb10] sm:$0xff]
    %v387 = vld [vmem:[%s0 + $0xb18] sm:$0xff]
    %v388 = vld [vmem:[%s0 + $0xb20] sm:$0xff]
    %v389 = vld [vmem:[%s0 + $0xb28] sm:$0xff]
    %v390 = vld [vmem:[%s0 + $0xb30] sm:$0xff]
    %v391 = vld [vmem:[%s0 + $0xb38] sm:$0xff]
    %v392 = vld [vmem:[%s0 + $0xb40] sm:$0xff]
    %v393 = vld [vmem:[%s0 + $0xb48] sm:$0xff]
    %v394 = vld [vmem:[%s0 + $0xb50] sm:$0xff]
    %v395 = vld [vmem:[%s0 + $0xb58] sm:$0xff]
    %v396 = vld [vmem:[%s0 + $0xb60] sm:$0xff]
    %v397 = vld [vmem:[%s0 + $0xb68] sm:$0xff]
    %v398 = vld [vmem:[%s0 + $0xb70] sm:$0xff]
    %v399 = vld [vmem:[%s0 + $0xb78] sm:$0xff]
    %v400 = vld [vmem:[%s0 + $0xb80] sm:$0xff]
    %v401 = vld [vmem:[%s0 + $0xb88] sm:$0xff]
    %v402 = vld [vmem:[%s0 + $0xb90] sm:$0xff]
    %v403 = vld [vmem:[%s0 + $0xb98] sm:$0xff]
    %v404 = vld [vmem:[%s0 + $0xba0] sm:$0xff]
    %v405 = vld [vmem:[%s0 + $0xba8] sm:$0xff]
    %v406 = vld [vmem:[%s0 + $0xbb0] sm:$0xff]
    %v407 = vld [vmem:[%s0 + $0xbb8] sm:$0xff]
    %v408 = vld [vmem:[%s0 + $0xbc0] sm:$0xff]
    %v409 = vld [vmem:[%s0 + $0xbc8] sm:$0xff]
    %v410 = vld [vmem:[%s0 + $0xbd0] sm:$0xff]
    %v411 = vld [vmem:[%s0 + $0xbd8] sm:$0xff]
    %v412 = vld [vmem:[%s0 + $0xbe0] sm:$0xff]
    %v413 = vld [vmem:[%s0 + $0xbe8] sm:$0xff]
    %v414 = vld [vmem:[%s0 + $0xbf0] sm:$0xff]
    %v415 = vld [vmem:[%s0 + $0xbf8] sm:$0xff]
    %v416 = vld [vmem:[%s0 + $0xc00] sm:$0xff]
    %v417 = vld [vmem:[%s0 + $0xc08] sm:$0xff]
    %v418 = vld [vmem:[%s0 + $0xc10] sm:$0xff]
    %v419 = vld [vmem:[%s0 + $0xc18] sm:$0xff]
    %v420 = vld [vmem:[%s0 + $0xc20] sm:$0xff]
    %v421 = vld [vmem:[%s0 + $0xc28] sm:$0xff]
    %v422 = vld [vmem:[%s0 + $0xc30] sm:$0xff]
    %v423 = vld [vmem:[%s0 + $0xc38] sm:$0xff]
    %v424 = vld [vmem:[%s0 + $0xc40] sm:$0xff]
    %v425 = vld [vmem:[%s0 + $0xc48] sm:$0xff]
    %v426 = vld [vmem:[%s0 + $0xc50] sm:$0xff]
    %v427 = vld [vmem:[%s0 + $0xc58] sm:$0xff]
    %v428 = vld [vmem:[%s0 + $0xc60] sm:$0xff]
    %v429 = vld [vmem:[%s0 + $0xc68] sm:$0xff]
    %v430 = vld [vmem:[%s0 + $0xc70] sm:$0xff]
    %v431 = vld [vmem:[%s0 + $0xc78] sm:$0xff]
    %v432 = vld [vmem:[%s0 + $0xc80] sm:$0xff]
    %v433 = vld [vmem:[%s0 + $0xc88] sm:$0xff]
    %v434 = vld [vmem:[%s0 + $0xc90] sm:$0xff]
    %v435 = vld [vmem:[%s0 + $0xc98] sm:$0xff]
    %v436 = vld [vmem:[%s0 + $0xca0] sm:$0xff]
    %v437 = vld [vmem:[%s0 + $0xca8] sm:$0xff]
    %v438 = vld [vmem:[%s0 + $0xcb0] sm:$0xff]
    %v439 = vld [vmem:[%s0 + $0xcb8] sm:$0xff]
    %v440 = vld [vmem:[%s0 + $0xcc0] sm:$0xff]
    %v441 = vld [vmem:[%s0 + $0xcc8] sm:$0xff]
    %v442 = vld [vmem:[%s0 + $0xcd0] sm:$0xff]
    %v443 = vld [vmem:[%s0 + $0xcd8] sm:$0xff]
    %v444 = vld [vmem:[%s0 + $0xce0] sm:$0xff]
    %v445 = vld [vmem:[%s0 + $0xce8] sm:$0xff]
    %v446 = vld [vmem:[%s0 + $0xcf0] sm:$0xff]
    %v447 = vld [vmem:[%s0 + $0xcf8] sm:$0xff]
    %v448 = vld [vmem:[%s0 + $0xd00] sm:$0xff]
    %v449 = vld [vmem:[%s0 + $0xd08] sm:$0xff]
    %v450 = vld [vmem:[%s0 + $0xd10] sm:$0xff]
    %v451 = vld [vmem:[%s0 + $0xd18] sm:$0xff]
    %v452 = vld [vmem:[%s0 + $0xd20] sm:$0xff]
    %v453 = vld [vmem:[%s0 + $0xd28] sm:$0xff]
    %v454 = vld [vmem:[%s0 + $0xd30] sm:$0xff]
    %v455 = vld [vmem:[%s0 + $0xd38] sm:$0xff]
    %v456 = vld [vmem:[%s0 + $0xd40] sm:$0xff]
    %v457 = vld [vmem:[%s0 + $0xd48] sm:$0xff]
    %v458 = vld [vmem:[%s0 + $0xd50] sm:$0xff]
    %v459 = vld [vmem:[%s0 + $0xd58] sm:$0xff]
    %v460 = vld [vmem:[%s0 + $0xd60] sm:$0xff]
    %v461 = vld [vmem:[%s0 + $0xd68] sm:$0xff]
    %v462 = vld [vmem:[%s0 + $0xd70] sm:$0xff]
    %v463 = vld [vmem:[%s0 + $0xd78] sm:$0xff]
    %v464 = vld [vmem:[%s0 + $0xd80] sm:$0xff]
    %v465 = vld [vmem:[%s0 + $0xd88] sm:$0xff]
    %v466 = vld [vmem:[%s0 + $0xd90] sm:$0xff]
    %v467 = vld [vmem:[%s0 + $0xd98] sm:$0xff]
    %v468 = vld [vmem:[%s0 + $0xda0] sm:$0xff]
    %v469 = vld [vmem:[%s0 + $0xda8] sm:$0xff]
    %v470 = vld [vmem:[%s0 + $0xdb0] sm:$0xff]
    %v471 = vld [vmem:[%s0 + $0xdb8] sm:$0xff]
    %v472 = vld [vmem:[%s0 + $0xdc0] sm:$0xff]
    %v473 = vld [vmem:[%s0 + $0xdc8] sm:$0xff]
    %v474 = vld [vmem:[%s0 + $0xdd0] sm:$0xff]
    %v475 = vld [vmem:[%s0 + $0xdd8] sm:$0xff]
    %v476 = vld [vmem:[%s0 + $0xde0] sm:$0xff]
    %v477 = vld [vmem:[%s0 + $0xde8] sm:$0xff]
    %v478 = vld [vmem:[%s0 + $0xdf0] sm:$0xff]
    %v479 = vld [vmem:[%s0 + $0xdf8] sm:$0xff]
    %v480 = vld [vmem:[%s0 + $0xe00] sm:$0xff]
    %v481 = vld [vmem:[%s0 + $0xe08] sm:$0xff]
    %v482 = vld [vmem:[%s0 + $0xe10] sm:$0xff]
    %v483 = vld [vmem:[%s0 + $0xe18] sm:$0xff]
    %v484 = vld [vmem:[%s0 + $0xe20] sm:$0xff]
    %v485 = vld [vmem:[%s0 + $0xe28] sm:$0xff]
    %v486 = vld [vmem:[%s0 + $0xe30] sm:$0xff]
    %v487 = vld [vmem:[%s0 + $0xe38] sm:$0xff]
    %v488 = vld [vmem:[%s0 + $0xe40] sm:$0xff]
    %v489 = vld [vmem:[%s0 + $0xe48] sm:$0xff]
    %v490 = vld [vmem:[%s0 + $0xe50] sm:$0xff]
    %v491 = vld [vmem:[%s0 + $0xe58] sm:$0xff]
    %v492 = vld [vmem:[%s0 + $0xe60] sm:$0xff]
    %v493 = vld [vmem:[%s0 + $0xe68] sm:$0xff]
    %v494 = vld [vmem:[%s0 + $0xe70] sm:$0xff]
    %v495 = vld [vmem:[%s0 + $0xe78] sm:$0xff]
    %v496 = vld [vmem:[%s0 + $0xe80] sm:$0xff]
    %v497 = vld [vmem:[%s0 + $0xe88] sm:$0xff]
    %v498 = vld [vmem:[%s0 + $0xe90] sm:$0xff]
    %v499 = vld [vmem:[%s0 + $0xe98] sm:$0xff]
    %v500 = vld [vmem:[%s0 + $0xea0] sm:$0xff]
    %v501 = vld [vmem:[%s0 + $0xea8] sm:$0xff]
    %v502 = vld [vmem:[%s0 + $0xeb0] sm:$0xff]
    %v503 = vld [vmem:[%s0 + $0xeb8] sm:$0xff]
    %v504 = vld [vmem:[%s0 + $0xec0] sm:$0xff]
    %v505 = vld [vmem:[%s0 + $0xec8] sm:$0xff]
    %v506 = vld [vmem:[%s0 + $0xed0] sm:$0xff]
    %v507 = vld [vmem:[%s0 + $0xed8] sm:$0xff]
    %v508 = vld [vmem:[%s0 + $0xee0] sm:$0xff]
    %v509 = vld [vmem:[%s0 + $0xee8] sm:$0xff]
    %v510 = vld [vmem:[%s0 + $0xef0] sm:$0xff]
    %v511 = vld [vmem:[%s0 + $0xef8] sm:$0xff]
    %v512 = vld [vmem:[%s0 + $0xf00] sm:$0xff]
    %v513 = vld [vmem:[%s0 + $0xf08] sm:$0xff]
    %v514 = vld [vmem:[%s0 + $0xf10] sm:$0xff]
    %v515 = vld [vmem:[%s0 + $0xf18] sm:$0xff]
    %v516 = vld [vmem:[%s0 + $0xf20] sm:$0xff]
    %v517 = vld [vmem:[%s0 + $0xf28] sm:$0xff]
    %v518 = vld [vmem:[%s0 + $0xf30] sm:$0xff]
    %v519 = vld [vmem:[%s0 + $0xf38] sm:$0xff]
    %v520 = vld [vmem:[%s0 + $0xf40] sm:$0xff]
    %v521 = vld [vmem:[%s0 + $0xf48] sm:$0xff]
    %v522 = vld [vmem:[%s0 + $0xf50] sm:$0xff]
    %v523 = vld [vmem:[%s0 + $0xf58] sm:$0xff]
    %v524 = vld [vmem:[%s0 + $0xf60] sm:$0xff]
    %v525 = vld [vmem:[%s0 + $0xf68] sm:$0xff]
    %v526 = vld [vmem:[%s0 + $0xf70] sm:$0xff]
    %v527 = vld [vmem:[%s0 + $0xf78] sm:$0xff]
    %v528 = vld [vmem:[%s0 + $0xf80] sm:$0xff]
    %v529 = vld [vmem:[%s0 + $0xf88] sm:$0xff]
    %v530 = vld [vmem:[%s0 + $0xf90] sm:$0xff]
    %v531 = vld [vmem:[%s0 + $0xf98] sm:$0xff]
    %v532 = vld [vmem:[%s0 + $0xfa0] sm:$0xff]
    %v533 = vld [vmem:[%s0 + $0xfa8] sm:$0xff]
    %v534 = vld [vmem:[%s0 + $0xfb0] sm:$0xff]
    %v535 = vld [vmem:[%s0 + $0xfb8] sm:$0xff]
    %v536 = vld [vmem:[%s0 + $0xfc0] sm:$0xff]
    %v537 = vld [vmem:[%s0 + $0xfc8] sm:$0xff]
    %v538 = vld [vmem:[%s0 + $0xfd0] sm:$0xff]
    %v539 = vld [vmem:[%s0 + $0xfd8] sm:$0xff]
    %v540 = vld [vmem:[%s0 + $0xfe0] sm:$0xff]
    %v541 = vld [vmem:[%s0 + $0xfe8] sm:$0xff]
    %v542 = vld [vmem:[%s0 + $0xff0] sm:$0xff]
    %v543 = vld [vmem:[%s0 + $0xff8] sm:$0xff]
    %v544 = vld [vmem:[%s0 + $0x1000] sm:$0xff]
    %v545 = vld [vmem:[%s0 + $0x1008] sm:$0xff]
    %v546 = vld [vmem:[%s0 + $0x1010] sm:$0xff]
    %v547 = vld [vmem:[%s0 + $0x1018] sm:$0xff]
    %v548 = vld [vmem:[%s0 + $0x1020] sm:$0xff]
    %v549 = vld [vmem:[%s0 + $0x1028] sm:$0xff]
    %v550 = vld [vmem:[%s0 + $0x1030] sm:$0xff]
    %v551 = vld [vmem:[%s0 + $0x1038] sm:$0xff]
    %v552 = vld [vmem:[%s0 + $0x1040] sm:$0xff]
    %v553 = vld [vmem:[%s0 + $0x1048] sm:$0xff]
    %v554 = vld [vmem:[%s0 + $0x1050] sm:$0xff]
    %v555 = vld [vmem:[%s0 + $0x1058] sm:$0xff]
    %v556 = vld [vmem:[%s0 + $0x1060] sm:$0xff]
    %v557 = vld [vmem:[%s0 + $0x1068] sm:$0xff]
    %v558 = vld [vmem:[%s0 + $0x1070] sm:$0xff]
    %v559 = vld [vmem:[%s0 + $0x1078] sm:$0xff]
    %v560 = vld [vmem:[%s0 + $0x1080] sm:$0xff]
    %v561 = vld [vmem:[%s0 + $0x1088] sm:$0xff]
    %v562 = vld [vmem:[%s0 + $0x1090] sm:$0xff]
    %v563 = vld [vmem:[%s0 + $0x1098] sm:$0xff]
    %v564 = vld [vmem:[%s0 + $0x10a0] sm:$0xff]
    %v565 = vld [vmem:[%s0 + $0x10a8] sm:$0xff]
    %v566 = vld [vmem:[%s0 + $0x10b0] sm:$0xff]
    %v567 = vld [vmem:[%s0 + $0x10b8] sm:$0xff]
    %v568 = vld [vmem:[%s0 + $0x10c0] sm:$0xff]
    %v569 = vld [vmem:[%s0 + $0x10c8] sm:$0xff]
    %v570 = vld [vmem:[%s0 + $0x10d0] sm:$0xff]
    %v571 = vld [vmem:[%s0 + $0x10d8] sm:$0xff]
    %v572 = vld [vmem:[%s0 + $0x10e0] sm:$0xff]
    %v573 = vld [vmem:[%s0 + $0x10e8] sm:$0xff]
    %v574 = vld [vmem:[%s0 + $0x10f0] sm:$0xff]
    %v575 = vld [vmem:[%s0 + $0x10f8] sm:$0xff]
    %v576 = vld [vmem:[%s0 + $0x1100] sm:$0xff]
    %v577 = vld [vmem:[%s0 + $0x1108] sm:$0xff]
    %v578 = vld [vmem:[%s0 + $0x1110] sm:$0xff]
    %v579 = vld [vmem:[%s0 + $0x1118] sm:$0xff]
    %v580 = vld [vmem:[%s0 + $0x1120] sm:$0xff]
    %v581 = vld [vmem:[%s0 + $0x1128] sm:$0xff]
    %v582 = vld [vmem:[%s0 + $0x1130] sm:$0xff]
    %v583 = vld [vmem:[%s0 + $0x1138] sm:$0xff]
    %v584 = vld [vmem:[%s0 + $0x1140] sm:$0xff]
    %v585 = vld [vmem:[%s0 + $0x1148] sm:$0xff]
    %v586 = vld [vmem:[%s0 + $0x1150] sm:$0xff]
    %v587 = vld [vmem:[%s0 + $0x1158] sm:$0xff]
    %v588 = vld [vmem:[%s0 + $0x1160] sm:$0xff]
    %v589 = vld [vmem:[%s0 + $0x1168] sm:$0xff]
    %v590 = vld [vmem:[%s0 + $0x1170] sm:$0xff]
    %v591 = vld [vmem:[%s0 + $0x1178] sm:$0xff]
    %v592 = vld [vmem:[%s0 + $0x1180] sm:$0xff]
    %v593 = vld [vmem:[%s0 + $0x1188] sm:$0xff]
    %v594 = vld [vmem:[%s0 + $0x1190] sm:$0xff]
    %v595 = vld [vmem:[%s0 + $0x1198] sm:$0xff]
    %v596 = vld [vmem:[%s0 + $0x11a0] sm:$0xff]
    %v597 = vld [vmem:[%s0 + $0x11a8] sm:$0xff]
    %v598 = vld [vmem:[%s0 + $0x11b0] sm:$0xff]
    %v599 = vld [vmem:[%s0 + $0x11b8] sm:$0xff]
    %v600 = vld [vmem:[%s0 + $0x11c0] sm:$0xff]
    %v601 = vld [vmem:[%s0 + $0x11c8] sm:$0xff]
    %v602 = vld [vmem:[%s0 + $0x11d0] sm:$0xff]
    %v603 = vld [vmem:[%s0 + $0x11d8] sm:$0xff]
    %v604 = vld [vmem:[%s0 + $0x11e0] sm:$0xff]
    %v605 = vld [vmem:[%s0 + $0x11e8] sm:$0xff]
    %v606 = vld [vmem:[%s0 + $0x11f0] sm:$0xff]
    %v607 = vld [vmem:[%s0 + $0x11f8] sm:$0xff]
    %v608 = vld [vmem:[%s0 + $0x1200] sm:$0xff]
    %v609 = vld [vmem:[%s0 + $0x1208] sm:$0xff]
    %v610 = vld [vmem:[%s0 + $0x1210] sm:$0xff]
    %v611 = vld [vmem:[%s0 + $0x1218] sm:$0xff]
    %v612 = vld [vmem:[%s0 + $0x1220] sm:$0xff]
    %v613 = vld [vmem:[%s0 + $0x1228] sm:$0xff]
    %v614 = vld [vmem:[%s0 + $0x1230] sm:$0xff]
    %v615 = vld [vmem:[%s0 + $0x1238] sm:$0xff]
    %v616 = vld [vmem:[%s0 + $0x1240] sm:$0xff]
    %v617 = vld [vmem:[%s0 + $0x1248] sm:$0xff]
    %v618 = vld [vmem:[%s0 + $0x1250] sm:$0xff]
    %v619 = vld [vmem:[%s0 + $0x1258] sm:$0xff]
    %v620 = vld [vmem:[%s0 + $0x1260] sm:$0xff]
    %v621 = vld [vmem:[%s0 + $0x1268] sm:$0xff]
    %v622 = vld [vmem:[%s0 + $0x1270] sm:$0xff]
    %v623 = vld [vmem:[%s0 + $0x1278] sm:$0xff]
    %v624 = vld [vmem:[%s0 + $0x1280] sm:$0xff]
    %v625 = vld [vmem:[%s0 + $0x1288] sm:$0xff]
    %v626 = vld [vmem:[%s0 + $0x1290] sm:$0xff]
    %v627 = vld [vmem:[%s0 + $0x1298] sm:$0xff]
    %v628 = vld [vmem:[%s0 + $0x12a0] sm:$0xff]
    %v629 = vld [vmem:[%s0 + $0x12a8] sm:$0xff]
    %v630 = vld [vmem:[%s0 + $0x12b0] sm:$0xff]
    %v631 = vld [vmem:[%s0 + $0x12b8] sm:$0xff]
    %v632 = vld [vmem:[%s0 + $0x12c0] sm:$0xff]
    %v633 = vld [vmem:[%s0 + $0x12c8] sm:$0xff]
    %v634 = vld [vmem:[%s0 + $0x12d0] sm:$0xff]
    %v635 = vld [vmem:[%s0 + $0x12d8] sm:$0xff]
    %v636 = vld [vmem:[%s0 + $0x12e0] sm:$0xff]
    %v637 = vld [vmem:[%s0 + $0x12e8] sm:$0xff]
    %v638 = vld [vmem:[%s0 + $0x12f0] sm:$0xff]
    %v639 = vld [vmem:[%s0 + $0x12f8] sm:$0xff]
    %v640 = vld [vmem:[%s0 + $0x1300] sm:$0xff]
    %v641 = vld [vmem:[%s0 + $0x1308] sm:$0xff]
    %v642 = vld [vmem:[%s0 + $0x1310] sm:$0xff]
    %v643 = vld [vmem:[%s0 + $0x1318] sm:$0xff]
    %v644 = vld [vmem:[%s0 + $0x1320] sm:$0xff]
    %v645 = vld [vmem:[%s0 + $0x1328] sm:$0xff]
    %v646 = vld [vmem:[%s0 + $0x1330] sm:$0xff]
    %v647 = vld [vmem:[%s0 + $0x1338] sm:$0xff]
    %v648 = vld [vmem:[%s0 + $0x1340] sm:$0xff]
    %v649 = vld [vmem:[%s0 + $0x1348] sm:$0xff]
    %v650 = vld [vmem:[%s0 + $0x1350] sm:$0xff]
    %v651 = vld [vmem:[%s0 + $0x1358] sm:$0xff]
    %v652 = vld [vmem:[%s0 + $0x1360] sm:$0xff]
    %v653 = vld [vmem:[%s0 + $0x1368] sm:$0xff]
    %v654 = vld [vmem:[%s0 + $0x1370] sm:$0xff]
    %v655 = vld [vmem:[%s0 + $0x1378] sm:$0xff]
    %v656 = vld [vmem:[%s0 + $0x1380] sm:$0xff]
    %v657 = vld [vmem:[%s0 + $0x1388] sm:$0xff]
    %v658 = vld [vmem:[%s0 + $0x1390] sm:$0xff]
    %v659 = vld [vmem:[%s0 + $0x1398] sm:$0xff]
    %v660 = vld [vmem:[%s0 + $0x13a0] sm:$0xff]
    %v661 = vld [vmem:[%s0 + $0x13a8] sm:$0xff]
    %v662 = vld [vmem:[%s0 + $0x13b0] sm:$0xff]
    %v663 = vld [vmem:[%s0 + $0x13b8] sm:$0xff]
    %v664 = vld [vmem:[%s0 + $0x13c0] sm:$0xff]
    %v665 = vld [vmem:[%s0 + $0x13c8] sm:$0xff]
    %v666 = vld [vmem:[%s0 + $0x13d0] sm:$0xff]
    %v667 = vld [vmem:[%s0 + $0x13d8] sm:$0xff]
    %v668 = vld [vmem:[%s0 + $0x13e0] sm:$0xff]
    %v669 = vld [vmem:[%s0 + $0x13e8] sm:$0xff]
    %v670 = vld [vmem:[%s0 + $0x13f0] sm:$0xff]
    %v671 = vld [vmem:[%s0 + $0x13f8] sm:$0xff]
    %v672 = vld [vmem:[%s0 + $0x1400] sm:$0xff]
    %v673 = vld [vmem:[%s0 + $0x1408] sm:$0xff]
    %v674 = vld [vmem:[%s0 + $0x1410] sm:$0xff]
    %v675 = vld [vmem:[%s0 + $0x1418] sm:$0xff]
    %v676 = vld [vmem:[%s0 + $0x1420] sm:$0xff]
    %v677 = vld [vmem:[%s0 + $0x1428] sm:$0xff]
    %v678 = vld [vmem:[%s0 + $0x1430] sm:$0xff]
    %v679 = vld [vmem:[%s0 + $0x1438] sm:$0xff]
    %v680 = vld [vmem:[%s0 + $0x1440] sm:$0xff]
    %v681 = vld [vmem:[%s0 + $0x1448] sm:$0xff]
    %v682 = vld [vmem:[%s0 + $0x1450] sm:$0xff]
    %v683 = vld [vmem:[%s0 + $0x1458] sm:$0xff]
    %v684 = vld [vmem:[%s0 + $0x1460] sm:$0xff]
    %v685 = vld [vmem:[%s0 + $0x1468] sm:$0xff]
    %v686 = vld [vmem:[%s0 + $0x1470] sm:$0xff]
    %v687 = vld [vmem:[%s0 + $0x1478] sm:$0xff]
    %v688 = vld [vmem:[%s0 + $0x1480] sm:$0xff]
    %v689 = vld [vmem:[%s0 + $0x1488] sm:$0xff]
    %v690 = vld [vmem:[%s0 + $0x1490] sm:$0xff]
    %v691 = vld [vmem:[%s0 + $0x1498] sm:$0xff]
    %v692 = vld [vmem:[%s0 + $0x14a0] sm:$0xff]
    %v693 = vld [vmem:[%s0 + $0x14a8] sm:$0xff]
    %v694 = vld [vmem:[%s0 + $0x14b0] sm:$0xff]
    %v695 = vld [vmem:[%s0 + $0x14b8] sm:$0xff]
    %v696 = vld [vmem:[%s0 + $0x14c0] sm:$0xff]
    %v697 = vld [vmem:[%s0 + $0x14c8] sm:$0xff]
    %v698 = vld [vmem:[%s0 + $0x14d0] sm:$0xff]
    %v699 = vld [vmem:[%s0 + $0x14d8] sm:$0xff]
    %v700 = vld [vmem:[%s0 + $0x14e0] sm:$0xff]
    %v701 = vld [vmem:[%s0 + $0x14e8] sm:$0xff]
    %v702 = vld [vmem:[%s0 + $0x14f0] sm:$0xff]
    %v703 = vld [vmem:[%s0 + $0x14f8] sm:$0xff]
    %v704 = vld [vmem:[%s0 + $0x1500] sm:$0xff]
    %v705 = vld [vmem:[%s0 + $0x1508] sm:$0xff]
    %v706 = vld [vmem:[%s0 + $0x1510] sm:$0xff]
    %v707 = vld [vmem:[%s0 + $0x1518] sm:$0xff]
    %v708 = vld [vmem:[%s0 + $0x1520] sm:$0xff]
    %v709 = vld [vmem:[%s0 + $0x1528] sm:$0xff]
    %v710 = vld [vmem:[%s0 + $0x1530] sm:$0xff]
    %v711 = vld [vmem:[%s0 + $0x1538] sm:$0xff]
    %v712 = vld [vmem:[%s0 + $0x1540] sm:$0xff]
    %v713 = vld [vmem:[%s0 + $0x1548] sm:$0xff]
    %v714 = vld [vmem:[%s0 + $0x1550] sm:$0xff]
    %v715 = vld [vmem:[%s0 + $0x1558] sm:$0xff]
    %v716 = vld [vmem:[%s0 + $0x1560] sm:$0xff]
    %v717 = vld [vmem:[%s0 + $0x1568] sm:$0xff]
    %v718 = vld [vmem:[%s0 + $0x1570] sm:$0xff]
    %v719 = vld [vmem:[%s0 + $0x1578] sm:$0xff]
    %v720 = vld [vmem:[%s0 + $0x1580] sm:$0xff]
    %v721 = vld [vmem:[%s0 + $0x1588] sm:$0xff]
    %v722 = vld [vmem:[%s0 + $0x1590] sm:$0xff]
    %v723 = vld [vmem:[%s0 + $0x1598] sm:$0xff]
    %v724 = vld [vmem:[%s0 + $0x15a0] sm:$0xff]
    %v725 = vld [vmem:[%s0 + $0x15a8] sm:$0xff]
    %v726 = vld [vmem:[%s0 + $0x15b0] sm:$0xff]
    %v727 = vld [vmem:[%s0 + $0x15b8] sm:$0xff]
    %v728 = vld [vmem:[%s0 + $0x15c0] sm:$0xff]
    %v729 = vld [vmem:[%s0 + $0x15c8] sm:$0xff]
    %v730 = vld [vmem:[%s0 + $0x15d0] sm:$0xff]
    %v731 = vld [vmem:[%s0 + $0x15d8] sm:$0xff]
    %v732 = vld [vmem:[%s0 + $0x15e0] sm:$0xff]
    %v733 = vld [vmem:[%s0 + $0x15e8] sm:$0xff]
    %v734 = vld [vmem:[%s0 + $0x15f0] sm:$0xff]
    %v735 = vld [vmem:[%s0 + $0x15f8] sm:$0xff]
    %v736 = vld [vmem:[%s0 + $0x1600] sm:$0xff]
    %v737 = vld [vmem:[%s0 + $0x1608] sm:$0xff]
    %v738 = vld [vmem:[%s0 + $0x1610] sm:$0xff]
    %v739 = vld [vmem:[%s0 + $0x1618] sm:$0xff]
    %v740 = vld [vmem:[%s0 + $0x1620] sm:$0xff]
    %v741 = vld [vmem:[%s0 + $0x1628] sm:$0xff]
    %v742 = vld [vmem:[%s0 + $0x1630] sm:$0xff]
    %v743 = vld [vmem:[%s0 + $0x1638] sm:$0xff]
    %v744 = vld [vmem:[%s0 + $0x1640] sm:$0xff]
    %v745 = vld [vmem:[%s0 + $0x1648] sm:$0xff]
    %v746 = vld [vmem:[%s0 + $0x1650] sm:$0xff]
    %v747 = vld [vmem:[%s0 + $0x1658] sm:$0xff]
    %v748 = vld [vmem:[%s0 + $0x1660] sm:$0xff]
    %v749 = vld [vmem:[%s0 + $0x1668] sm:$0xff]
    %v750 = vld [vmem:[%s0 + $0x1670] sm:$0xff]
    %v751 = vld [vmem:[%s0 + $0x1678] sm:$0xff]
    %v752 = vld [vmem:[%s0 + $0x1680] sm:$0xff]
    %v753 = vld [vmem:[%s0 + $0x1688] sm:$0xff]
    %v754 = vld [vmem:[%s0 + $0x1690] sm:$0xff]
    %v755 = vld [vmem:[%s0 + $0x1698] sm:$0xff]
    %v756 = vld [vmem:[%s0 + $0x16a0] sm:$0xff]
    %v757 = vld [vmem:[%s0 + $0x16a8] sm:$0xff]
    %v758 = vld [vmem:[%s0 + $0x16b0] sm:$0xff]
    %v759 = vld [vmem:[%s0 + $0x16b8] sm:$0xff]
    %v760 = vld [vmem:[%s0 + $0x16c0] sm:$0xff]
    %v761 = vld [vmem:[%s0 + $0x16c8] sm:$0xff]
    %v762 = vld [vmem:[%s0 + $0x16d0] sm:$0xff]
    %v763 = vld [vmem:[%s0 + $0x16d8] sm:$0xff]
    %v764 = vld [vmem:[%s0 + $0x16e0] sm:$0xff]
    %v765 = vld [vmem:[%s0 + $0x16e8] sm:$0xff]
    %v766 = vld [vmem:[%s0 + $0x16f0] sm:$0xff]
    %v767 = vld [vmem:[%s0 + $0x16f8] sm:$0xff]
    %v768 = vld [vmem:[%s0 + $0x1700] sm:$0xff]
    %v769 = vld [vmem:[%s0 + $0x1708] sm:$0xff]
    %v770 = vld [vmem:[%s0 + $0x1710] sm:$0xff]
    %v771 = vld [vmem:[%s0 + $0x1718] sm:$0xff]
    %v772 = vld [vmem:[%s0 + $0x1720] sm:$0xff]
    %v773 = vld [vmem:[%s0 + $0x1728] sm:$0xff]
    %v774 = vld [vmem:[%s0 + $0x1730] sm:$0xff]
    %v775 = vld [vmem:[%s0 + $0x1738] sm:$0xff]
    %v776 = vld [vmem:[%s0 + $0x1740] sm:$0xff]
    %v777 = vld [vmem:[%s0 + $0x1748] sm:$0xff]
    %v778 = vld [vmem:[%s0 + $0x1750] sm:$0xff]
    %v779 = vld [vmem:[%s0 + $0x1758] sm:$0xff]
    %v780 = vld [vmem:[%s0 + $0x1760] sm:$0xff]
    %v781 = vld [vmem:[%s0 + $0x1768] sm:$0xff]
    %v782 = vld [vmem:[%s0 + $0x1770] sm:$0xff]
    %v783 = vld [vmem:[%s0 + $0x1778] sm:$0xff]
    %v784 = vld [vmem:[%s0 + $0x1780] sm:$0xff]
    %v785 = vld [vmem:[%s0 + $0x1788] sm:$0xff]
    %v786 = vld [vmem:[%s0 + $0x1790] sm:$0xff]
    %v787 = vld [vmem:[%s0 + $0x1798] sm:$0xff]
    %v788 = vld [vmem:[%s0 + $0x17a0] sm:$0xff]
    %v789 = vld [vmem:[%s0 + $0x17a8] sm:$0xff]
    %v790 = vld [vmem:[%s0 + $0x17b0] sm:$0xff]
    %v791 = vld [vmem:[%s0 + $0x17b8] sm:$0xff]
    %v792 = vld [vmem:[%s0 + $0x17c0] sm:$0xff]
    %v793 = vld [vmem:[%s0 + $0x17c8] sm:$0xff]
    %v794 = vld [vmem:[%s0 + $0x17d0] sm:$0xff]
    %v795 = vld [vmem:[%s0 + $0x17d8] sm:$0xff]
    %v796 = vld [vmem:[%s0 + $0x17e0] sm:$0xff]
    %v797 = vld [vmem:[%s0 + $0x17e8] sm:$0xff]
    %v798 = vld [vmem:[%s0 + $0x17f0] sm:$0xff]
    %v799 = vld [vmem:[%s0 + $0x17f8] sm:$0xff]
    %v800 = vld [vmem:[%s1] sm:$0xff]
    %v801 = vld [vmem:[%s1 + $0x8] sm:$0xff]
    %v802 = vld [vmem:[%s1 + $0x10] sm:$0xff]
    %v803 = vld [vmem:[%s1 + $0x18] sm:$0xff]
    %v804 = vld [vmem:[%s1 + $0x20] sm:$0xff]
    %v805 = vld [vmem:[%s1 + $0x28] sm:$0xff]
    %v806 = vld [vmem:[%s1 + $0x30] sm:$0xff]
    %v807 = vld [vmem:[%s1 + $0x38] sm:$0xff]
    %v808 = vld [vmem:[%s1 + $0x40] sm:$0xff]
    %v809 = vld [vmem:[%s1 + $0x48] sm:$0xff]
    %v810 = vld [vmem:[%s1 + $0x50] sm:$0xff]
    %v811 = vld [vmem:[%s1 + $0x58] sm:$0xff]
    %v812 = vld [vmem:[%s1 + $0x60] sm:$0xff]
    %v813 = vld [vmem:[%s1 + $0x68] sm:$0xff]
    %v814 = vld [vmem:[%s1 + $0x70] sm:$0xff]
    %v815 = vld [vmem:[%s1 + $0x78] sm:$0xff]
    %v816 = vld [vmem:[%s1 + $0x80] sm:$0xff]
    %v817 = vld [vmem:[%s1 + $0x88] sm:$0xff]
    %v818 = vld [vmem:[%s1 + $0x90] sm:$0xff]
    %v819 = vld [vmem:[%s1 + $0x98] sm:$0xff]
    %v820 = vld [vmem:[%s1 + $0xa0] sm:$0xff]
    %v821 = vld [vmem:[%s1 + $0xa8] sm:$0xff]
    %v822 = vld [vmem:[%s1 + $0xb0] sm:$0xff]
    %v823 = vld [vmem:[%s1 + $0xb8] sm:$0xff]
    %v824 = vld [vmem:[%s1 + $0xc0] sm:$0xff]
    %v825 = vld [vmem:[%s1 + $0xc8] sm:$0xff]
    %v826 = vld [vmem:[%s1 + $0xd0] sm:$0xff]
    %v827 = vld [vmem:[%s1 + $0xd8] sm:$0xff]
    %v828 = vld [vmem:[%s1 + $0xe0] sm:$0xff]
    %v829 = vld [vmem:[%s1 + $0xe8] sm:$0xff]
    %v830 = vld [vmem:[%s1 + $0xf0] sm:$0xff]
    %v831 = vld [vmem:[%s1 + $0xf8] sm:$0xff]
    %v832 = vld [vmem:[%s1 + $0x100] sm:$0xff]
    %v833 = vld [vmem:[%s1 + $0x108] sm:$0xff]
    %v834 = vld [vmem:[%s1 + $0x110] sm:$0xff]
    %v835 = vld [vmem:[%s1 + $0x118] sm:$0xff]
    %v836 = vld [vmem:[%s1 + $0x120] sm:$0xff]
    %v837 = vld [vmem:[%s1 + $0x128] sm:$0xff]
    %v838 = vld [vmem:[%s1 + $0x130] sm:$0xff]
    %v839 = vld [vmem:[%s1 + $0x138] sm:$0xff]
    %v840 = vld [vmem:[%s1 + $0x140] sm:$0xff]
    %v841 = vld [vmem:[%s1 + $0x148] sm:$0xff]
    %v842 = vld [vmem:[%s1 + $0x150] sm:$0xff]
    %v843 = vld [vmem:[%s1 + $0x158] sm:$0xff]
    %v844 = vld [vmem:[%s1 + $0x160] sm:$0xff]
    %v845 = vld [vmem:[%s1 + $0x168] sm:$0xff]
    %v846 = vld [vmem:[%s1 + $0x170] sm:$0xff]
    %v847 = vld [vmem:[%s1 + $0x178] sm:$0xff]
    %849 = vset.pattern.permute.xlu0 0
    %850 = vperm.xlu0 %849, %v800
    %v851 = vpop.permute.xlu0 %850
    %854 = vset.pattern.permute.xlu0 0
    %855 = vperm.xlu0 %854, %v801
    %v856 = vpop.permute.xlu0 %855
    %859 = vset.pattern.permute.xlu0 0
    %860 = vperm.xlu0 %859, %v802
    %v861 = vpop.permute.xlu0 %860
    %864 = vset.pattern.permute.xlu0 0
    %865 = vperm.xlu0 %864, %v803
    %v866 = vpop.permute.xlu0 %865
    %869 = vset.pattern.permute.xlu0 0
    %870 = vperm.xlu0 %869, %v804
    %v871 = vpop.permute.xlu0 %870
    %874 = vset.pattern.permute.xlu0 0
    %875 = vperm.xlu0 %874, %v805
    %v876 = vpop.permute.xlu0 %875
    %879 = vset.pattern.permute.xlu0 0
    %880 = vperm.xlu0 %879, %v806
    %v881 = vpop.permute.xlu0 %880
    %884 = vset.pattern.permute.xlu0 0
    %885 = vperm.xlu0 %884, %v807
    %v886 = vpop.permute.xlu0 %885
    %889 = vset.pattern.permute.xlu0 0
    %890 = vperm.xlu0 %889, %v808
    %v891 = vpop.permute.xlu0 %890
    %894 = vset.pattern.permute.xlu0 0
    %895 = vperm.xlu0 %894, %v809
    %v896 = vpop.permute.xlu0 %895
    %899 = vset.pattern.permute.xlu0 0
    %900 = vperm.xlu0 %899, %v810
    %v901 = vpop.permute.xlu0 %900
    %904 = vset.pattern.permute.xlu0 0
    %905 = vperm.xlu0 %904, %v811
    %v906 = vpop.permute.xlu0 %905
    %909 = vset.pattern.permute.xlu0 0
    %910 = vperm.xlu0 %909, %v812
    %v911 = vpop.permute.xlu0 %910
    %914 = vset.pattern.permute.xlu0 0
    %915 = vperm.xlu0 %914, %v813
    %v916 = vpop.permute.xlu0 %915
    %919 = vset.pattern.permute.xlu0 0
    %920 = vperm.xlu0 %919, %v814
    %v921 = vpop.permute.xlu0 %920
    %924 = vset.pattern.permute.xlu0 0
    %925 = vperm.xlu0 %924, %v815
    %v926 = vpop.permute.xlu0 %925
    %929 = vset.pattern.permute.xlu0 0
    %930 = vperm.xlu0 %929, %v816
    %v931 = vpop.permute.xlu0 %930
    %934 = vset.pattern.permute.xlu0 0
    %935 = vperm.xlu0 %934, %v817
    %v936 = vpop.permute.xlu0 %935
    %939 = vset.pattern.permute.xlu0 0
    %940 = vperm.xlu0 %939, %v818
    %v941 = vpop.permute.xlu0 %940
    %944 = vset.pattern.permute.xlu0 0
    %945 = vperm.xlu0 %944, %v819
    %v946 = vpop.permute.xlu0 %945
    %949 = vset.pattern.permute.xlu0 0
    %950 = vperm.xlu0 %949, %v820
    %v951 = vpop.permute.xlu0 %950
    %954 = vset.pattern.permute.xlu0 0
    %955 = vperm.xlu0 %954, %v821
    %v956 = vpop.permute.xlu0 %955
    %959 = vset.pattern.permute.xlu0 0
    %960 = vperm.xlu0 %959, %v822
    %v961 = vpop.permute.xlu0 %960
    %964 = vset.pattern.permute.xlu0 0
    %965 = vperm.xlu0 %964, %v823
    %v966 = vpop.permute.xlu0 %965
    %969 = vset.pattern.permute.xlu0 0
    %970 = vperm.xlu0 %969, %v824
    %v971 = vpop.permute.xlu0 %970
    %974 = vset.pattern.permute.xlu0 0
    %975 = vperm.xlu0 %974, %v825
    %v976 = vpop.permute.xlu0 %975
    %979 = vset.pattern.permute.xlu0 0
    %980 = vperm.xlu0 %979, %v826
    %v981 = vpop.permute.xlu0 %980
    %984 = vset.pattern.permute.xlu0 0
    %985 = vperm.xlu0 %984, %v827
    %v986 = vpop.permute.xlu0 %985
    %989 = vset.pattern.permute.xlu0 0
    %990 = vperm.xlu0 %989, %v828
    %v991 = vpop.permute.xlu0 %990
    %994 = vset.pattern.permute.xlu0 0
    %995 = vperm.xlu0 %994, %v829
    %v996 = vpop.permute.xlu0 %995
    %999 = vset.pattern.permute.xlu0 0
    %1000 = vperm.xlu0 %999, %v830
    %v1001 = vpop.permute.xlu0 %1000
    %1004 = vset.pattern.permute.xlu0 0
    %1005 = vperm.xlu0 %1004, %v831
    %v1006 = vpop.permute.xlu0 %1005
    %1009 = vset.pattern.permute.xlu0 0
    %1010 = vperm.xlu0 %1009, %v832
    %v1011 = vpop.permute.xlu0 %1010
    %1014 = vset.pattern.permute.xlu0 0
    %1015 = vperm.xlu0 %1014, %v833
    %v1016 = vpop.permute.xlu0 %1015
    %1019 = vset.pattern.permute.xlu0 0
    %1020 = vperm.xlu0 %1019, %v834
    %v1021 = vpop.permute.xlu0 %1020
    %1024 = vset.pattern.permute.xlu0 0
    %1025 = vperm.xlu0 %1024, %v835
    %v1026 = vpop.permute.xlu0 %1025
    %1029 = vset.pattern.permute.xlu0 0
    %1030 = vperm.xlu0 %1029, %v836
    %v1031 = vpop.permute.xlu0 %1030
    %1034 = vset.pattern.permute.xlu0 0
    %1035 = vperm.xlu0 %1034, %v837
    %v1036 = vpop.permute.xlu0 %1035
    %1039 = vset.pattern.permute.xlu0 0
    %1040 = vperm.xlu0 %1039, %v838
    %v1041 = vpop.permute.xlu0 %1040
    %1044 = vset.pattern.permute.xlu0 0
    %1045 = vperm.xlu0 %1044, %v839
    %v1046 = vpop.permute.xlu0 %1045
    %1049 = vset.pattern.permute.xlu0 0
    %1050 = vperm.xlu0 %1049, %v840
    %v1051 = vpop.permute.xlu0 %1050
    %1054 = vset.pattern.permute.xlu0 0
    %1055 = vperm.xlu0 %1054, %v841
    %v1056 = vpop.permute.xlu0 %1055
    %1059 = vset.pattern.permute.xlu0 0
    %1060 = vperm.xlu0 %1059, %v842
    %v1061 = vpop.permute.xlu0 %1060
    %1064 = vset.pattern.permute.xlu0 0
    %1065 = vperm.xlu0 %1064, %v843
    %v1066 = vpop.permute.xlu0 %1065
    %1069 = vset.pattern.permute.xlu0 0
    %1070 = vperm.xlu0 %1069, %v844
    %v1071 = vpop.permute.xlu0 %1070
    %1074 = vset.pattern.permute.xlu0 0
    %1075 = vperm.xlu0 %1074, %v845
    %v1076 = vpop.permute.xlu0 %1075
    %1079 = vset.pattern.permute.xlu0 0
    %1080 = vperm.xlu0 %1079, %v846
    %v1081 = vpop.permute.xlu0 %1080
    %1084 = vset.pattern.permute.xlu0 0
    %1085 = vperm.xlu0 %1084, %v847
    %v1086 = vpop.permute.xlu0 %1085
    %v1088 = vmul.f32 %v32, %v851
    %v1089 = vmul.f32 %v33, %v851
    %v1090 = vmul.f32 %v34, %v856
    %v1091 = vmul.f32 %v35, %v856
    %v1092 = vmul.f32 %v36, %v861
    %v1093 = vmul.f32 %v37, %v861
    %v1094 = vmul.f32 %v38, %v866
    %v1095 = vmul.f32 %v39, %v866
    %v1096 = vmul.f32 %v40, %v871
    %v1097 = vmul.f32 %v41, %v871
    %v1098 = vmul.f32 %v42, %v876
    %v1099 = vmul.f32 %v43, %v876
    %v1100 = vmul.f32 %v44, %v881
    %v1101 = vmul.f32 %v45, %v881
    %v1102 = vmul.f32 %v46, %v886
    %v1103 = vmul.f32 %v47, %v886
    %v1104 = vmul.f32 %v48, %v891
    %v1105 = vmul.f32 %v49, %v891
    %v1106 = vmul.f32 %v50, %v896
    %v1107 = vmul.f32 %v51, %v896
    %v1108 = vmul.f32 %v52, %v901
    %v1109 = vmul.f32 %v53, %v901
    %v1110 = vmul.f32 %v54, %v906
    %v1111 = vmul.f32 %v55, %v906
    %v1112 = vmul.f32 %v56, %v911
    %v1113 = vmul.f32 %v57, %v911
    %v1114 = vmul.f32 %v58, %v916
    %v1115 = vmul.f32 %v59, %v916
    %v1116 = vmul.f32 %v60, %v921
    %v1117 = vmul.f32 %v61, %v921
    %v1118 = vmul.f32 %v62, %v926
    %v1119 = vmul.f32 %v63, %v926
    %v1120 = vmul.f32 %v64, %v931
    %v1121 = vmul.f32 %v65, %v931
    %v1122 = vmul.f32 %v66, %v936
    %v1123 = vmul.f32 %v67, %v936
    %v1124 = vmul.f32 %v68, %v941
    %v1125 = vmul.f32 %v69, %v941
    %v1126 = vmul.f32 %v70, %v946
    %v1127 = vmul.f32 %v71, %v946
    %v1128 = vmul.f32 %v72, %v951
    %v1129 = vmul.f32 %v73, %v951
    %v1130 = vmul.f32 %v74, %v956
    %v1131 = vmul.f32 %v75, %v956
    %v1132 = vmul.f32 %v76, %v961
    %v1133 = vmul.f32 %v77, %v961
    %v1134 = vmul.f32 %v78, %v966
    %v1135 = vmul.f32 %v79, %v966
    %v1136 = vmul.f32 %v80, %v971
    %v1137 = vmul.f32 %v81, %v971
    %v1138 = vmul.f32 %v82, %v976
    %v1139 = vmul.f32 %v83, %v976
    %v1140 = vmul.f32 %v84, %v981
    %v1141 = vmul.f32 %v85, %v981
    %v1142 = vmul.f32 %v86, %v986
    %v1143 = vmul.f32 %v87, %v986
    %v1144 = vmul.f32 %v88, %v991
    %v1145 = vmul.f32 %v89, %v991
    %v1146 = vmul.f32 %v90, %v996
    %v1147 = vmul.f32 %v91, %v996
    %v1148 = vmul.f32 %v92, %v1001
    %v1149 = vmul.f32 %v93, %v1001
    %v1150 = vmul.f32 %v94, %v1006
    %v1151 = vmul.f32 %v95, %v1006
    %v1152 = vmul.f32 %v96, %v1011
    %v1153 = vmul.f32 %v97, %v1011
    %v1154 = vmul.f32 %v98, %v1016
    %v1155 = vmul.f32 %v99, %v1016
    %v1156 = vmul.f32 %v100, %v1021
    %v1157 = vmul.f32 %v101, %v1021
    %v1158 = vmul.f32 %v102, %v1026
    %v1159 = vmul.f32 %v103, %v1026
    %v1160 = vmul.f32 %v104, %v1031
    %v1161 = vmul.f32 %v105, %v1031
    %v1162 = vmul.f32 %v106, %v1036
    %v1163 = vmul.f32 %v107, %v1036
    %v1164 = vmul.f32 %v108, %v1041
    %v1165 = vmul.f32 %v109, %v1041
    %v1166 = vmul.f32 %v110, %v1046
    %v1167 = vmul.f32 %v111, %v1046
    %v1168 = vmul.f32 %v112, %v1051
    %v1169 = vmul.f32 %v113, %v1051
    %v1170 = vmul.f32 %v114, %v1056
    %v1171 = vmul.f32 %v115, %v1056
    %v1172 = vmul.f32 %v116, %v1061
    %v1173 = vmul.f32 %v117, %v1061
    %v1174 = vmul.f32 %v118, %v1066
    %v1175 = vmul.f32 %v119, %v1066
    %v1176 = vmul.f32 %v120, %v1071
    %v1177 = vmul.f32 %v121, %v1071
    %v1178 = vmul.f32 %v122, %v1076
    %v1179 = vmul.f32 %v123, %v1076
    %v1180 = vmul.f32 %v124, %v1081
    %v1181 = vmul.f32 %v125, %v1081
    %v1182 = vmul.f32 %v126, %v1086
    %v1183 = vmul.f32 %v127, %v1086
    %v1184 = vmul.f32 %v128, %v851
    %v1185 = vmul.f32 %v129, %v851
    %v1186 = vmul.f32 %v130, %v856
    %v1187 = vmul.f32 %v131, %v856
    %v1188 = vmul.f32 %v132, %v861
    %v1189 = vmul.f32 %v133, %v861
    %v1190 = vmul.f32 %v134, %v866
    %v1191 = vmul.f32 %v135, %v866
    %v1192 = vmul.f32 %v136, %v871
    %v1193 = vmul.f32 %v137, %v871
    %v1194 = vmul.f32 %v138, %v876
    %v1195 = vmul.f32 %v139, %v876
    %v1196 = vmul.f32 %v140, %v881
    %v1197 = vmul.f32 %v141, %v881
    %v1198 = vmul.f32 %v142, %v886
    %v1199 = vmul.f32 %v143, %v886
    %v1200 = vmul.f32 %v144, %v891
    %v1201 = vmul.f32 %v145, %v891
    %v1202 = vmul.f32 %v146, %v896
    %v1203 = vmul.f32 %v147, %v896
    %v1204 = vmul.f32 %v148, %v901
    %v1205 = vmul.f32 %v149, %v901
    %v1206 = vmul.f32 %v150, %v906
    %v1207 = vmul.f32 %v151, %v906
    %v1208 = vmul.f32 %v152, %v911
    %v1209 = vmul.f32 %v153, %v911
    %v1210 = vmul.f32 %v154, %v916
    %v1211 = vmul.f32 %v155, %v916
    %v1212 = vmul.f32 %v156, %v921
    %v1213 = vmul.f32 %v157, %v921
    %v1214 = vmul.f32 %v158, %v926
    %v1215 = vmul.f32 %v159, %v926
    %v1216 = vmul.f32 %v160, %v931
    %v1217 = vmul.f32 %v161, %v931
    %v1218 = vmul.f32 %v162, %v936
    %v1219 = vmul.f32 %v163, %v936
    %v1220 = vmul.f32 %v164, %v941
    %v1221 = vmul.f32 %v165, %v941
    %v1222 = vmul.f32 %v166, %v946
    %v1223 = vmul.f32 %v167, %v946
    %v1224 = vmul.f32 %v168, %v951
    %v1225 = vmul.f32 %v169, %v951
    %v1226 = vmul.f32 %v170, %v956
    %v1227 = vmul.f32 %v171, %v956
    %v1228 = vmul.f32 %v172, %v961
    %v1229 = vmul.f32 %v173, %v961
    %v1230 = vmul.f32 %v174, %v966
    %v1231 = vmul.f32 %v175, %v966
    %v1232 = vmul.f32 %v176, %v971
    %v1233 = vmul.f32 %v177, %v971
    %v1234 = vmul.f32 %v178, %v976
    %v1235 = vmul.f32 %v179, %v976
    %v1236 = vmul.f32 %v180, %v981
    %v1237 = vmul.f32 %v181, %v981
    %v1238 = vmul.f32 %v182, %v986
    %v1239 = vmul.f32 %v183, %v986
    %v1240 = vmul.f32 %v184, %v991
    %v1241 = vmul.f32 %v185, %v991
    %v1242 = vmul.f32 %v186, %v996
    %v1243 = vmul.f32 %v187, %v996
    %v1244 = vmul.f32 %v188, %v1001
    %v1245 = vmul.f32 %v189, %v1001
    %v1246 = vmul.f32 %v190, %v1006
    %v1247 = vmul.f32 %v191, %v1006
    %v1248 = vmul.f32 %v192, %v1011
    %v1249 = vmul.f32 %v193, %v1011
    %v1250 = vmul.f32 %v194, %v1016
    %v1251 = vmul.f32 %v195, %v1016
    %v1252 = vmul.f32 %v196, %v1021
    %v1253 = vmul.f32 %v197, %v1021
    %v1254 = vmul.f32 %v198, %v1026
    %v1255 = vmul.f32 %v199, %v1026
    %v1256 = vmul.f32 %v200, %v1031
    %v1257 = vmul.f32 %v201, %v1031
    %v1258 = vmul.f32 %v202, %v1036
    %v1259 = vmul.f32 %v203, %v1036
    %v1260 = vmul.f32 %v204, %v1041
    %v1261 = vmul.f32 %v205, %v1041
    %v1262 = vmul.f32 %v206, %v1046
    %v1263 = vmul.f32 %v207, %v1046
    %v1264 = vmul.f32 %v208, %v1051
    %v1265 = vmul.f32 %v209, %v1051
    %v1266 = vmul.f32 %v210, %v1056
    %v1267 = vmul.f32 %v211, %v1056
    %v1268 = vmul.f32 %v212, %v1061
    %v1269 = vmul.f32 %v213, %v1061
    %v1270 = vmul.f32 %v214, %v1066
    %v1271 = vmul.f32 %v215, %v1066
    %v1272 = vmul.f32 %v216, %v1071
    %v1273 = vmul.f32 %v217, %v1071
    %v1274 = vmul.f32 %v218, %v1076
    %v1275 = vmul.f32 %v219, %v1076
    %v1276 = vmul.f32 %v220, %v1081
    %v1277 = vmul.f32 %v221, %v1081
    %v1278 = vmul.f32 %v222, %v1086
    %v1279 = vmul.f32 %v223, %v1086
    %v1280 = vmul.f32 %v224, %v851
    %v1281 = vmul.f32 %v225, %v851
    %v1282 = vmul.f32 %v226, %v856
    %v1283 = vmul.f32 %v227, %v856
    %v1284 = vmul.f32 %v228, %v861
    %v1285 = vmul.f32 %v229, %v861
    %v1286 = vmul.f32 %v230, %v866
    %v1287 = vmul.f32 %v231, %v866
    %v1288 = vmul.f32 %v232, %v871
    %v1289 = vmul.f32 %v233, %v871
    %v1290 = vmul.f32 %v234, %v876
    %v1291 = vmul.f32 %v235, %v876
    %v1292 = vmul.f32 %v236, %v881
    %v1293 = vmul.f32 %v237, %v881
    %v1294 = vmul.f32 %v238, %v886
    %v1295 = vmul.f32 %v239, %v886
    %v1296 = vmul.f32 %v240, %v891
    %v1297 = vmul.f32 %v241, %v891
    %v1298 = vmul.f32 %v242, %v896
    %v1299 = vmul.f32 %v243, %v896
    %v1300 = vmul.f32 %v244, %v901
    %v1301 = vmul.f32 %v245, %v901
    %v1302 = vmul.f32 %v246, %v906
    %v1303 = vmul.f32 %v247, %v906
    %v1304 = vmul.f32 %v248, %v911
    %v1305 = vmul.f32 %v249, %v911
    %v1306 = vmul.f32 %v250, %v916
    %v1307 = vmul.f32 %v251, %v916
    %v1308 = vmul.f32 %v252, %v921
    %v1309 = vmul.f32 %v253, %v921
    %v1310 = vmul.f32 %v254, %v926
    %v1311 = vmul.f32 %v255, %v926
    %v1312 = vmul.f32 %v256, %v931
    %v1313 = vmul.f32 %v257, %v931
    %v1314 = vmul.f32 %v258, %v936
    %v1315 = vmul.f32 %v259, %v936
    %v1316 = vmul.f32 %v260, %v941
    %v1317 = vmul.f32 %v261, %v941
    %v1318 = vmul.f32 %v262, %v946
    %v1319 = vmul.f32 %v263, %v946
    %v1320 = vmul.f32 %v264, %v951
    %v1321 = vmul.f32 %v265, %v951
    %v1322 = vmul.f32 %v266, %v956
    %v1323 = vmul.f32 %v267, %v956
    %v1324 = vmul.f32 %v268, %v961
    %v1325 = vmul.f32 %v269, %v961
    %v1326 = vmul.f32 %v270, %v966
    %v1327 = vmul.f32 %v271, %v966
    %v1328 = vmul.f32 %v272, %v971
    %v1329 = vmul.f32 %v273, %v971
    %v1330 = vmul.f32 %v274, %v976
    %v1331 = vmul.f32 %v275, %v976
    %v1332 = vmul.f32 %v276, %v981
    %v1333 = vmul.f32 %v277, %v981
    %v1334 = vmul.f32 %v278, %v986
    %v1335 = vmul.f32 %v279, %v986
    %v1336 = vmul.f32 %v280, %v991
    %v1337 = vmul.f32 %v281, %v991
    %v1338 = vmul.f32 %v282, %v996
    %v1339 = vmul.f32 %v283, %v996
    %v1340 = vmul.f32 %v284, %v1001
    %v1341 = vmul.f32 %v285, %v1001
    %v1342 = vmul.f32 %v286, %v1006
    %v1343 = vmul.f32 %v287, %v1006
    %v1344 = vmul.f32 %v288, %v1011
    %v1345 = vmul.f32 %v289, %v1011
    %v1346 = vmul.f32 %v290, %v1016
    %v1347 = vmul.f32 %v291, %v1016
    %v1348 = vmul.f32 %v292, %v1021
    %v1349 = vmul.f32 %v293, %v1021
    %v1350 = vmul.f32 %v294, %v1026
    %v1351 = vmul.f32 %v295, %v1026
    %v1352 = vmul.f32 %v296, %v1031
    %v1353 = vmul.f32 %v297, %v1031
    %v1354 = vmul.f32 %v298, %v1036
    %v1355 = vmul.f32 %v299, %v1036
    %v1356 = vmul.f32 %v300, %v1041
    %v1357 = vmul.f32 %v301, %v1041
    %v1358 = vmul.f32 %v302, %v1046
    %v1359 = vmul.f32 %v303, %v1046
    %v1360 = vmul.f32 %v304, %v1051
    %v1361 = vmul.f32 %v305, %v1051
    %v1362 = vmul.f32 %v306, %v1056
    %v1363 = vmul.f32 %v307, %v1056
    %v1364 = vmul.f32 %v308, %v1061
    %v1365 = vmul.f32 %v309, %v1061
    %v1366 = vmul.f32 %v310, %v1066
    %v1367 = vmul.f32 %v311, %v1066
    %v1368 = vmul.f32 %v312, %v1071
    %v1369 = vmul.f32 %v313, %v1071
    %v1370 = vmul.f32 %v314, %v1076
    %v1371 = vmul.f32 %v315, %v1076
    %v1372 = vmul.f32 %v316, %v1081
    %v1373 = vmul.f32 %v317, %v1081
    %v1374 = vmul.f32 %v318, %v1086
    %v1375 = vmul.f32 %v319, %v1086
    %v1376 = vmul.f32 %v320, %v851
    %v1377 = vmul.f32 %v321, %v851
    %v1378 = vmul.f32 %v322, %v856
    %v1379 = vmul.f32 %v323, %v856
    %v1380 = vmul.f32 %v324, %v861
    %v1381 = vmul.f32 %v325, %v861
    %v1382 = vmul.f32 %v326, %v866
    %v1383 = vmul.f32 %v327, %v866
    %v1384 = vmul.f32 %v328, %v871
    %v1385 = vmul.f32 %v329, %v871
    %v1386 = vmul.f32 %v330, %v876
    %v1387 = vmul.f32 %v331, %v876
    %v1388 = vmul.f32 %v332, %v881
    %v1389 = vmul.f32 %v333, %v881
    %v1390 = vmul.f32 %v334, %v886
    %v1391 = vmul.f32 %v335, %v886
    %v1392 = vmul.f32 %v336, %v891
    %v1393 = vmul.f32 %v337, %v891
    %v1394 = vmul.f32 %v338, %v896
    %v1395 = vmul.f32 %v339, %v896
    %v1396 = vmul.f32 %v340, %v901
    %v1397 = vmul.f32 %v341, %v901
    %v1398 = vmul.f32 %v342, %v906
    %v1399 = vmul.f32 %v343, %v906
    %v1400 = vmul.f32 %v344, %v911
    %v1401 = vmul.f32 %v345, %v911
    %v1402 = vmul.f32 %v346, %v916
    %v1403 = vmul.f32 %v347, %v916
    %v1404 = vmul.f32 %v348, %v921
    %v1405 = vmul.f32 %v349, %v921
    %v1406 = vmul.f32 %v350, %v926
    %v1407 = vmul.f32 %v351, %v926
    %v1408 = vmul.f32 %v352, %v931
    %v1409 = vmul.f32 %v353, %v931
    %v1410 = vmul.f32 %v354, %v936
    %v1411 = vmul.f32 %v355, %v936
    %v1412 = vmul.f32 %v356, %v941
    %v1413 = vmul.f32 %v357, %v941
    %v1414 = vmul.f32 %v358, %v946
    %v1415 = vmul.f32 %v359, %v946
    %v1416 = vmul.f32 %v360, %v951
    %v1417 = vmul.f32 %v361, %v951
    %v1418 = vmul.f32 %v362, %v956
    %v1419 = vmul.f32 %v363, %v956
    %v1420 = vmul.f32 %v364, %v961
    %v1421 = vmul.f32 %v365, %v961
    %v1422 = vmul.f32 %v366, %v966
    %v1423 = vmul.f32 %v367, %v966
    %v1424 = vmul.f32 %v368, %v971
    %v1425 = vmul.f32 %v369, %v971
    %v1426 = vmul.f32 %v370, %v976
    %v1427 = vmul.f32 %v371, %v976
    %v1428 = vmul.f32 %v372, %v981
    %v1429 = vmul.f32 %v373, %v981
    %v1430 = vmul.f32 %v374, %v986
    %v1431 = vmul.f32 %v375, %v986
    %v1432 = vmul.f32 %v376, %v991
    %v1433 = vmul.f32 %v377, %v991
    %v1434 = vmul.f32 %v378, %v996
    %v1435 = vmul.f32 %v379, %v996
    %v1436 = vmul.f32 %v380, %v1001
    %v1437 = vmul.f32 %v381, %v1001
    %v1438 = vmul.f32 %v382, %v1006
    %v1439 = vmul.f32 %v383, %v1006
    %v1440 = vmul.f32 %v384, %v1011
    %v1441 = vmul.f32 %v385, %v1011
    %v1442 = vmul.f32 %v386, %v1016
    %v1443 = vmul.f32 %v387, %v1016
    %v1444 = vmul.f32 %v388, %v1021
    %v1445 = vmul.f32 %v389, %v1021
    %v1446 = vmul.f32 %v390, %v1026
    %v1447 = vmul.f32 %v391, %v1026
    %v1448 = vmul.f32 %v392, %v1031
    %v1449 = vmul.f32 %v393, %v1031
    %v1450 = vmul.f32 %v394, %v1036
    %v1451 = vmul.f32 %v395, %v1036
    %v1452 = vmul.f32 %v396, %v1041
    %v1453 = vmul.f32 %v397, %v1041
    %v1454 = vmul.f32 %v398, %v1046
    %v1455 = vmul.f32 %v399, %v1046
    %v1456 = vmul.f32 %v400, %v1051
    %v1457 = vmul.f32 %v401, %v1051
    %v1458 = vmul.f32 %v402, %v1056
    %v1459 = vmul.f32 %v403, %v1056
    %v1460 = vmul.f32 %v404, %v1061
    %v1461 = vmul.f32 %v405, %v1061
    %v1462 = vmul.f32 %v406, %v1066
    %v1463 = vmul.f32 %v407, %v1066
    %v1464 = vmul.f32 %v408, %v1071
    %v1465 = vmul.f32 %v409, %v1071
    %v1466 = vmul.f32 %v410, %v1076
    %v1467 = vmul.f32 %v411, %v1076
    %v1468 = vmul.f32 %v412, %v1081
    %v1469 = vmul.f32 %v413, %v1081
    %v1470 = vmul.f32 %v414, %v1086
    %v1471 = vmul.f32 %v415, %v1086
    %v1472 = vmul.f32 %v416, %v851
    %v1473 = vmul.f32 %v417, %v851
    %v1474 = vmul.f32 %v418, %v856
    %v1475 = vmul.f32 %v419, %v856
    %v1476 = vmul.f32 %v420, %v861
    %v1477 = vmul.f32 %v421, %v861
    %v1478 = vmul.f32 %v422, %v866
    %v1479 = vmul.f32 %v423, %v866
    %v1480 = vmul.f32 %v424, %v871
    %v1481 = vmul.f32 %v425, %v871
    %v1482 = vmul.f32 %v426, %v876
    %v1483 = vmul.f32 %v427, %v876
    %v1484 = vmul.f32 %v428, %v881
    %v1485 = vmul.f32 %v429, %v881
    %v1486 = vmul.f32 %v430, %v886
    %v1487 = vmul.f32 %v431, %v886
    %v1488 = vmul.f32 %v432, %v891
    %v1489 = vmul.f32 %v433, %v891
    %v1490 = vmul.f32 %v434, %v896
    %v1491 = vmul.f32 %v435, %v896
    %v1492 = vmul.f32 %v436, %v901
    %v1493 = vmul.f32 %v437, %v901
    %v1494 = vmul.f32 %v438, %v906
    %v1495 = vmul.f32 %v439, %v906
    %v1496 = vmul.f32 %v440, %v911
    %v1497 = vmul.f32 %v441, %v911
    %v1498 = vmul.f32 %v442, %v916
    %v1499 = vmul.f32 %v443, %v916
    %v1500 = vmul.f32 %v444, %v921
    %v1501 = vmul.f32 %v445, %v921
    %v1502 = vmul.f32 %v446, %v926
    %v1503 = vmul.f32 %v447, %v926
    %v1504 = vmul.f32 %v448, %v931
    %v1505 = vmul.f32 %v449, %v931
    %v1506 = vmul.f32 %v450, %v936
    %v1507 = vmul.f32 %v451, %v936
    %v1508 = vmul.f32 %v452, %v941
    %v1509 = vmul.f32 %v453, %v941
    %v1510 = vmul.f32 %v454, %v946
    %v1511 = vmul.f32 %v455, %v946
    %v1512 = vmul.f32 %v456, %v951
    %v1513 = vmul.f32 %v457, %v951
    %v1514 = vmul.f32 %v458, %v956
    %v1515 = vmul.f32 %v459, %v956
    %v1516 = vmul.f32 %v460, %v961
    %v1517 = vmul.f32 %v461, %v961
    %v1518 = vmul.f32 %v462, %v966
    %v1519 = vmul.f32 %v463, %v966
    %v1520 = vmul.f32 %v464, %v971
    %v1521 = vmul.f32 %v465, %v971
    %v1522 = vmul.f32 %v466, %v976
    %v1523 = vmul.f32 %v467, %v976
    %v1524 = vmul.f32 %v468, %v981
    %v1525 = vmul.f32 %v469, %v981
    %v1526 = vmul.f32 %v470, %v986
    %v1527 = vmul.f32 %v471, %v986
    %v1528 = vmul.f32 %v472, %v991
    %v1529 = vmul.f32 %v473, %v991
    %v1530 = vmul.f32 %v474, %v996
    %v1531 = vmul.f32 %v475, %v996
    %v1532 = vmul.f32 %v476, %v1001
    %v1533 = vmul.f32 %v477, %v1001
    %v1534 = vmul.f32 %v478, %v1006
    %v1535 = vmul.f32 %v479, %v1006
    %v1536 = vmul.f32 %v480, %v1011
    %v1537 = vmul.f32 %v481, %v1011
    %v1538 = vmul.f32 %v482, %v1016
    %v1539 = vmul.f32 %v483, %v1016
    %v1540 = vmul.f32 %v484, %v1021
    %v1541 = vmul.f32 %v485, %v1021
    %v1542 = vmul.f32 %v486, %v1026
    %v1543 = vmul.f32 %v487, %v1026
    %v1544 = vmul.f32 %v488, %v1031
    %v1545 = vmul.f32 %v489, %v1031
    %v1546 = vmul.f32 %v490, %v1036
    %v1547 = vmul.f32 %v491, %v1036
    %v1548 = vmul.f32 %v492, %v1041
    %v1549 = vmul.f32 %v493, %v1041
    %v1550 = vmul.f32 %v494, %v1046
    %v1551 = vmul.f32 %v495, %v1046
    %v1552 = vmul.f32 %v496, %v1051
    %v1553 = vmul.f32 %v497, %v1051
    %v1554 = vmul.f32 %v498, %v1056
    %v1555 = vmul.f32 %v499, %v1056
    %v1556 = vmul.f32 %v500, %v1061
    %v1557 = vmul.f32 %v501, %v1061
    %v1558 = vmul.f32 %v502, %v1066
    %v1559 = vmul.f32 %v503, %v1066
    %v1560 = vmul.f32 %v504, %v1071
    %v1561 = vmul.f32 %v505, %v1071
    %v1562 = vmul.f32 %v506, %v1076
    %v1563 = vmul.f32 %v507, %v1076
    %v1564 = vmul.f32 %v508, %v1081
    %v1565 = vmul.f32 %v509, %v1081
    %v1566 = vmul.f32 %v510, %v1086
    %v1567 = vmul.f32 %v511, %v1086
    %v1568 = vmul.f32 %v512, %v851
    %v1569 = vmul.f32 %v513, %v851
    %v1570 = vmul.f32 %v514, %v856
    %v1571 = vmul.f32 %v515, %v856
    %v1572 = vmul.f32 %v516, %v861
    %v1573 = vmul.f32 %v517, %v861
    %v1574 = vmul.f32 %v518, %v866
    %v1575 = vmul.f32 %v519, %v866
    %v1576 = vmul.f32 %v520, %v871
    %v1577 = vmul.f32 %v521, %v871
    %v1578 = vmul.f32 %v522, %v876
    %v1579 = vmul.f32 %v523, %v876
    %v1580 = vmul.f32 %v524, %v881
    %v1581 = vmul.f32 %v525, %v881
    %v1582 = vmul.f32 %v526, %v886
    %v1583 = vmul.f32 %v527, %v886
    %v1584 = vmul.f32 %v528, %v891
    %v1585 = vmul.f32 %v529, %v891
    %v1586 = vmul.f32 %v530, %v896
    %v1587 = vmul.f32 %v531, %v896
    %v1588 = vmul.f32 %v532, %v901
    %v1589 = vmul.f32 %v533, %v901
    %v1590 = vmul.f32 %v534, %v906
    %v1591 = vmul.f32 %v535, %v906
    %v1592 = vmul.f32 %v536, %v911
    %v1593 = vmul.f32 %v537, %v911
    %v1594 = vmul.f32 %v538, %v916
    %v1595 = vmul.f32 %v539, %v916
    %v1596 = vmul.f32 %v540, %v921
    %v1597 = vmul.f32 %v541, %v921
    %v1598 = vmul.f32 %v542, %v926
    %v1599 = vmul.f32 %v543, %v926
    %v1600 = vmul.f32 %v544, %v931
    %v1601 = vmul.f32 %v545, %v931
    %v1602 = vmul.f32 %v546, %v936
    %v1603 = vmul.f32 %v547, %v936
    %v1604 = vmul.f32 %v548, %v941
    %v1605 = vmul.f32 %v549, %v941
    %v1606 = vmul.f32 %v550, %v946
    %v1607 = vmul.f32 %v551, %v946
    %v1608 = vmul.f32 %v552, %v951
    %v1609 = vmul.f32 %v553, %v951
    %v1610 = vmul.f32 %v554, %v956
    %v1611 = vmul.f32 %v555, %v956
    %v1612 = vmul.f32 %v556, %v961
    %v1613 = vmul.f32 %v557, %v961
    %v1614 = vmul.f32 %v558, %v966
    %v1615 = vmul.f32 %v559, %v966
    %v1616 = vmul.f32 %v560, %v971
    %v1617 = vmul.f32 %v561, %v971
    %v1618 = vmul.f32 %v562, %v976
    %v1619 = vmul.f32 %v563, %v976
    %v1620 = vmul.f32 %v564, %v981
    %v1621 = vmul.f32 %v565, %v981
    %v1622 = vmul.f32 %v566, %v986
    %v1623 = vmul.f32 %v567, %v986
    %v1624 = vmul.f32 %v568, %v991
    %v1625 = vmul.f32 %v569, %v991
    %v1626 = vmul.f32 %v570, %v996
    %v1627 = vmul.f32 %v571, %v996
    %v1628 = vmul.f32 %v572, %v1001
    %v1629 = vmul.f32 %v573, %v1001
    %v1630 = vmul.f32 %v574, %v1006
    %v1631 = vmul.f32 %v575, %v1006
    %v1632 = vmul.f32 %v576, %v1011
    %v1633 = vmul.f32 %v577, %v1011
    %v1634 = vmul.f32 %v578, %v1016
    %v1635 = vmul.f32 %v579, %v1016
    %v1636 = vmul.f32 %v580, %v1021
    %v1637 = vmul.f32 %v581, %v1021
    %v1638 = vmul.f32 %v582, %v1026
    %v1639 = vmul.f32 %v583, %v1026
    %v1640 = vmul.f32 %v584, %v1031
    %v1641 = vmul.f32 %v585, %v1031
    %v1642 = vmul.f32 %v586, %v1036
    %v1643 = vmul.f32 %v587, %v1036
    %v1644 = vmul.f32 %v588, %v1041
    %v1645 = vmul.f32 %v589, %v1041
    %v1646 = vmul.f32 %v590, %v1046
    %v1647 = vmul.f32 %v591, %v1046
    %v1648 = vmul.f32 %v592, %v1051
    %v1649 = vmul.f32 %v593, %v1051
    %v1650 = vmul.f32 %v594, %v1056
    %v1651 = vmul.f32 %v595, %v1056
    %v1652 = vmul.f32 %v596, %v1061
    %v1653 = vmul.f32 %v597, %v1061
    %v1654 = vmul.f32 %v598, %v1066
    %v1655 = vmul.f32 %v599, %v1066
    %v1656 = vmul.f32 %v600, %v1071
    %v1657 = vmul.f32 %v601, %v1071
    %v1658 = vmul.f32 %v602, %v1076
    %v1659 = vmul.f32 %v603, %v1076
    %v1660 = vmul.f32 %v604, %v1081
    %v1661 = vmul.f32 %v605, %v1081
    %v1662 = vmul.f32 %v606, %v1086
    %v1663 = vmul.f32 %v607, %v1086
    %v1664 = vmul.f32 %v608, %v851
    %v1665 = vmul.f32 %v609, %v851
    %v1666 = vmul.f32 %v610, %v856
    %v1667 = vmul.f32 %v611, %v856
    %v1668 = vmul.f32 %v612, %v861
    %v1669 = vmul.f32 %v613, %v861
    %v1670 = vmul.f32 %v614, %v866
    %v1671 = vmul.f32 %v615, %v866
    %v1672 = vmul.f32 %v616, %v871
    %v1673 = vmul.f32 %v617, %v871
    %v1674 = vmul.f32 %v618, %v876
    %v1675 = vmul.f32 %v619, %v876
    %v1676 = vmul.f32 %v620, %v881
    %v1677 = vmul.f32 %v621, %v881
    %v1678 = vmul.f32 %v622, %v886
    %v1679 = vmul.f32 %v623, %v886
    %v1680 = vmul.f32 %v624, %v891
    %v1681 = vmul.f32 %v625, %v891
    %v1682 = vmul.f32 %v626, %v896
    %v1683 = vmul.f32 %v627, %v896
    %v1684 = vmul.f32 %v628, %v901
    %v1685 = vmul.f32 %v629, %v901
    %v1686 = vmul.f32 %v630, %v906
    %v1687 = vmul.f32 %v631, %v906
    %v1688 = vmul.f32 %v632, %v911
    %v1689 = vmul.f32 %v633, %v911
    %v1690 = vmul.f32 %v634, %v916
    %v1691 = vmul.f32 %v635, %v916
    %v1692 = vmul.f32 %v636, %v921
    %v1693 = vmul.f32 %v637, %v921
    %v1694 = vmul.f32 %v638, %v926
    %v1695 = vmul.f32 %v639, %v926
    %v1696 = vmul.f32 %v640, %v931
    %v1697 = vmul.f32 %v641, %v931
    %v1698 = vmul.f32 %v642, %v936
    %v1699 = vmul.f32 %v643, %v936
    %v1700 = vmul.f32 %v644, %v941
    %v1701 = vmul.f32 %v645, %v941
    %v1702 = vmul.f32 %v646, %v946
    %v1703 = vmul.f32 %v647, %v946
    %v1704 = vmul.f32 %v648, %v951
    %v1705 = vmul.f32 %v649, %v951
    %v1706 = vmul.f32 %v650, %v956
    %v1707 = vmul.f32 %v651, %v956
    %v1708 = vmul.f32 %v652, %v961
    %v1709 = vmul.f32 %v653, %v961
    %v1710 = vmul.f32 %v654, %v966
    %v1711 = vmul.f32 %v655, %v966
    %v1712 = vmul.f32 %v656, %v971
    %v1713 = vmul.f32 %v657, %v971
    %v1714 = vmul.f32 %v658, %v976
    %v1715 = vmul.f32 %v659, %v976
    %v1716 = vmul.f32 %v660, %v981
    %v1717 = vmul.f32 %v661, %v981
    %v1718 = vmul.f32 %v662, %v986
    %v1719 = vmul.f32 %v663, %v986
    %v1720 = vmul.f32 %v664, %v991
    %v1721 = vmul.f32 %v665, %v991
    %v1722 = vmul.f32 %v666, %v996
    %v1723 = vmul.f32 %v667, %v996
    %v1724 = vmul.f32 %v668, %v1001
    %v1725 = vmul.f32 %v669, %v1001
    %v1726 = vmul.f32 %v670, %v1006
    %v1727 = vmul.f32 %v671, %v1006
    %v1728 = vmul.f32 %v672, %v1011
    %v1729 = vmul.f32 %v673, %v1011
    %v1730 = vmul.f32 %v674, %v1016
    %v1731 = vmul.f32 %v675, %v1016
    %v1732 = vmul.f32 %v676, %v1021
    %v1733 = vmul.f32 %v677, %v1021
    %v1734 = vmul.f32 %v678, %v1026
    %v1735 = vmul.f32 %v679, %v1026
    %v1736 = vmul.f32 %v680, %v1031
    %v1737 = vmul.f32 %v681, %v1031
    %v1738 = vmul.f32 %v682, %v1036
    %v1739 = vmul.f32 %v683, %v1036
    %v1740 = vmul.f32 %v684, %v1041
    %v1741 = vmul.f32 %v685, %v1041
    %v1742 = vmul.f32 %v686, %v1046
    %v1743 = vmul.f32 %v687, %v1046
    %v1744 = vmul.f32 %v688, %v1051
    %v1745 = vmul.f32 %v689, %v1051
    %v1746 = vmul.f32 %v690, %v1056
    %v1747 = vmul.f32 %v691, %v1056
    %v1748 = vmul.f32 %v692, %v1061
    %v1749 = vmul.f32 %v693, %v1061
    %v1750 = vmul.f32 %v694, %v1066
    %v1751 = vmul.f32 %v695, %v1066
    %v1752 = vmul.f32 %v696, %v1071
    %v1753 = vmul.f32 %v697, %v1071
    %v1754 = vmul.f32 %v698, %v1076
    %v1755 = vmul.f32 %v699, %v1076
    %v1756 = vmul.f32 %v700, %v1081
    %v1757 = vmul.f32 %v701, %v1081
    %v1758 = vmul.f32 %v702, %v1086
    %v1759 = vmul.f32 %v703, %v1086
    %v1760 = vmul.f32 %v704, %v851
    %v1761 = vmul.f32 %v705, %v851
    %v1762 = vmul.f32 %v706, %v856
    %v1763 = vmul.f32 %v707, %v856
    %v1764 = vmul.f32 %v708, %v861
    %v1765 = vmul.f32 %v709, %v861
    %v1766 = vmul.f32 %v710, %v866
    %v1767 = vmul.f32 %v711, %v866
    %v1768 = vmul.f32 %v712, %v871
    %v1769 = vmul.f32 %v713, %v871
    %v1770 = vmul.f32 %v714, %v876
    %v1771 = vmul.f32 %v715, %v876
    %v1772 = vmul.f32 %v716, %v881
    %v1773 = vmul.f32 %v717, %v881
    %v1774 = vmul.f32 %v718, %v886
    %v1775 = vmul.f32 %v719, %v886
    %v1776 = vmul.f32 %v720, %v891
    %v1777 = vmul.f32 %v721, %v891
    %v1778 = vmul.f32 %v722, %v896
    %v1779 = vmul.f32 %v723, %v896
    %v1780 = vmul.f32 %v724, %v901
    %v1781 = vmul.f32 %v725, %v901
    %v1782 = vmul.f32 %v726, %v906
    %v1783 = vmul.f32 %v727, %v906
    %v1784 = vmul.f32 %v728, %v911
    %v1785 = vmul.f32 %v729, %v911
    %v1786 = vmul.f32 %v730, %v916
    %v1787 = vmul.f32 %v731, %v916
    %v1788 = vmul.f32 %v732, %v921
    %v1789 = vmul.f32 %v733, %v921
    %v1790 = vmul.f32 %v734, %v926
    %v1791 = vmul.f32 %v735, %v926
    %v1792 = vmul.f32 %v736, %v931
    %v1793 = vmul.f32 %v737, %v931
    %v1794 = vmul.f32 %v738, %v936
    %v1795 = vmul.f32 %v739, %v936
    %v1796 = vmul.f32 %v740, %v941
    %v1797 = vmul.f32 %v741, %v941
    %v1798 = vmul.f32 %v742, %v946
    %v1799 = vmul.f32 %v743, %v946
    %v1800 = vmul.f32 %v744, %v951
    %v1801 = vmul.f32 %v745, %v951
    %v1802 = vmul.f32 %v746, %v956
    %v1803 = vmul.f32 %v747, %v956
    %v1804 = vmul.f32 %v748, %v961
    %v1805 = vmul.f32 %v749, %v961
    %v1806 = vmul.f32 %v750, %v966
    %v1807 = vmul.f32 %v751, %v966
    %v1808 = vmul.f32 %v752, %v971
    %v1809 = vmul.f32 %v753, %v971
    %v1810 = vmul.f32 %v754, %v976
    %v1811 = vmul.f32 %v755, %v976
    %v1812 = vmul.f32 %v756, %v981
    %v1813 = vmul.f32 %v757, %v981
    %v1814 = vmul.f32 %v758, %v986
    %v1815 = vmul.f32 %v759, %v986
    %v1816 = vmul.f32 %v760, %v991
    %v1817 = vmul.f32 %v761, %v991
    %v1818 = vmul.f32 %v762, %v996
    %v1819 = vmul.f32 %v763, %v996
    %v1820 = vmul.f32 %v764, %v1001
    %v1821 = vmul.f32 %v765, %v1001
    %v1822 = vmul.f32 %v766, %v1006
    %v1823 = vmul.f32 %v767, %v1006
    %v1824 = vmul.f32 %v768, %v1011
    %v1825 = vmul.f32 %v769, %v1011
    %v1826 = vmul.f32 %v770, %v1016
    %v1827 = vmul.f32 %v771, %v1016
    %v1828 = vmul.f32 %v772, %v1021
    %v1829 = vmul.f32 %v773, %v1021
    %v1830 = vmul.f32 %v774, %v1026
    %v1831 = vmul.f32 %v775, %v1026
    %v1832 = vmul.f32 %v776, %v1031
    %v1833 = vmul.f32 %v777, %v1031
    %v1834 = vmul.f32 %v778, %v1036
    %v1835 = vmul.f32 %v779, %v1036
    %v1836 = vmul.f32 %v780, %v1041
    %v1837 = vmul.f32 %v781, %v1041
    %v1838 = vmul.f32 %v782, %v1046
    %v1839 = vmul.f32 %v783, %v1046
    %v1840 = vmul.f32 %v784, %v1051
    %v1841 = vmul.f32 %v785, %v1051
    %v1842 = vmul.f32 %v786, %v1056
    %v1843 = vmul.f32 %v787, %v1056
    %v1844 = vmul.f32 %v788, %v1061
    %v1845 = vmul.f32 %v789, %v1061
    %v1846 = vmul.f32 %v790, %v1066
    %v1847 = vmul.f32 %v791, %v1066
    %v1848 = vmul.f32 %v792, %v1071
    %v1849 = vmul.f32 %v793, %v1071
    %v1850 = vmul.f32 %v794, %v1076
    %v1851 = vmul.f32 %v795, %v1076
    %v1852 = vmul.f32 %v796, %v1081
    %v1853 = vmul.f32 %v797, %v1081
    %v1854 = vmul.f32 %v798, %v1086
    %v1855 = vmul.f32 %v799, %v1086
    %v1856 = vadd.f32 %v1088, %v1090
    %v1857 = vadd.f32 %v1856, %v1092
    %v1858 = vadd.f32 %v1857, %v1094
    %v1859 = vadd.f32 %v1858, %v1096
    %v1860 = vadd.f32 %v1859, %v1098
    %v1861 = vadd.f32 %v1860, %v1100
    %v1862 = vadd.f32 %v1861, %v1102
    %v1863 = vadd.f32 %v1862, %v1104
    %v1864 = vadd.f32 %v1863, %v1106
    %v1865 = vadd.f32 %v1864, %v1108
    %v1866 = vadd.f32 %v1865, %v1110
    %v1867 = vadd.f32 %v1866, %v1112
    %v1868 = vadd.f32 %v1867, %v1114
    %v1869 = vadd.f32 %v1868, %v1116
    %v1870 = vadd.f32 %v1869, %v1118
    %v1871 = vadd.f32 %v1870, %v1120
    %v1872 = vadd.f32 %v1871, %v1122
    %v1873 = vadd.f32 %v1872, %v1124
    %v1874 = vadd.f32 %v1873, %v1126
    %v1875 = vadd.f32 %v1874, %v1128
    %v1876 = vadd.f32 %v1875, %v1130
    %v1877 = vadd.f32 %v1876, %v1132
    %v1878 = vadd.f32 %v1877, %v1134
    %v1879 = vadd.f32 %v1878, %v1136
    %v1880 = vadd.f32 %v1879, %v1138
    %v1881 = vadd.f32 %v1880, %v1140
    %v1882 = vadd.f32 %v1881, %v1142
    %v1883 = vadd.f32 %v1882, %v1144
    %v1884 = vadd.f32 %v1883, %v1146
    %v1885 = vadd.f32 %v1884, %v1148
    %v1886 = vadd.f32 %v1885, %v1150
    %v1887 = vadd.f32 %v1886, %v1152
    %v1888 = vadd.f32 %v1887, %v1154
    %v1889 = vadd.f32 %v1888, %v1156
    %v1890 = vadd.f32 %v1889, %v1158
    %v1891 = vadd.f32 %v1890, %v1160
    %v1892 = vadd.f32 %v1891, %v1162
    %v1893 = vadd.f32 %v1892, %v1164
    %v1894 = vadd.f32 %v1893, %v1166
    %v1895 = vadd.f32 %v1894, %v1168
    %v1896 = vadd.f32 %v1895, %v1170
    %v1897 = vadd.f32 %v1896, %v1172
    %v1898 = vadd.f32 %v1897, %v1174
    %v1899 = vadd.f32 %v1898, %v1176
    %v1900 = vadd.f32 %v1899, %v1178
    %v1901 = vadd.f32 %v1900, %v1180
    %v1902 = vadd.f32 %v1901, %v1182
    %v1903 = vrot.slane %v1902, 4
    %v1904 = vadd.f32 %v1902, %v1903
    %v1905 = vrot.slane %v1904, 2
    %v1906 = vadd.f32 %v1904, %v1905
    %v1907 = vrot.slane %v1906, 1
    %v1908 = vadd.f32 %v1906, %v1907
    %vm1909 = vcmask 556032
    %v1910 = vsel %vm1909, %v1089, 0.0
    %v1911 = vsel %vm1909, %v1091, 0.0
    %v1912 = vadd.f32 %v1910, %v1911
    %v1913 = vsel %vm1909, %v1093, 0.0
    %v1914 = vadd.f32 %v1912, %v1913
    %v1915 = vsel %vm1909, %v1095, 0.0
    %v1916 = vadd.f32 %v1914, %v1915
    %v1917 = vsel %vm1909, %v1097, 0.0
    %v1918 = vadd.f32 %v1916, %v1917
    %v1919 = vsel %vm1909, %v1099, 0.0
    %v1920 = vadd.f32 %v1918, %v1919
    %v1921 = vsel %vm1909, %v1101, 0.0
    %v1922 = vadd.f32 %v1920, %v1921
    %v1923 = vsel %vm1909, %v1103, 0.0
    %v1924 = vadd.f32 %v1922, %v1923
    %v1925 = vsel %vm1909, %v1105, 0.0
    %v1926 = vadd.f32 %v1924, %v1925
    %v1927 = vsel %vm1909, %v1107, 0.0
    %v1928 = vadd.f32 %v1926, %v1927
    %v1929 = vsel %vm1909, %v1109, 0.0
    %v1930 = vadd.f32 %v1928, %v1929
    %v1931 = vsel %vm1909, %v1111, 0.0
    %v1932 = vadd.f32 %v1930, %v1931
    %v1933 = vsel %vm1909, %v1113, 0.0
    %v1934 = vadd.f32 %v1932, %v1933
    %v1935 = vsel %vm1909, %v1115, 0.0
    %v1936 = vadd.f32 %v1934, %v1935
    %v1937 = vsel %vm1909, %v1117, 0.0
    %v1938 = vadd.f32 %v1936, %v1937
    %v1939 = vsel %vm1909, %v1119, 0.0
    %v1940 = vadd.f32 %v1938, %v1939
    %v1941 = vsel %vm1909, %v1121, 0.0
    %v1942 = vadd.f32 %v1940, %v1941
    %v1943 = vsel %vm1909, %v1123, 0.0
    %v1944 = vadd.f32 %v1942, %v1943
    %v1945 = vsel %vm1909, %v1125, 0.0
    %v1946 = vadd.f32 %v1944, %v1945
    %v1947 = vsel %vm1909, %v1127, 0.0
    %v1948 = vadd.f32 %v1946, %v1947
    %v1949 = vsel %vm1909, %v1129, 0.0
    %v1950 = vadd.f32 %v1948, %v1949
    %v1951 = vsel %vm1909, %v1131, 0.0
    %v1952 = vadd.f32 %v1950, %v1951
    %v1953 = vsel %vm1909, %v1133, 0.0
    %v1954 = vadd.f32 %v1952, %v1953
    %v1955 = vsel %vm1909, %v1135, 0.0
    %v1956 = vadd.f32 %v1954, %v1955
    %v1957 = vsel %vm1909, %v1137, 0.0
    %v1958 = vadd.f32 %v1956, %v1957
    %v1959 = vsel %vm1909, %v1139, 0.0
    %v1960 = vadd.f32 %v1958, %v1959
    %v1961 = vsel %vm1909, %v1141, 0.0
    %v1962 = vadd.f32 %v1960, %v1961
    %v1963 = vsel %vm1909, %v1143, 0.0
    %v1964 = vadd.f32 %v1962, %v1963
    %v1965 = vsel %vm1909, %v1145, 0.0
    %v1966 = vadd.f32 %v1964, %v1965
    %v1967 = vsel %vm1909, %v1147, 0.0
    %v1968 = vadd.f32 %v1966, %v1967
    %v1969 = vsel %vm1909, %v1149, 0.0
    %v1970 = vadd.f32 %v1968, %v1969
    %v1971 = vsel %vm1909, %v1151, 0.0
    %v1972 = vadd.f32 %v1970, %v1971
    %v1973 = vsel %vm1909, %v1153, 0.0
    %v1974 = vadd.f32 %v1972, %v1973
    %v1975 = vsel %vm1909, %v1155, 0.0
    %v1976 = vadd.f32 %v1974, %v1975
    %v1977 = vsel %vm1909, %v1157, 0.0
    %v1978 = vadd.f32 %v1976, %v1977
    %v1979 = vsel %vm1909, %v1159, 0.0
    %v1980 = vadd.f32 %v1978, %v1979
    %v1981 = vsel %vm1909, %v1161, 0.0
    %v1982 = vadd.f32 %v1980, %v1981
    %v1983 = vsel %vm1909, %v1163, 0.0
    %v1984 = vadd.f32 %v1982, %v1983
    %v1985 = vsel %vm1909, %v1165, 0.0
    %v1986 = vadd.f32 %v1984, %v1985
    %v1987 = vsel %vm1909, %v1167, 0.0
    %v1988 = vadd.f32 %v1986, %v1987
    %v1989 = vsel %vm1909, %v1169, 0.0
    %v1990 = vadd.f32 %v1988, %v1989
    %v1991 = vsel %vm1909, %v1171, 0.0
    %v1992 = vadd.f32 %v1990, %v1991
    %v1993 = vsel %vm1909, %v1173, 0.0
    %v1994 = vadd.f32 %v1992, %v1993
    %v1995 = vsel %vm1909, %v1175, 0.0
    %v1996 = vadd.f32 %v1994, %v1995
    %v1997 = vsel %vm1909, %v1177, 0.0
    %v1998 = vadd.f32 %v1996, %v1997
    %v1999 = vsel %vm1909, %v1179, 0.0
    %v2000 = vadd.f32 %v1998, %v1999
    %v2001 = vsel %vm1909, %v1181, 0.0
    %v2002 = vadd.f32 %v2000, %v2001
    %v2003 = vsel %vm1909, %v1183, 0.0
    %v2004 = vadd.f32 %v2002, %v2003
    %v2005 = vrot.slane %v2004, 4
    %v2006 = vadd.f32 %v2004, %v2005
    %v2007 = vrot.slane %v2006, 2
    %v2008 = vadd.f32 %v2006, %v2007
    %v2009 = vrot.slane %v2008, 1
    %v2010 = vadd.f32 %v2008, %v2009
    %v2011 = vadd.f32 %v1184, %v1186
    %v2012 = vadd.f32 %v2011, %v1188
    %v2013 = vadd.f32 %v2012, %v1190
    %v2014 = vadd.f32 %v2013, %v1192
    %v2015 = vadd.f32 %v2014, %v1194
    %v2016 = vadd.f32 %v2015, %v1196
    %v2017 = vadd.f32 %v2016, %v1198
    %v2018 = vadd.f32 %v2017, %v1200
    %v2019 = vadd.f32 %v2018, %v1202
    %v2020 = vadd.f32 %v2019, %v1204
    %v2021 = vadd.f32 %v2020, %v1206
    %v2022 = vadd.f32 %v2021, %v1208
    %v2023 = vadd.f32 %v2022, %v1210
    %v2024 = vadd.f32 %v2023, %v1212
    %v2025 = vadd.f32 %v2024, %v1214
    %v2026 = vadd.f32 %v2025, %v1216
    %v2027 = vadd.f32 %v2026, %v1218
    %v2028 = vadd.f32 %v2027, %v1220
    %v2029 = vadd.f32 %v2028, %v1222
    %v2030 = vadd.f32 %v2029, %v1224
    %v2031 = vadd.f32 %v2030, %v1226
    %v2032 = vadd.f32 %v2031, %v1228
    %v2033 = vadd.f32 %v2032, %v1230
    %v2034 = vadd.f32 %v2033, %v1232
    %v2035 = vadd.f32 %v2034, %v1234
    %v2036 = vadd.f32 %v2035, %v1236
    %v2037 = vadd.f32 %v2036, %v1238
    %v2038 = vadd.f32 %v2037, %v1240
    %v2039 = vadd.f32 %v2038, %v1242
    %v2040 = vadd.f32 %v2039, %v1244
    %v2041 = vadd.f32 %v2040, %v1246
    %v2042 = vadd.f32 %v2041, %v1248
    %v2043 = vadd.f32 %v2042, %v1250
    %v2044 = vadd.f32 %v2043, %v1252
    %v2045 = vadd.f32 %v2044, %v1254
    %v2046 = vadd.f32 %v2045, %v1256
    %v2047 = vadd.f32 %v2046, %v1258
    %v2048 = vadd.f32 %v2047, %v1260
    %v2049 = vadd.f32 %v2048, %v1262
    %v2050 = vadd.f32 %v2049, %v1264
    %v2051 = vadd.f32 %v2050, %v1266
    %v2052 = vadd.f32 %v2051, %v1268
    %v2053 = vadd.f32 %v2052, %v1270
    %v2054 = vadd.f32 %v2053, %v1272
    %v2055 = vadd.f32 %v2054, %v1274
    %v2056 = vadd.f32 %v2055, %v1276
    %v2057 = vadd.f32 %v2056, %v1278
    %v2058 = vrot.slane %v2057, 4
    %v2059 = vadd.f32 %v2057, %v2058
    %v2060 = vrot.slane %v2059, 2
    %v2061 = vadd.f32 %v2059, %v2060
    %v2062 = vrot.slane %v2061, 1
    %v2063 = vadd.f32 %v2061, %v2062
    %v2064 = vsel %vm1909, %v1185, 0.0
    %v2065 = vsel %vm1909, %v1187, 0.0
    %v2066 = vadd.f32 %v2064, %v2065
    %v2067 = vsel %vm1909, %v1189, 0.0
    %v2068 = vadd.f32 %v2066, %v2067
    %v2069 = vsel %vm1909, %v1191, 0.0
    %v2070 = vadd.f32 %v2068, %v2069
    %v2071 = vsel %vm1909, %v1193, 0.0
    %v2072 = vadd.f32 %v2070, %v2071
    %v2073 = vsel %vm1909, %v1195, 0.0
    %v2074 = vadd.f32 %v2072, %v2073
    %v2075 = vsel %vm1909, %v1197, 0.0
    %v2076 = vadd.f32 %v2074, %v2075
    %v2077 = vsel %vm1909, %v1199, 0.0
    %v2078 = vadd.f32 %v2076, %v2077
    %v2079 = vsel %vm1909, %v1201, 0.0
    %v2080 = vadd.f32 %v2078, %v2079
    %v2081 = vsel %vm1909, %v1203, 0.0
    %v2082 = vadd.f32 %v2080, %v2081
    %v2083 = vsel %vm1909, %v1205, 0.0
    %v2084 = vadd.f32 %v2082, %v2083
    %v2085 = vsel %vm1909, %v1207, 0.0
    %v2086 = vadd.f32 %v2084, %v2085
    %v2087 = vsel %vm1909, %v1209, 0.0
    %v2088 = vadd.f32 %v2086, %v2087
    %v2089 = vsel %vm1909, %v1211, 0.0
    %v2090 = vadd.f32 %v2088, %v2089
    %v2091 = vsel %vm1909, %v1213, 0.0
    %v2092 = vadd.f32 %v2090, %v2091
    %v2093 = vsel %vm1909, %v1215, 0.0
    %v2094 = vadd.f32 %v2092, %v2093
    %v2095 = vsel %vm1909, %v1217, 0.0
    %v2096 = vadd.f32 %v2094, %v2095
    %v2097 = vsel %vm1909, %v1219, 0.0
    %v2098 = vadd.f32 %v2096, %v2097
    %v2099 = vsel %vm1909, %v1221, 0.0
    %v2100 = vadd.f32 %v2098, %v2099
    %v2101 = vsel %vm1909, %v1223, 0.0
    %v2102 = vadd.f32 %v2100, %v2101
    %v2103 = vsel %vm1909, %v1225, 0.0
    %v2104 = vadd.f32 %v2102, %v2103
    %v2105 = vsel %vm1909, %v1227, 0.0
    %v2106 = vadd.f32 %v2104, %v2105
    %v2107 = vsel %vm1909, %v1229, 0.0
    %v2108 = vadd.f32 %v2106, %v2107
    %v2109 = vsel %vm1909, %v1231, 0.0
    %v2110 = vadd.f32 %v2108, %v2109
    %v2111 = vsel %vm1909, %v1233, 0.0
    %v2112 = vadd.f32 %v2110, %v2111
    %v2113 = vsel %vm1909, %v1235, 0.0
    %v2114 = vadd.f32 %v2112, %v2113
    %v2115 = vsel %vm1909, %v1237, 0.0
    %v2116 = vadd.f32 %v2114, %v2115
    %v2117 = vsel %vm1909, %v1239, 0.0
    %v2118 = vadd.f32 %v2116, %v2117
    %v2119 = vsel %vm1909, %v1241, 0.0
    %v2120 = vadd.f32 %v2118, %v2119
    %v2121 = vsel %vm1909, %v1243, 0.0
    %v2122 = vadd.f32 %v2120, %v2121
    %v2123 = vsel %vm1909, %v1245, 0.0
    %v2124 = vadd.f32 %v2122, %v2123
    %v2125 = vsel %vm1909, %v1247, 0.0
    %v2126 = vadd.f32 %v2124, %v2125
    %v2127 = vsel %vm1909, %v1249, 0.0
    %v2128 = vadd.f32 %v2126, %v2127
    %v2129 = vsel %vm1909, %v1251, 0.0
    %v2130 = vadd.f32 %v2128, %v2129
    %v2131 = vsel %vm1909, %v1253, 0.0
    %v2132 = vadd.f32 %v2130, %v2131
    %v2133 = vsel %vm1909, %v1255, 0.0
    %v2134 = vadd.f32 %v2132, %v2133
    %v2135 = vsel %vm1909, %v1257, 0.0
    %v2136 = vadd.f32 %v2134, %v2135
    %v2137 = vsel %vm1909, %v1259, 0.0
    %v2138 = vadd.f32 %v2136, %v2137
    %v2139 = vsel %vm1909, %v1261, 0.0
    %v2140 = vadd.f32 %v2138, %v2139
    %v2141 = vsel %vm1909, %v1263, 0.0
    %v2142 = vadd.f32 %v2140, %v2141
    %v2143 = vsel %vm1909, %v1265, 0.0
    %v2144 = vadd.f32 %v2142, %v2143
    %v2145 = vsel %vm1909, %v1267, 0.0
    %v2146 = vadd.f32 %v2144, %v2145
    %v2147 = vsel %vm1909, %v1269, 0.0
    %v2148 = vadd.f32 %v2146, %v2147
    %v2149 = vsel %vm1909, %v1271, 0.0
    %v2150 = vadd.f32 %v2148, %v2149
    %v2151 = vsel %vm1909, %v1273, 0.0
    %v2152 = vadd.f32 %v2150, %v2151
    %v2153 = vsel %vm1909, %v1275, 0.0
    %v2154 = vadd.f32 %v2152, %v2153
    %v2155 = vsel %vm1909, %v1277, 0.0
    %v2156 = vadd.f32 %v2154, %v2155
    %v2157 = vsel %vm1909, %v1279, 0.0
    %v2158 = vadd.f32 %v2156, %v2157
    %v2159 = vrot.slane %v2158, 4
    %v2160 = vadd.f32 %v2158, %v2159
    %v2161 = vrot.slane %v2160, 2
    %v2162 = vadd.f32 %v2160, %v2161
    %v2163 = vrot.slane %v2162, 1
    %v2164 = vadd.f32 %v2162, %v2163
    %v2165 = vadd.f32 %v1280, %v1282
    %v2166 = vadd.f32 %v2165, %v1284
    %v2167 = vadd.f32 %v2166, %v1286
    %v2168 = vadd.f32 %v2167, %v1288
    %v2169 = vadd.f32 %v2168, %v1290
    %v2170 = vadd.f32 %v2169, %v1292
    %v2171 = vadd.f32 %v2170, %v1294
    %v2172 = vadd.f32 %v2171, %v1296
    %v2173 = vadd.f32 %v2172, %v1298
    %v2174 = vadd.f32 %v2173, %v1300
    %v2175 = vadd.f32 %v2174, %v1302
    %v2176 = vadd.f32 %v2175, %v1304
    %v2177 = vadd.f32 %v2176, %v1306
    %v2178 = vadd.f32 %v2177, %v1308
    %v2179 = vadd.f32 %v2178, %v1310
    %v2180 = vadd.f32 %v2179, %v1312
    %v2181 = vadd.f32 %v2180, %v1314
    %v2182 = vadd.f32 %v2181, %v1316
    %v2183 = vadd.f32 %v2182, %v1318
    %v2184 = vadd.f32 %v2183, %v1320
    %v2185 = vadd.f32 %v2184, %v1322
    %v2186 = vadd.f32 %v2185, %v1324
    %v2187 = vadd.f32 %v2186, %v1326
    %v2188 = vadd.f32 %v2187, %v1328
    %v2189 = vadd.f32 %v2188, %v1330
    %v2190 = vadd.f32 %v2189, %v1332
    %v2191 = vadd.f32 %v2190, %v1334
    %v2192 = vadd.f32 %v2191, %v1336
    %v2193 = vadd.f32 %v2192, %v1338
    %v2194 = vadd.f32 %v2193, %v1340
    %v2195 = vadd.f32 %v2194, %v1342
    %v2196 = vadd.f32 %v2195, %v1344
    %v2197 = vadd.f32 %v2196, %v1346
    %v2198 = vadd.f32 %v2197, %v1348
    %v2199 = vadd.f32 %v2198, %v1350
    %v2200 = vadd.f32 %v2199, %v1352
    %v2201 = vadd.f32 %v2200, %v1354
    %v2202 = vadd.f32 %v2201, %v1356
    %v2203 = vadd.f32 %v2202, %v1358
    %v2204 = vadd.f32 %v2203, %v1360
    %v2205 = vadd.f32 %v2204, %v1362
    %v2206 = vadd.f32 %v2205, %v1364
    %v2207 = vadd.f32 %v2206, %v1366
    %v2208 = vadd.f32 %v2207, %v1368
    %v2209 = vadd.f32 %v2208, %v1370
    %v2210 = vadd.f32 %v2209, %v1372
    %v2211 = vadd.f32 %v2210, %v1374
    %v2212 = vrot.slane %v2211, 4
    %v2213 = vadd.f32 %v2211, %v2212
    %v2214 = vrot.slane %v2213, 2
    %v2215 = vadd.f32 %v2213, %v2214
    %v2216 = vrot.slane %v2215, 1
    %v2217 = vadd.f32 %v2215, %v2216
    %v2218 = vsel %vm1909, %v1281, 0.0
    %v2219 = vsel %vm1909, %v1283, 0.0
    %v2220 = vadd.f32 %v2218, %v2219
    %v2221 = vsel %vm1909, %v1285, 0.0
    %v2222 = vadd.f32 %v2220, %v2221
    %v2223 = vsel %vm1909, %v1287, 0.0
    %v2224 = vadd.f32 %v2222, %v2223
    %v2225 = vsel %vm1909, %v1289, 0.0
    %v2226 = vadd.f32 %v2224, %v2225
    %v2227 = vsel %vm1909, %v1291, 0.0
    %v2228 = vadd.f32 %v2226, %v2227
    %v2229 = vsel %vm1909, %v1293, 0.0
    %v2230 = vadd.f32 %v2228, %v2229
    %v2231 = vsel %vm1909, %v1295, 0.0
    %v2232 = vadd.f32 %v2230, %v2231
    %v2233 = vsel %vm1909, %v1297, 0.0
    %v2234 = vadd.f32 %v2232, %v2233
    %v2235 = vsel %vm1909, %v1299, 0.0
    %v2236 = vadd.f32 %v2234, %v2235
    %v2237 = vsel %vm1909, %v1301, 0.0
    %v2238 = vadd.f32 %v2236, %v2237
    %v2239 = vsel %vm1909, %v1303, 0.0
    %v2240 = vadd.f32 %v2238, %v2239
    %v2241 = vsel %vm1909, %v1305, 0.0
    %v2242 = vadd.f32 %v2240, %v2241
    %v2243 = vsel %vm1909, %v1307, 0.0
    %v2244 = vadd.f32 %v2242, %v2243
    %v2245 = vsel %vm1909, %v1309, 0.0
    %v2246 = vadd.f32 %v2244, %v2245
    %v2247 = vsel %vm1909, %v1311, 0.0
    %v2248 = vadd.f32 %v2246, %v2247
    %v2249 = vsel %vm1909, %v1313, 0.0
    %v2250 = vadd.f32 %v2248, %v2249
    %v2251 = vsel %vm1909, %v1315, 0.0
    %v2252 = vadd.f32 %v2250, %v2251
    %v2253 = vsel %vm1909, %v1317, 0.0
    %v2254 = vadd.f32 %v2252, %v2253
    %v2255 = vsel %vm1909, %v1319, 0.0
    %v2256 = vadd.f32 %v2254, %v2255
    %v2257 = vsel %vm1909, %v1321, 0.0
    %v2258 = vadd.f32 %v2256, %v2257
    %v2259 = vsel %vm1909, %v1323, 0.0
    %v2260 = vadd.f32 %v2258, %v2259
    %v2261 = vsel %vm1909, %v1325, 0.0
    %v2262 = vadd.f32 %v2260, %v2261
    %v2263 = vsel %vm1909, %v1327, 0.0
    %v2264 = vadd.f32 %v2262, %v2263
    %v2265 = vsel %vm1909, %v1329, 0.0
    %v2266 = vadd.f32 %v2264, %v2265
    %v2267 = vsel %vm1909, %v1331, 0.0
    %v2268 = vadd.f32 %v2266, %v2267
    %v2269 = vsel %vm1909, %v1333, 0.0
    %v2270 = vadd.f32 %v2268, %v2269
    %v2271 = vsel %vm1909, %v1335, 0.0
    %v2272 = vadd.f32 %v2270, %v2271
    %v2273 = vsel %vm1909, %v1337, 0.0
    %v2274 = vadd.f32 %v2272, %v2273
    %v2275 = vsel %vm1909, %v1339, 0.0
    %v2276 = vadd.f32 %v2274, %v2275
    %v2277 = vsel %vm1909, %v1341, 0.0
    %v2278 = vadd.f32 %v2276, %v2277
    %v2279 = vsel %vm1909, %v1343, 0.0
    %v2280 = vadd.f32 %v2278, %v2279
    %v2281 = vsel %vm1909, %v1345, 0.0
    %v2282 = vadd.f32 %v2280, %v2281
    %v2283 = vsel %vm1909, %v1347, 0.0
    %v2284 = vadd.f32 %v2282, %v2283
    %v2285 = vsel %vm1909, %v1349, 0.0
    %v2286 = vadd.f32 %v2284, %v2285
    %v2287 = vsel %vm1909, %v1351, 0.0
    %v2288 = vadd.f32 %v2286, %v2287
    %v2289 = vsel %vm1909, %v1353, 0.0
    %v2290 = vadd.f32 %v2288, %v2289
    %v2291 = vsel %vm1909, %v1355, 0.0
    %v2292 = vadd.f32 %v2290, %v2291
    %v2293 = vsel %vm1909, %v1357, 0.0
    %v2294 = vadd.f32 %v2292, %v2293
    %v2295 = vsel %vm1909, %v1359, 0.0
    %v2296 = vadd.f32 %v2294, %v2295
    %v2297 = vsel %vm1909, %v1361, 0.0
    %v2298 = vadd.f32 %v2296, %v2297
    %v2299 = vsel %vm1909, %v1363, 0.0
    %v2300 = vadd.f32 %v2298, %v2299
    %v2301 = vsel %vm1909, %v1365, 0.0
    %v2302 = vadd.f32 %v2300, %v2301
    %v2303 = vsel %vm1909, %v1367, 0.0
    %v2304 = vadd.f32 %v2302, %v2303
    %v2305 = vsel %vm1909, %v1369, 0.0
    %v2306 = vadd.f32 %v2304, %v2305
    %v2307 = vsel %vm1909, %v1371, 0.0
    %v2308 = vadd.f32 %v2306, %v2307
    %v2309 = vsel %vm1909, %v1373, 0.0
    %v2310 = vadd.f32 %v2308, %v2309
    %v2311 = vsel %vm1909, %v1375, 0.0
    %v2312 = vadd.f32 %v2310, %v2311
    %v2313 = vrot.slane %v2312, 4
    %v2314 = vadd.f32 %v2312, %v2313
    %v2315 = vrot.slane %v2314, 2
    %v2316 = vadd.f32 %v2314, %v2315
    %v2317 = vrot.slane %v2316, 1
    %v2318 = vadd.f32 %v2316, %v2317
    %v2319 = vadd.f32 %v1376, %v1378
    %v2320 = vadd.f32 %v2319, %v1380
    %v2321 = vadd.f32 %v2320, %v1382
    %v2322 = vadd.f32 %v2321, %v1384
    %v2323 = vadd.f32 %v2322, %v1386
    %v2324 = vadd.f32 %v2323, %v1388
    %v2325 = vadd.f32 %v2324, %v1390
    %v2326 = vadd.f32 %v2325, %v1392
    %v2327 = vadd.f32 %v2326, %v1394
    %v2328 = vadd.f32 %v2327, %v1396
    %v2329 = vadd.f32 %v2328, %v1398
    %v2330 = vadd.f32 %v2329, %v1400
    %v2331 = vadd.f32 %v2330, %v1402
    %v2332 = vadd.f32 %v2331, %v1404
    %v2333 = vadd.f32 %v2332, %v1406
    %v2334 = vadd.f32 %v2333, %v1408
    %v2335 = vadd.f32 %v2334, %v1410
    %v2336 = vadd.f32 %v2335, %v1412
    %v2337 = vadd.f32 %v2336, %v1414
    %v2338 = vadd.f32 %v2337, %v1416
    %v2339 = vadd.f32 %v2338, %v1418
    %v2340 = vadd.f32 %v2339, %v1420
    %v2341 = vadd.f32 %v2340, %v1422
    %v2342 = vadd.f32 %v2341, %v1424
    %v2343 = vadd.f32 %v2342, %v1426
    %v2344 = vadd.f32 %v2343, %v1428
    %v2345 = vadd.f32 %v2344, %v1430
    %v2346 = vadd.f32 %v2345, %v1432
    %v2347 = vadd.f32 %v2346, %v1434
    %v2348 = vadd.f32 %v2347, %v1436
    %v2349 = vadd.f32 %v2348, %v1438
    %v2350 = vadd.f32 %v2349, %v1440
    %v2351 = vadd.f32 %v2350, %v1442
    %v2352 = vadd.f32 %v2351, %v1444
    %v2353 = vadd.f32 %v2352, %v1446
    %v2354 = vadd.f32 %v2353, %v1448
    %v2355 = vadd.f32 %v2354, %v1450
    %v2356 = vadd.f32 %v2355, %v1452
    %v2357 = vadd.f32 %v2356, %v1454
    %v2358 = vadd.f32 %v2357, %v1456
    %v2359 = vadd.f32 %v2358, %v1458
    %v2360 = vadd.f32 %v2359, %v1460
    %v2361 = vadd.f32 %v2360, %v1462
    %v2362 = vadd.f32 %v2361, %v1464
    %v2363 = vadd.f32 %v2362, %v1466
    %v2364 = vadd.f32 %v2363, %v1468
    %v2365 = vadd.f32 %v2364, %v1470
    %v2366 = vrot.slane %v2365, 4
    %v2367 = vadd.f32 %v2365, %v2366
    %v2368 = vrot.slane %v2367, 2
    %v2369 = vadd.f32 %v2367, %v2368
    %v2370 = vrot.slane %v2369, 1
    %v2371 = vadd.f32 %v2369, %v2370
    %v2372 = vsel %vm1909, %v1377, 0.0
    %v2373 = vsel %vm1909, %v1379, 0.0
    %v2374 = vadd.f32 %v2372, %v2373
    %v2375 = vsel %vm1909, %v1381, 0.0
    %v2376 = vadd.f32 %v2374, %v2375
    %v2377 = vsel %vm1909, %v1383, 0.0
    %v2378 = vadd.f32 %v2376, %v2377
    %v2379 = vsel %vm1909, %v1385, 0.0
    %v2380 = vadd.f32 %v2378, %v2379
    %v2381 = vsel %vm1909, %v1387, 0.0
    %v2382 = vadd.f32 %v2380, %v2381
    %v2383 = vsel %vm1909, %v1389, 0.0
    %v2384 = vadd.f32 %v2382, %v2383
    %v2385 = vsel %vm1909, %v1391, 0.0
    %v2386 = vadd.f32 %v2384, %v2385
    %v2387 = vsel %vm1909, %v1393, 0.0
    %v2388 = vadd.f32 %v2386, %v2387
    %v2389 = vsel %vm1909, %v1395, 0.0
    %v2390 = vadd.f32 %v2388, %v2389
    %v2391 = vsel %vm1909, %v1397, 0.0
    %v2392 = vadd.f32 %v2390, %v2391
    %v2393 = vsel %vm1909, %v1399, 0.0
    %v2394 = vadd.f32 %v2392, %v2393
    %v2395 = vsel %vm1909, %v1401, 0.0
    %v2396 = vadd.f32 %v2394, %v2395
    %v2397 = vsel %vm1909, %v1403, 0.0
    %v2398 = vadd.f32 %v2396, %v2397
    %v2399 = vsel %vm1909, %v1405, 0.0
    %v2400 = vadd.f32 %v2398, %v2399
    %v2401 = vsel %vm1909, %v1407, 0.0
    %v2402 = vadd.f32 %v2400, %v2401
    %v2403 = vsel %vm1909, %v1409, 0.0
    %v2404 = vadd.f32 %v2402, %v2403
    %v2405 = vsel %vm1909, %v1411, 0.0
    %v2406 = vadd.f32 %v2404, %v2405
    %v2407 = vsel %vm1909, %v1413, 0.0
    %v2408 = vadd.f32 %v2406, %v2407
    %v2409 = vsel %vm1909, %v1415, 0.0
    %v2410 = vadd.f32 %v2408, %v2409
    %v2411 = vsel %vm1909, %v1417, 0.0
    %v2412 = vadd.f32 %v2410, %v2411
    %v2413 = vsel %vm1909, %v1419, 0.0
    %v2414 = vadd.f32 %v2412, %v2413
    %v2415 = vsel %vm1909, %v1421, 0.0
    %v2416 = vadd.f32 %v2414, %v2415
    %v2417 = vsel %vm1909, %v1423, 0.0
    %v2418 = vadd.f32 %v2416, %v2417
    %v2419 = vsel %vm1909, %v1425, 0.0
    %v2420 = vadd.f32 %v2418, %v2419
    %v2421 = vsel %vm1909, %v1427, 0.0
    %v2422 = vadd.f32 %v2420, %v2421
    %v2423 = vsel %vm1909, %v1429, 0.0
    %v2424 = vadd.f32 %v2422, %v2423
    %v2425 = vsel %vm1909, %v1431, 0.0
    %v2426 = vadd.f32 %v2424, %v2425
    %v2427 = vsel %vm1909, %v1433, 0.0
    %v2428 = vadd.f32 %v2426, %v2427
    %v2429 = vsel %vm1909, %v1435, 0.0
    %v2430 = vadd.f32 %v2428, %v2429
    %v2431 = vsel %vm1909, %v1437, 0.0
    %v2432 = vadd.f32 %v2430, %v2431
    %v2433 = vsel %vm1909, %v1439, 0.0
    %v2434 = vadd.f32 %v2432, %v2433
    %v2435 = vsel %vm1909, %v1441, 0.0
    %v2436 = vadd.f32 %v2434, %v2435
    %v2437 = vsel %vm1909, %v1443, 0.0
    %v2438 = vadd.f32 %v2436, %v2437
    %v2439 = vsel %vm1909, %v1445, 0.0
    %v2440 = vadd.f32 %v2438, %v2439
    %v2441 = vsel %vm1909, %v1447, 0.0
    %v2442 = vadd.f32 %v2440, %v2441
    %v2443 = vsel %vm1909, %v1449, 0.0
    %v2444 = vadd.f32 %v2442, %v2443
    %v2445 = vsel %vm1909, %v1451, 0.0
    %v2446 = vadd.f32 %v2444, %v2445
    %v2447 = vsel %vm1909, %v1453, 0.0
    %v2448 = vadd.f32 %v2446, %v2447
    %v2449 = vsel %vm1909, %v1455, 0.0
    %v2450 = vadd.f32 %v2448, %v2449
    %v2451 = vsel %vm1909, %v1457, 0.0
    %v2452 = vadd.f32 %v2450, %v2451
    %v2453 = vsel %vm1909, %v1459, 0.0
    %v2454 = vadd.f32 %v2452, %v2453
    %v2455 = vsel %vm1909, %v1461, 0.0
    %v2456 = vadd.f32 %v2454, %v2455
    %v2457 = vsel %vm1909, %v1463, 0.0
    %v2458 = vadd.f32 %v2456, %v2457
    %v2459 = vsel %vm1909, %v1465, 0.0
    %v2460 = vadd.f32 %v2458, %v2459
    %v2461 = vsel %vm1909, %v1467, 0.0
    %v2462 = vadd.f32 %v2460, %v2461
    %v2463 = vsel %vm1909, %v1469, 0.0
    %v2464 = vadd.f32 %v2462, %v2463
    %v2465 = vsel %vm1909, %v1471, 0.0
    %v2466 = vadd.f32 %v2464, %v2465
    %v2467 = vrot.slane %v2466, 4
    %v2468 = vadd.f32 %v2466, %v2467
    %v2469 = vrot.slane %v2468, 2
    %v2470 = vadd.f32 %v2468, %v2469
    %v2471 = vrot.slane %v2470, 1
    %v2472 = vadd.f32 %v2470, %v2471
    %v2473 = vadd.f32 %v1472, %v1474
    %v2474 = vadd.f32 %v2473, %v1476
    %v2475 = vadd.f32 %v2474, %v1478
    %v2476 = vadd.f32 %v2475, %v1480
    %v2477 = vadd.f32 %v2476, %v1482
    %v2478 = vadd.f32 %v2477, %v1484
    %v2479 = vadd.f32 %v2478, %v1486
    %v2480 = vadd.f32 %v2479, %v1488
    %v2481 = vadd.f32 %v2480, %v1490
    %v2482 = vadd.f32 %v2481, %v1492
    %v2483 = vadd.f32 %v2482, %v1494
    %v2484 = vadd.f32 %v2483, %v1496
    %v2485 = vadd.f32 %v2484, %v1498
    %v2486 = vadd.f32 %v2485, %v1500
    %v2487 = vadd.f32 %v2486, %v1502
    %v2488 = vadd.f32 %v2487, %v1504
    %v2489 = vadd.f32 %v2488, %v1506
    %v2490 = vadd.f32 %v2489, %v1508
    %v2491 = vadd.f32 %v2490, %v1510
    %v2492 = vadd.f32 %v2491, %v1512
    %v2493 = vadd.f32 %v2492, %v1514
    %v2494 = vadd.f32 %v2493, %v1516
    %v2495 = vadd.f32 %v2494, %v1518
    %v2496 = vadd.f32 %v2495, %v1520
    %v2497 = vadd.f32 %v2496, %v1522
    %v2498 = vadd.f32 %v2497, %v1524
    %v2499 = vadd.f32 %v2498, %v1526
    %v2500 = vadd.f32 %v2499, %v1528
    %v2501 = vadd.f32 %v2500, %v1530
    %v2502 = vadd.f32 %v2501, %v1532
    %v2503 = vadd.f32 %v2502, %v1534
    %v2504 = vadd.f32 %v2503, %v1536
    %v2505 = vadd.f32 %v2504, %v1538
    %v2506 = vadd.f32 %v2505, %v1540
    %v2507 = vadd.f32 %v2506, %v1542
    %v2508 = vadd.f32 %v2507, %v1544
    %v2509 = vadd.f32 %v2508, %v1546
    %v2510 = vadd.f32 %v2509, %v1548
    %v2511 = vadd.f32 %v2510, %v1550
    %v2512 = vadd.f32 %v2511, %v1552
    %v2513 = vadd.f32 %v2512, %v1554
    %v2514 = vadd.f32 %v2513, %v1556
    %v2515 = vadd.f32 %v2514, %v1558
    %v2516 = vadd.f32 %v2515, %v1560
    %v2517 = vadd.f32 %v2516, %v1562
    %v2518 = vadd.f32 %v2517, %v1564
    %v2519 = vadd.f32 %v2518, %v1566
    %v2520 = vrot.slane %v2519, 4
    %v2521 = vadd.f32 %v2519, %v2520
    %v2522 = vrot.slane %v2521, 2
    %v2523 = vadd.f32 %v2521, %v2522
    %v2524 = vrot.slane %v2523, 1
    %v2525 = vadd.f32 %v2523, %v2524
    %v2526 = vsel %vm1909, %v1473, 0.0
    %v2527 = vsel %vm1909, %v1475, 0.0
    %v2528 = vadd.f32 %v2526, %v2527
    %v2529 = vsel %vm1909, %v1477, 0.0
    %v2530 = vadd.f32 %v2528, %v2529
    %v2531 = vsel %vm1909, %v1479, 0.0
    %v2532 = vadd.f32 %v2530, %v2531
    %v2533 = vsel %vm1909, %v1481, 0.0
    %v2534 = vadd.f32 %v2532, %v2533
    %v2535 = vsel %vm1909, %v1483, 0.0
    %v2536 = vadd.f32 %v2534, %v2535
    %v2537 = vsel %vm1909, %v1485, 0.0
    %v2538 = vadd.f32 %v2536, %v2537
    %v2539 = vsel %vm1909, %v1487, 0.0
    %v2540 = vadd.f32 %v2538, %v2539
    %v2541 = vsel %vm1909, %v1489, 0.0
    %v2542 = vadd.f32 %v2540, %v2541
    %v2543 = vsel %vm1909, %v1491, 0.0
    %v2544 = vadd.f32 %v2542, %v2543
    %v2545 = vsel %vm1909, %v1493, 0.0
    %v2546 = vadd.f32 %v2544, %v2545
    %v2547 = vsel %vm1909, %v1495, 0.0
    %v2548 = vadd.f32 %v2546, %v2547
    %v2549 = vsel %vm1909, %v1497, 0.0
    %v2550 = vadd.f32 %v2548, %v2549
    %v2551 = vsel %vm1909, %v1499, 0.0
    %v2552 = vadd.f32 %v2550, %v2551
    %v2553 = vsel %vm1909, %v1501, 0.0
    %v2554 = vadd.f32 %v2552, %v2553
    %v2555 = vsel %vm1909, %v1503, 0.0
    %v2556 = vadd.f32 %v2554, %v2555
    %v2557 = vsel %vm1909, %v1505, 0.0
    %v2558 = vadd.f32 %v2556, %v2557
    %v2559 = vsel %vm1909, %v1507, 0.0
    %v2560 = vadd.f32 %v2558, %v2559
    %v2561 = vsel %vm1909, %v1509, 0.0
    %v2562 = vadd.f32 %v2560, %v2561
    %v2563 = vsel %vm1909, %v1511, 0.0
    %v2564 = vadd.f32 %v2562, %v2563
    %v2565 = vsel %vm1909, %v1513, 0.0
    %v2566 = vadd.f32 %v2564, %v2565
    %v2567 = vsel %vm1909, %v1515, 0.0
    %v2568 = vadd.f32 %v2566, %v2567
    %v2569 = vsel %vm1909, %v1517, 0.0
    %v2570 = vadd.f32 %v2568, %v2569
    %v2571 = vsel %vm1909, %v1519, 0.0
    %v2572 = vadd.f32 %v2570, %v2571
    %v2573 = vsel %vm1909, %v1521, 0.0
    %v2574 = vadd.f32 %v2572, %v2573
    %v2575 = vsel %vm1909, %v1523, 0.0
    %v2576 = vadd.f32 %v2574, %v2575
    %v2577 = vsel %vm1909, %v1525, 0.0
    %v2578 = vadd.f32 %v2576, %v2577
    %v2579 = vsel %vm1909, %v1527, 0.0
    %v2580 = vadd.f32 %v2578, %v2579
    %v2581 = vsel %vm1909, %v1529, 0.0
    %v2582 = vadd.f32 %v2580, %v2581
    %v2583 = vsel %vm1909, %v1531, 0.0
    %v2584 = vadd.f32 %v2582, %v2583
    %v2585 = vsel %vm1909, %v1533, 0.0
    %v2586 = vadd.f32 %v2584, %v2585
    %v2587 = vsel %vm1909, %v1535, 0.0
    %v2588 = vadd.f32 %v2586, %v2587
    %v2589 = vsel %vm1909, %v1537, 0.0
    %v2590 = vadd.f32 %v2588, %v2589
    %v2591 = vsel %vm1909, %v1539, 0.0
    %v2592 = vadd.f32 %v2590, %v2591
    %v2593 = vsel %vm1909, %v1541, 0.0
    %v2594 = vadd.f32 %v2592, %v2593
    %v2595 = vsel %vm1909, %v1543, 0.0
    %v2596 = vadd.f32 %v2594, %v2595
    %v2597 = vsel %vm1909, %v1545, 0.0
    %v2598 = vadd.f32 %v2596, %v2597
    %v2599 = vsel %vm1909, %v1547, 0.0
    %v2600 = vadd.f32 %v2598, %v2599
    %v2601 = vsel %vm1909, %v1549, 0.0
    %v2602 = vadd.f32 %v2600, %v2601
    %v2603 = vsel %vm1909, %v1551, 0.0
    %v2604 = vadd.f32 %v2602, %v2603
    %v2605 = vsel %vm1909, %v1553, 0.0
    %v2606 = vadd.f32 %v2604, %v2605
    %v2607 = vsel %vm1909, %v1555, 0.0
    %v2608 = vadd.f32 %v2606, %v2607
    %v2609 = vsel %vm1909, %v1557, 0.0
    %v2610 = vadd.f32 %v2608, %v2609
    %v2611 = vsel %vm1909, %v1559, 0.0
    %v2612 = vadd.f32 %v2610, %v2611
    %v2613 = vsel %vm1909, %v1561, 0.0
    %v2614 = vadd.f32 %v2612, %v2613
    %v2615 = vsel %vm1909, %v1563, 0.0
    %v2616 = vadd.f32 %v2614, %v2615
    %v2617 = vsel %vm1909, %v1565, 0.0
    %v2618 = vadd.f32 %v2616, %v2617
    %v2619 = vsel %vm1909, %v1567, 0.0
    %v2620 = vadd.f32 %v2618, %v2619
    %v2621 = vrot.slane %v2620, 4
    %v2622 = vadd.f32 %v2620, %v2621
    %v2623 = vrot.slane %v2622, 2
    %v2624 = vadd.f32 %v2622, %v2623
    %v2625 = vrot.slane %v2624, 1
    %v2626 = vadd.f32 %v2624, %v2625
    %v2627 = vadd.f32 %v1568, %v1570
    %v2628 = vadd.f32 %v2627, %v1572
    %v2629 = vadd.f32 %v2628, %v1574
    %v2630 = vadd.f32 %v2629, %v1576
    %v2631 = vadd.f32 %v2630, %v1578
    %v2632 = vadd.f32 %v2631, %v1580
    %v2633 = vadd.f32 %v2632, %v1582
    %v2634 = vadd.f32 %v2633, %v1584
    %v2635 = vadd.f32 %v2634, %v1586
    %v2636 = vadd.f32 %v2635, %v1588
    %v2637 = vadd.f32 %v2636, %v1590
    %v2638 = vadd.f32 %v2637, %v1592
    %v2639 = vadd.f32 %v2638, %v1594
    %v2640 = vadd.f32 %v2639, %v1596
    %v2641 = vadd.f32 %v2640, %v1598
    %v2642 = vadd.f32 %v2641, %v1600
    %v2643 = vadd.f32 %v2642, %v1602
    %v2644 = vadd.f32 %v2643, %v1604
    %v2645 = vadd.f32 %v2644, %v1606
    %v2646 = vadd.f32 %v2645, %v1608
    %v2647 = vadd.f32 %v2646, %v1610
    %v2648 = vadd.f32 %v2647, %v1612
    %v2649 = vadd.f32 %v2648, %v1614
    %v2650 = vadd.f32 %v2649, %v1616
    %v2651 = vadd.f32 %v2650, %v1618
    %v2652 = vadd.f32 %v2651, %v1620
    %v2653 = vadd.f32 %v2652, %v1622
    %v2654 = vadd.f32 %v2653, %v1624
    %v2655 = vadd.f32 %v2654, %v1626
    %v2656 = vadd.f32 %v2655, %v1628
    %v2657 = vadd.f32 %v2656, %v1630
    %v2658 = vadd.f32 %v2657, %v1632
    %v2659 = vadd.f32 %v2658, %v1634
    %v2660 = vadd.f32 %v2659, %v1636
    %v2661 = vadd.f32 %v2660, %v1638
    %v2662 = vadd.f32 %v2661, %v1640
    %v2663 = vadd.f32 %v2662, %v1642
    %v2664 = vadd.f32 %v2663, %v1644
    %v2665 = vadd.f32 %v2664, %v1646
    %v2666 = vadd.f32 %v2665, %v1648
    %v2667 = vadd.f32 %v2666, %v1650
    %v2668 = vadd.f32 %v2667, %v1652
    %v2669 = vadd.f32 %v2668, %v1654
    %v2670 = vadd.f32 %v2669, %v1656
    %v2671 = vadd.f32 %v2670, %v1658
    %v2672 = vadd.f32 %v2671, %v1660
    %v2673 = vadd.f32 %v2672, %v1662
    %v2674 = vrot.slane %v2673, 4
    %v2675 = vadd.f32 %v2673, %v2674
    %v2676 = vrot.slane %v2675, 2
    %v2677 = vadd.f32 %v2675, %v2676
    %v2678 = vrot.slane %v2677, 1
    %v2679 = vadd.f32 %v2677, %v2678
    %v2680 = vsel %vm1909, %v1569, 0.0
    %v2681 = vsel %vm1909, %v1571, 0.0
    %v2682 = vadd.f32 %v2680, %v2681
    %v2683 = vsel %vm1909, %v1573, 0.0
    %v2684 = vadd.f32 %v2682, %v2683
    %v2685 = vsel %vm1909, %v1575, 0.0
    %v2686 = vadd.f32 %v2684, %v2685
    %v2687 = vsel %vm1909, %v1577, 0.0
    %v2688 = vadd.f32 %v2686, %v2687
    %v2689 = vsel %vm1909, %v1579, 0.0
    %v2690 = vadd.f32 %v2688, %v2689
    %v2691 = vsel %vm1909, %v1581, 0.0
    %v2692 = vadd.f32 %v2690, %v2691
    %v2693 = vsel %vm1909, %v1583, 0.0
    %v2694 = vadd.f32 %v2692, %v2693
    %v2695 = vsel %vm1909, %v1585, 0.0
    %v2696 = vadd.f32 %v2694, %v2695
    %v2697 = vsel %vm1909, %v1587, 0.0
    %v2698 = vadd.f32 %v2696, %v2697
    %v2699 = vsel %vm1909, %v1589, 0.0
    %v2700 = vadd.f32 %v2698, %v2699
    %v2701 = vsel %vm1909, %v1591, 0.0
    %v2702 = vadd.f32 %v2700, %v2701
    %v2703 = vsel %vm1909, %v1593, 0.0
    %v2704 = vadd.f32 %v2702, %v2703
    %v2705 = vsel %vm1909, %v1595, 0.0
    %v2706 = vadd.f32 %v2704, %v2705
    %v2707 = vsel %vm1909, %v1597, 0.0
    %v2708 = vadd.f32 %v2706, %v2707
    %v2709 = vsel %vm1909, %v1599, 0.0
    %v2710 = vadd.f32 %v2708, %v2709
    %v2711 = vsel %vm1909, %v1601, 0.0
    %v2712 = vadd.f32 %v2710, %v2711
    %v2713 = vsel %vm1909, %v1603, 0.0
    %v2714 = vadd.f32 %v2712, %v2713
    %v2715 = vsel %vm1909, %v1605, 0.0
    %v2716 = vadd.f32 %v2714, %v2715
    %v2717 = vsel %vm1909, %v1607, 0.0
    %v2718 = vadd.f32 %v2716, %v2717
    %v2719 = vsel %vm1909, %v1609, 0.0
    %v2720 = vadd.f32 %v2718, %v2719
    %v2721 = vsel %vm1909, %v1611, 0.0
    %v2722 = vadd.f32 %v2720, %v2721
    %v2723 = vsel %vm1909, %v1613, 0.0
    %v2724 = vadd.f32 %v2722, %v2723
    %v2725 = vsel %vm1909, %v1615, 0.0
    %v2726 = vadd.f32 %v2724, %v2725
    %v2727 = vsel %vm1909, %v1617, 0.0
    %v2728 = vadd.f32 %v2726, %v2727
    %v2729 = vsel %vm1909, %v1619, 0.0
    %v2730 = vadd.f32 %v2728, %v2729
    %v2731 = vsel %vm1909, %v1621, 0.0
    %v2732 = vadd.f32 %v2730, %v2731
    %v2733 = vsel %vm1909, %v1623, 0.0
    %v2734 = vadd.f32 %v2732, %v2733
    %v2735 = vsel %vm1909, %v1625, 0.0
    %v2736 = vadd.f32 %v2734, %v2735
    %v2737 = vsel %vm1909, %v1627, 0.0
    %v2738 = vadd.f32 %v2736, %v2737
    %v2739 = vsel %vm1909, %v1629, 0.0
    %v2740 = vadd.f32 %v2738, %v2739
    %v2741 = vsel %vm1909, %v1631, 0.0
    %v2742 = vadd.f32 %v2740, %v2741
    %v2743 = vsel %vm1909, %v1633, 0.0
    %v2744 = vadd.f32 %v2742, %v2743
    %v2745 = vsel %vm1909, %v1635, 0.0
    %v2746 = vadd.f32 %v2744, %v2745
    %v2747 = vsel %vm1909, %v1637, 0.0
    %v2748 = vadd.f32 %v2746, %v2747
    %v2749 = vsel %vm1909, %v1639, 0.0
    %v2750 = vadd.f32 %v2748, %v2749
    %v2751 = vsel %vm1909, %v1641, 0.0
    %v2752 = vadd.f32 %v2750, %v2751
    %v2753 = vsel %vm1909, %v1643, 0.0
    %v2754 = vadd.f32 %v2752, %v2753
    %v2755 = vsel %vm1909, %v1645, 0.0
    %v2756 = vadd.f32 %v2754, %v2755
    %v2757 = vsel %vm1909, %v1647, 0.0
    %v2758 = vadd.f32 %v2756, %v2757
    %v2759 = vsel %vm1909, %v1649, 0.0
    %v2760 = vadd.f32 %v2758, %v2759
    %v2761 = vsel %vm1909, %v1651, 0.0
    %v2762 = vadd.f32 %v2760, %v2761
    %v2763 = vsel %vm1909, %v1653, 0.0
    %v2764 = vadd.f32 %v2762, %v2763
    %v2765 = vsel %vm1909, %v1655, 0.0
    %v2766 = vadd.f32 %v2764, %v2765
    %v2767 = vsel %vm1909, %v1657, 0.0
    %v2768 = vadd.f32 %v2766, %v2767
    %v2769 = vsel %vm1909, %v1659, 0.0
    %v2770 = vadd.f32 %v2768, %v2769
    %v2771 = vsel %vm1909, %v1661, 0.0
    %v2772 = vadd.f32 %v2770, %v2771
    %v2773 = vsel %vm1909, %v1663, 0.0
    %v2774 = vadd.f32 %v2772, %v2773
    %v2775 = vrot.slane %v2774, 4
    %v2776 = vadd.f32 %v2774, %v2775
    %v2777 = vrot.slane %v2776, 2
    %v2778 = vadd.f32 %v2776, %v2777
    %v2779 = vrot.slane %v2778, 1
    %v2780 = vadd.f32 %v2778, %v2779
    %v2781 = vadd.f32 %v1664, %v1666
    %v2782 = vadd.f32 %v2781, %v1668
    %v2783 = vadd.f32 %v2782, %v1670
    %v2784 = vadd.f32 %v2783, %v1672
    %v2785 = vadd.f32 %v2784, %v1674
    %v2786 = vadd.f32 %v2785, %v1676
    %v2787 = vadd.f32 %v2786, %v1678
    %v2788 = vadd.f32 %v2787, %v1680
    %v2789 = vadd.f32 %v2788, %v1682
    %v2790 = vadd.f32 %v2789, %v1684
    %v2791 = vadd.f32 %v2790, %v1686
    %v2792 = vadd.f32 %v2791, %v1688
    %v2793 = vadd.f32 %v2792, %v1690
    %v2794 = vadd.f32 %v2793, %v1692
    %v2795 = vadd.f32 %v2794, %v1694
    %v2796 = vadd.f32 %v2795, %v1696
    %v2797 = vadd.f32 %v2796, %v1698
    %v2798 = vadd.f32 %v2797, %v1700
    %v2799 = vadd.f32 %v2798, %v1702
    %v2800 = vadd.f32 %v2799, %v1704
    %v2801 = vadd.f32 %v2800, %v1706
    %v2802 = vadd.f32 %v2801, %v1708
    %v2803 = vadd.f32 %v2802, %v1710
    %v2804 = vadd.f32 %v2803, %v1712
    %v2805 = vadd.f32 %v2804, %v1714
    %v2806 = vadd.f32 %v2805, %v1716
    %v2807 = vadd.f32 %v2806, %v1718
    %v2808 = vadd.f32 %v2807, %v1720
    %v2809 = vadd.f32 %v2808, %v1722
    %v2810 = vadd.f32 %v2809, %v1724
    %v2811 = vadd.f32 %v2810, %v1726
    %v2812 = vadd.f32 %v2811, %v1728
    %v2813 = vadd.f32 %v2812, %v1730
    %v2814 = vadd.f32 %v2813, %v1732
    %v2815 = vadd.f32 %v2814, %v1734
    %v2816 = vadd.f32 %v2815, %v1736
    %v2817 = vadd.f32 %v2816, %v1738
    %v2818 = vadd.f32 %v2817, %v1740
    %v2819 = vadd.f32 %v2818, %v1742
    %v2820 = vadd.f32 %v2819, %v1744
    %v2821 = vadd.f32 %v2820, %v1746
    %v2822 = vadd.f32 %v2821, %v1748
    %v2823 = vadd.f32 %v2822, %v1750
    %v2824 = vadd.f32 %v2823, %v1752
    %v2825 = vadd.f32 %v2824, %v1754
    %v2826 = vadd.f32 %v2825, %v1756
    %v2827 = vadd.f32 %v2826, %v1758
    %v2828 = vrot.slane %v2827, 4
    %v2829 = vadd.f32 %v2827, %v2828
    %v2830 = vrot.slane %v2829, 2
    %v2831 = vadd.f32 %v2829, %v2830
    %v2832 = vrot.slane %v2831, 1
    %v2833 = vadd.f32 %v2831, %v2832
    %v2834 = vsel %vm1909, %v1665, 0.0
    %v2835 = vsel %vm1909, %v1667, 0.0
    %v2836 = vadd.f32 %v2834, %v2835
    %v2837 = vsel %vm1909, %v1669, 0.0
    %v2838 = vadd.f32 %v2836, %v2837
    %v2839 = vsel %vm1909, %v1671, 0.0
    %v2840 = vadd.f32 %v2838, %v2839
    %v2841 = vsel %vm1909, %v1673, 0.0
    %v2842 = vadd.f32 %v2840, %v2841
    %v2843 = vsel %vm1909, %v1675, 0.0
    %v2844 = vadd.f32 %v2842, %v2843
    %v2845 = vsel %vm1909, %v1677, 0.0
    %v2846 = vadd.f32 %v2844, %v2845
    %v2847 = vsel %vm1909, %v1679, 0.0
    %v2848 = vadd.f32 %v2846, %v2847
    %v2849 = vsel %vm1909, %v1681, 0.0
    %v2850 = vadd.f32 %v2848, %v2849
    %v2851 = vsel %vm1909, %v1683, 0.0
    %v2852 = vadd.f32 %v2850, %v2851
    %v2853 = vsel %vm1909, %v1685, 0.0
    %v2854 = vadd.f32 %v2852, %v2853
    %v2855 = vsel %vm1909, %v1687, 0.0
    %v2856 = vadd.f32 %v2854, %v2855
    %v2857 = vsel %vm1909, %v1689, 0.0
    %v2858 = vadd.f32 %v2856, %v2857
    %v2859 = vsel %vm1909, %v1691, 0.0
    %v2860 = vadd.f32 %v2858, %v2859
    %v2861 = vsel %vm1909, %v1693, 0.0
    %v2862 = vadd.f32 %v2860, %v2861
    %v2863 = vsel %vm1909, %v1695, 0.0
    %v2864 = vadd.f32 %v2862, %v2863
    %v2865 = vsel %vm1909, %v1697, 0.0
    %v2866 = vadd.f32 %v2864, %v2865
    %v2867 = vsel %vm1909, %v1699, 0.0
    %v2868 = vadd.f32 %v2866, %v2867
    %v2869 = vsel %vm1909, %v1701, 0.0
    %v2870 = vadd.f32 %v2868, %v2869
    %v2871 = vsel %vm1909, %v1703, 0.0
    %v2872 = vadd.f32 %v2870, %v2871
    %v2873 = vsel %vm1909, %v1705, 0.0
    %v2874 = vadd.f32 %v2872, %v2873
    %v2875 = vsel %vm1909, %v1707, 0.0
    %v2876 = vadd.f32 %v2874, %v2875
    %v2877 = vsel %vm1909, %v1709, 0.0
    %v2878 = vadd.f32 %v2876, %v2877
    %v2879 = vsel %vm1909, %v1711, 0.0
    %v2880 = vadd.f32 %v2878, %v2879
    %v2881 = vsel %vm1909, %v1713, 0.0
    %v2882 = vadd.f32 %v2880, %v2881
    %v2883 = vsel %vm1909, %v1715, 0.0
    %v2884 = vadd.f32 %v2882, %v2883
    %v2885 = vsel %vm1909, %v1717, 0.0
    %v2886 = vadd.f32 %v2884, %v2885
    %v2887 = vsel %vm1909, %v1719, 0.0
    %v2888 = vadd.f32 %v2886, %v2887
    %v2889 = vsel %vm1909, %v1721, 0.0
    %v2890 = vadd.f32 %v2888, %v2889
    %v2891 = vsel %vm1909, %v1723, 0.0
    %v2892 = vadd.f32 %v2890, %v2891
    %v2893 = vsel %vm1909, %v1725, 0.0
    %v2894 = vadd.f32 %v2892, %v2893
    %v2895 = vsel %vm1909, %v1727, 0.0
    %v2896 = vadd.f32 %v2894, %v2895
    %v2897 = vsel %vm1909, %v1729, 0.0
    %v2898 = vadd.f32 %v2896, %v2897
    %v2899 = vsel %vm1909, %v1731, 0.0
    %v2900 = vadd.f32 %v2898, %v2899
    %v2901 = vsel %vm1909, %v1733, 0.0
    %v2902 = vadd.f32 %v2900, %v2901
    %v2903 = vsel %vm1909, %v1735, 0.0
    %v2904 = vadd.f32 %v2902, %v2903
    %v2905 = vsel %vm1909, %v1737, 0.0
    %v2906 = vadd.f32 %v2904, %v2905
    %v2907 = vsel %vm1909, %v1739, 0.0
    %v2908 = vadd.f32 %v2906, %v2907
    %v2909 = vsel %vm1909, %v1741, 0.0
    %v2910 = vadd.f32 %v2908, %v2909
    %v2911 = vsel %vm1909, %v1743, 0.0
    %v2912 = vadd.f32 %v2910, %v2911
    %v2913 = vsel %vm1909, %v1745, 0.0
    %v2914 = vadd.f32 %v2912, %v2913
    %v2915 = vsel %vm1909, %v1747, 0.0
    %v2916 = vadd.f32 %v2914, %v2915
    %v2917 = vsel %vm1909, %v1749, 0.0
    %v2918 = vadd.f32 %v2916, %v2917
    %v2919 = vsel %vm1909, %v1751, 0.0
    %v2920 = vadd.f32 %v2918, %v2919
    %v2921 = vsel %vm1909, %v1753, 0.0
    %v2922 = vadd.f32 %v2920, %v2921
    %v2923 = vsel %vm1909, %v1755, 0.0
    %v2924 = vadd.f32 %v2922, %v2923
    %v2925 = vsel %vm1909, %v1757, 0.0
    %v2926 = vadd.f32 %v2924, %v2925
    %v2927 = vsel %vm1909, %v1759, 0.0
    %v2928 = vadd.f32 %v2926, %v2927
    %v2929 = vrot.slane %v2928, 4
    %v2930 = vadd.f32 %v2928, %v2929
    %v2931 = vrot.slane %v2930, 2
    %v2932 = vadd.f32 %v2930, %v2931
    %v2933 = vrot.slane %v2932, 1
    %v2934 = vadd.f32 %v2932, %v2933
    %v2935 = vadd.f32 %v1760, %v1762
    %v2936 = vadd.f32 %v2935, %v1764
    %v2937 = vadd.f32 %v2936, %v1766
    %v2938 = vadd.f32 %v2937, %v1768
    %v2939 = vadd.f32 %v2938, %v1770
    %v2940 = vadd.f32 %v2939, %v1772
    %v2941 = vadd.f32 %v2940, %v1774
    %v2942 = vadd.f32 %v2941, %v1776
    %v2943 = vadd.f32 %v2942, %v1778
    %v2944 = vadd.f32 %v2943, %v1780
    %v2945 = vadd.f32 %v2944, %v1782
    %v2946 = vadd.f32 %v2945, %v1784
    %v2947 = vadd.f32 %v2946, %v1786
    %v2948 = vadd.f32 %v2947, %v1788
    %v2949 = vadd.f32 %v2948, %v1790
    %v2950 = vadd.f32 %v2949, %v1792
    %v2951 = vadd.f32 %v2950, %v1794
    %v2952 = vadd.f32 %v2951, %v1796
    %v2953 = vadd.f32 %v2952, %v1798
    %v2954 = vadd.f32 %v2953, %v1800
    %v2955 = vadd.f32 %v2954, %v1802
    %v2956 = vadd.f32 %v2955, %v1804
    %v2957 = vadd.f32 %v2956, %v1806
    %v2958 = vadd.f32 %v2957, %v1808
    %v2959 = vadd.f32 %v2958, %v1810
    %v2960 = vadd.f32 %v2959, %v1812
    %v2961 = vadd.f32 %v2960, %v1814
    %v2962 = vadd.f32 %v2961, %v1816
    %v2963 = vadd.f32 %v2962, %v1818
    %v2964 = vadd.f32 %v2963, %v1820
    %v2965 = vadd.f32 %v2964, %v1822
    %v2966 = vadd.f32 %v2965, %v1824
    %v2967 = vadd.f32 %v2966, %v1826
    %v2968 = vadd.f32 %v2967, %v1828
    %v2969 = vadd.f32 %v2968, %v1830
    %v2970 = vadd.f32 %v2969, %v1832
    %v2971 = vadd.f32 %v2970, %v1834
    %v2972 = vadd.f32 %v2971, %v1836
    %v2973 = vadd.f32 %v2972, %v1838
    %v2974 = vadd.f32 %v2973, %v1840
    %v2975 = vadd.f32 %v2974, %v1842
    %v2976 = vadd.f32 %v2975, %v1844
    %v2977 = vadd.f32 %v2976, %v1846
    %v2978 = vadd.f32 %v2977, %v1848
    %v2979 = vadd.f32 %v2978, %v1850
    %v2980 = vadd.f32 %v2979, %v1852
    %v2981 = vadd.f32 %v2980, %v1854
    %v2982 = vrot.slane %v2981, 4
    %v2983 = vadd.f32 %v2981, %v2982
    %v2984 = vrot.slane %v2983, 2
    %v2985 = vadd.f32 %v2983, %v2984
    %v2986 = vrot.slane %v2985, 1
    %v2987 = vadd.f32 %v2985, %v2986
    %v2988 = vsel %vm1909, %v1761, 0.0
    %v2989 = vsel %vm1909, %v1763, 0.0
    %v2990 = vadd.f32 %v2988, %v2989
    %v2991 = vsel %vm1909, %v1765, 0.0
    %v2992 = vadd.f32 %v2990, %v2991
    %v2993 = vsel %vm1909, %v1767, 0.0
    %v2994 = vadd.f32 %v2992, %v2993
    %v2995 = vsel %vm1909, %v1769, 0.0
    %v2996 = vadd.f32 %v2994, %v2995
    %v2997 = vsel %vm1909, %v1771, 0.0
    %v2998 = vadd.f32 %v2996, %v2997
    %v2999 = vsel %vm1909, %v1773, 0.0
    %v3000 = vadd.f32 %v2998, %v2999
    %v3001 = vsel %vm1909, %v1775, 0.0
    %v3002 = vadd.f32 %v3000, %v3001
    %v3003 = vsel %vm1909, %v1777, 0.0
    %v3004 = vadd.f32 %v3002, %v3003
    %v3005 = vsel %vm1909, %v1779, 0.0
    %v3006 = vadd.f32 %v3004, %v3005
    %v3007 = vsel %vm1909, %v1781, 0.0
    %v3008 = vadd.f32 %v3006, %v3007
    %v3009 = vsel %vm1909, %v1783, 0.0
    %v3010 = vadd.f32 %v3008, %v3009
    %v3011 = vsel %vm1909, %v1785, 0.0
    %v3012 = vadd.f32 %v3010, %v3011
    %v3013 = vsel %vm1909, %v1787, 0.0
    %v3014 = vadd.f32 %v3012, %v3013
    %v3015 = vsel %vm1909, %v1789, 0.0
    %v3016 = vadd.f32 %v3014, %v3015
    %v3017 = vsel %vm1909, %v1791, 0.0
    %v3018 = vadd.f32 %v3016, %v3017
    %v3019 = vsel %vm1909, %v1793, 0.0
    %v3020 = vadd.f32 %v3018, %v3019
    %v3021 = vsel %vm1909, %v1795, 0.0
    %v3022 = vadd.f32 %v3020, %v3021
    %v3023 = vsel %vm1909, %v1797, 0.0
    %v3024 = vadd.f32 %v3022, %v3023
    %v3025 = vsel %vm1909, %v1799, 0.0
    %v3026 = vadd.f32 %v3024, %v3025
    %v3027 = vsel %vm1909, %v1801, 0.0
    %v3028 = vadd.f32 %v3026, %v3027
    %v3029 = vsel %vm1909, %v1803, 0.0
    %v3030 = vadd.f32 %v3028, %v3029
    %v3031 = vsel %vm1909, %v1805, 0.0
    %v3032 = vadd.f32 %v3030, %v3031
    %v3033 = vsel %vm1909, %v1807, 0.0
    %v3034 = vadd.f32 %v3032, %v3033
    %v3035 = vsel %vm1909, %v1809, 0.0
    %v3036 = vadd.f32 %v3034, %v3035
    %v3037 = vsel %vm1909, %v1811, 0.0
    %v3038 = vadd.f32 %v3036, %v3037
    %v3039 = vsel %vm1909, %v1813, 0.0
    %v3040 = vadd.f32 %v3038, %v3039
    %v3041 = vsel %vm1909, %v1815, 0.0
    %v3042 = vadd.f32 %v3040, %v3041
    %v3043 = vsel %vm1909, %v1817, 0.0
    %v3044 = vadd.f32 %v3042, %v3043
    %v3045 = vsel %vm1909, %v1819, 0.0
    %v3046 = vadd.f32 %v3044, %v3045
    %v3047 = vsel %vm1909, %v1821, 0.0
    %v3048 = vadd.f32 %v3046, %v3047
    %v3049 = vsel %vm1909, %v1823, 0.0
    %v3050 = vadd.f32 %v3048, %v3049
    %v3051 = vsel %vm1909, %v1825, 0.0
    %v3052 = vadd.f32 %v3050, %v3051
    %v3053 = vsel %vm1909, %v1827, 0.0
    %v3054 = vadd.f32 %v3052, %v3053
    %v3055 = vsel %vm1909, %v1829, 0.0
    %v3056 = vadd.f32 %v3054, %v3055
    %v3057 = vsel %vm1909, %v1831, 0.0
    %v3058 = vadd.f32 %v3056, %v3057
    %v3059 = vsel %vm1909, %v1833, 0.0
    %v3060 = vadd.f32 %v3058, %v3059
    %v3061 = vsel %vm1909, %v1835, 0.0
    %v3062 = vadd.f32 %v3060, %v3061
    %v3063 = vsel %vm1909, %v1837, 0.0
    %v3064 = vadd.f32 %v3062, %v3063
    %v3065 = vsel %vm1909, %v1839, 0.0
    %v3066 = vadd.f32 %v3064, %v3065
    %v3067 = vsel %vm1909, %v1841, 0.0
    %v3068 = vadd.f32 %v3066, %v3067
    %v3069 = vsel %vm1909, %v1843, 0.0
    %v3070 = vadd.f32 %v3068, %v3069
    %v3071 = vsel %vm1909, %v1845, 0.0
    %v3072 = vadd.f32 %v3070, %v3071
    %v3073 = vsel %vm1909, %v1847, 0.0
    %v3074 = vadd.f32 %v3072, %v3073
    %v3075 = vsel %vm1909, %v1849, 0.0
    %v3076 = vadd.f32 %v3074, %v3075
    %v3077 = vsel %vm1909, %v1851, 0.0
    %v3078 = vadd.f32 %v3076, %v3077
    %v3079 = vsel %vm1909, %v1853, 0.0
    %v3080 = vadd.f32 %v3078, %v3079
    %v3081 = vsel %vm1909, %v1855, 0.0
    %v3082 = vadd.f32 %v3080, %v3081
    %v3083 = vrot.slane %v3082, 4
    %v3084 = vadd.f32 %v3082, %v3083
    %v3085 = vrot.slane %v3084, 2
    %v3086 = vadd.f32 %v3084, %v3085
    %v3087 = vrot.slane %v3086, 1
    %v3088 = vadd.f32 %v3086, %v3087
    %s3089 = sld [smem:[#allocation2]]
    %v3090 = vstv %s3089
    %v3091 = vadd.f32 %v1908, %v3090
    %v3092 = vadd.f32 %v2010, %v3090
    %v3093 = vadd.f32 %v2063, %v3090
    %v3094 = vadd.f32 %v2164, %v3090
    %v3095 = vadd.f32 %v2217, %v3090
    %v3096 = vadd.f32 %v2318, %v3090
    %v3097 = vadd.f32 %v2371, %v3090
    %v3098 = vadd.f32 %v2472, %v3090
    %v3099 = vadd.f32 %v2525, %v3090
    %v3100 = vadd.f32 %v2626, %v3090
    %v3101 = vadd.f32 %v2679, %v3090
    %v3102 = vadd.f32 %v2780, %v3090
    %v3103 = vadd.f32 %v2833, %v3090
    %v3104 = vadd.f32 %v2934, %v3090
    %v3105 = vadd.f32 %v2987, %v3090
    %v3106 = vadd.f32 %v3088, %v3090
    %v3107 = vxor.u32 %v3091, 2147483648
    %v3108 = vxor.u32 %v3092, 2147483648
    %v3109 = vxor.u32 %v3093, 2147483648
    %v3110 = vxor.u32 %v3094, 2147483648
    %v3111 = vxor.u32 %v3095, 2147483648
    %v3112 = vxor.u32 %v3096, 2147483648
    %v3113 = vxor.u32 %v3097, 2147483648
    %v3114 = vxor.u32 %v3098, 2147483648
    %v3115 = vxor.u32 %v3099, 2147483648
    %v3116 = vxor.u32 %v3100, 2147483648
    %v3117 = vxor.u32 %v3101, 2147483648
    %v3118 = vxor.u32 %v3102, 2147483648
    %v3119 = vxor.u32 %v3103, 2147483648
    %v3120 = vxor.u32 %v3104, 2147483648
    %v3121 = vxor.u32 %v3105, 2147483648
    %v3122 = vxor.u32 %v3106, 2147483648
    %v3123 = vmul.f32 %v3107, 1.442695
    %v3124 = vpow.pop %v3123
    %v3125 = vmul.f32 %v3108, 1.442695
    %v3126 = vpow.pop %v3125
    %v3127 = vmul.f32 %v3109, 1.442695
    %v3128 = vpow.pop %v3127
    %v3129 = vmul.f32 %v3110, 1.442695
    %v3130 = vpow.pop %v3129
    %v3131 = vmul.f32 %v3111, 1.442695
    %v3132 = vpow.pop %v3131
    %v3133 = vmul.f32 %v3112, 1.442695
    %v3134 = vpow.pop %v3133
    %v3135 = vmul.f32 %v3113, 1.442695
    %v3136 = vpow.pop %v3135
    %v3137 = vmul.f32 %v3114, 1.442695
    %v3138 = vpow.pop %v3137
    %v3139 = vmul.f32 %v3115, 1.442695
    %v3140 = vpow.pop %v3139
    %v3141 = vmul.f32 %v3116, 1.442695
    %v3142 = vpow.pop %v3141
    %v3143 = vmul.f32 %v3117, 1.442695
    %v3144 = vpow.pop %v3143
    %v3145 = vmul.f32 %v3118, 1.442695
    %v3146 = vpow.pop %v3145
    %v3147 = vmul.f32 %v3119, 1.442695
    %v3148 = vpow.pop %v3147
    %v3149 = vmul.f32 %v3120, 1.442695
    %v3150 = vpow.pop %v3149
    %v3151 = vmul.f32 %v3121, 1.442695
    %v3152 = vpow.pop %v3151
    %v3153 = vmul.f32 %v3122, 1.442695
    %v3154 = vpow.pop %v3153
    %v3155 = vadd.f32 %v3124, 1.0
    %v3156 = vadd.f32 %v3126, 1.0
    %v3157 = vadd.f32 %v3128, 1.0
    %v3158 = vadd.f32 %v3130, 1.0
    %v3159 = vadd.f32 %v3132, 1.0
    %v3160 = vadd.f32 %v3134, 1.0
    %v3161 = vadd.f32 %v3136, 1.0
    %v3162 = vadd.f32 %v3138, 1.0
    %v3163 = vadd.f32 %v3140, 1.0
    %v3164 = vadd.f32 %v3142, 1.0
    %v3165 = vadd.f32 %v3144, 1.0
    %v3166 = vadd.f32 %v3146, 1.0
    %v3167 = vadd.f32 %v3148, 1.0
    %v3168 = vadd.f32 %v3150, 1.0
    %v3169 = vadd.f32 %v3152, 1.0
    %v3170 = vadd.f32 %v3154, 1.0
    %v3171 = vrcp.pop %v3155
    %v3172 = vmul.f32 1.0, %v3171
    %v3173 = vrcp.pop %v3156
    %v3174 = vmul.f32 1.0, %v3173
    %v3175 = vrcp.pop %v3157
    %v3176 = vmul.f32 1.0, %v3175
    %v3177 = vrcp.pop %v3158
    %v3178 = vmul.f32 1.0, %v3177
    %v3179 = vrcp.pop %v3159
    %v3180 = vmul.f32 1.0, %v3179
    %v3181 = vrcp.pop %v3160
    %v3182 = vmul.f32 1.0, %v3181
    %v3183 = vrcp.pop %v3161
    %v3184 = vmul.f32 1.0, %v3183
    %v3185 = vrcp.pop %v3162
    %v3186 = vmul.f32 1.0, %v3185
    %v3187 = vrcp.pop %v3163
    %v3188 = vmul.f32 1.0, %v3187
    %v3189 = vrcp.pop %v3164
    %v3190 = vmul.f32 1.0, %v3189
    %v3191 = vrcp.pop %v3165
    %v3192 = vmul.f32 1.0, %v3191
    %v3193 = vrcp.pop %v3166
    %v3194 = vmul.f32 1.0, %v3193
    %v3195 = vrcp.pop %v3167
    %v3196 = vmul.f32 1.0, %v3195
    %v3197 = vrcp.pop %v3168
    %v3198 = vmul.f32 1.0, %v3197
    %v3199 = vrcp.pop %v3169
    %v3200 = vmul.f32 1.0, %v3199
    %v3201 = vrcp.pop %v3170
    %v3202 = vmul.f32 1.0, %v3201
    %vm3219 = vcmask 1041409
    %v3220 = vsel %vm3219, %v3176, %v3172
    %vm3221 = vcmask 1042434
    %v3222 = vsel %vm3221, %v3180, %v3220
    %vm3223 = vcmask 1043459
    %v3224 = vsel %vm3223, %v3184, %v3222
    %vm3225 = vcmask 1044484
    %v3226 = vsel %vm3225, %v3188, %v3224
    %vm3227 = vcmask 1045509
    %v3228 = vsel %vm3227, %v3192, %v3226
    %vm3229 = vcmask 1046534
    %v3230 = vsel %vm3229, %v3196, %v3228
    %vm3231 = vcmask 1047559
    %v3232 = vsel %vm3231, %v3200, %v3230
    %v3233 = vsel %vm3219, %v3178, %v3174
    %v3234 = vsel %vm3221, %v3182, %v3233
    %v3235 = vsel %vm3223, %v3186, %v3234
    %v3236 = vsel %vm3225, %v3190, %v3235
    %v3237 = vsel %vm3227, %v3194, %v3236
    %v3238 = vsel %vm3229, %v3198, %v3237
    %v3239 = vsel %vm3231, %v3202, %v3238
    %3242 = vst [vmem:[%s4] sm:$0xff] %v3232
    %3243 = vst.msk [vmem:[%s4 + $0x8] sm:$0xff] %vm1909, %v3239
    %v3244 = vld [vmem:[%s2] sm:$0x3]
    %v3246 = vlaneseq
    %v3247 = vshrl.u32 %v3246, 7
    %v3248 = vsub.s32 0, %v3247
    %v3249 = vrot.slane %v3244, %v3248
    %v3250 = vlaneseq
    %v3251 = vshrl.u32 %v3250, 7
    %v3252 = vsub.s32 1, %v3251
    %v3253 = vrot.slane %v3244, %v3252
    %v3256 = vmul.f32 %v3172, %v3249
    %v3257 = vmul.f32 %v3174, %v3253
    %v3258 = vmul.f32 %v3176, %v3249
    %v3259 = vmul.f32 %v3178, %v3253
    %v3260 = vmul.f32 %v3180, %v3249
    %v3261 = vmul.f32 %v3182, %v3253
    %v3262 = vmul.f32 %v3184, %v3249
    %v3263 = vmul.f32 %v3186, %v3253
    %v3264 = vmul.f32 %v3188, %v3249
    %v3265 = vmul.f32 %v3190, %v3253
    %v3266 = vmul.f32 %v3192, %v3249
    %v3267 = vmul.f32 %v3194, %v3253
    %v3268 = vmul.f32 %v3196, %v3249
    %v3269 = vmul.f32 %v3198, %v3253
    %v3270 = vmul.f32 %v3200, %v3249
    %v3271 = vmul.f32 %v3202, %v3253
    %v3288 = vrot.slane %v3258, 7
    %v3289 = vsel %vm3219, %v3288, %v3256
    %v3290 = vrot.slane %v3260, 6
    %v3291 = vsel %vm3221, %v3290, %v3289
    %v3292 = vrot.slane %v3262, 5
    %v3293 = vsel %vm3223, %v3292, %v3291
    %v3294 = vrot.slane %v3264, 4
    %v3295 = vsel %vm3225, %v3294, %v3293
    %v3296 = vrot.slane %v3266, 3
    %v3297 = vsel %vm3227, %v3296, %v3295
    %v3298 = vrot.slane %v3268, 2
    %v3299 = vsel %vm3229, %v3298, %v3297
    %v3300 = vrot.slane %v3270, 1
    %v3301 = vsel %vm3231, %v3300, %v3299
    %v3302 = vrot.slane %v3259, 7
    %v3303 = vsel %vm3219, %v3302, %v3257
    %v3304 = vrot.slane %v3261, 6
    %v3305 = vsel %vm3221, %v3304, %v3303
    %v3306 = vrot.slane %v3263, 5
    %v3307 = vsel %vm3223, %v3306, %v3305
    %v3308 = vrot.slane %v3265, 4
    %v3309 = vsel %vm3225, %v3308, %v3307
    %v3310 = vrot.slane %v3267, 3
    %v3311 = vsel %vm3227, %v3310, %v3309
    %v3312 = vrot.slane %v3269, 2
    %v3313 = vsel %vm3229, %v3312, %v3311
    %v3314 = vrot.slane %v3271, 1
    %v3315 = vsel %vm3231, %v3314, %v3313
    %v3318 = vsel %vm1909, %v3315, 0.0
    %v3319 = vadd.f32 %v3301, %v3318
    %3320 = vadd.xlane.f32.xlu0 %v3319
    %v3321 = vpop.xlane.xlu0 %3320
    %s3322 = sld [smem:[#allocation2 + $0x1]]
    %v3323 = vstv %s3322
    %v3324 = vadd.f32 %v3321, %v3323
    %v3325 = vxor.u32 %v3324, 2147483648
    %v3326 = vmul.f32 %v3325, 1.442695
    %v3327 = vpow.pop %v3326
    %v3328 = vadd.f32 %v3327, 1.0
    %v3329 = vrcp.pop %v3328
    %v3330 = vmul.f32 1.0, %v3329
    %vm3331 = vcmask 7168
    %3332 = vst.msk [vmem:[%s5] sm:$0xff] %vm3331, %v3330
    // Predicated region
    $region22: #{deepixbis_head.1} parent=1 // pred_check
      _
    $region23: #{deepixbis_head.1} parent=1 // pred_check_branch
      %3334 = sbr.rel (0) target = $region25
    $region24: #{deepixbis_head.1} parent=1 // pred_region
      _
    $region25: #{deepixbis_head.1} parent=1 // pred_fallthru
      _
    // Predicated region
    $region26: #{deepixbis_head.1} parent=1 // pred_check
      _
    $region27: #{deepixbis_head.1} parent=1 // pred_check_branch
      %3336 = sbr.rel (0) target = $region29
    $region28: #{deepixbis_head.1} parent=1 // pred_region
      _
    $region29: #{deepixbis_head.1} parent=1 // pred_fallthru
      _
    // Predicated region
    $region30: #{deepixbis_head.1} parent=1 // pred_check
      _
    $region31: #{deepixbis_head.1} parent=1 // pred_check_branch
      %3338 = sbr.rel (0) target = $region33
    $region32: #{deepixbis_head.1} parent=1 // pred_region
      _
    $region33: #{deepixbis_head.1} parent=1 // pred_fallthru
      _
    // Predicated region
    $region34: #{deepixbis_head.1} parent=1 // pred_check
      _
    $region35: #{deepixbis_head.1} parent=1 // pred_check_branch
      %3340 = sbr.rel (0) target = $region37
    $region36: #{deepixbis_head.1} parent=1 // pred_region
      _
    $region37: #{deepixbis_head.1} parent=1 // pred_fallthru
      _
    %3341 = vsyncpa [#allocation3], 1

</llo_original>
